<compile_context>
chip_gen: v6e
topology: v6e:2x2x1
jax: 0.10.0
libtpu: 0.0.40
codegen_flags: <defaults>
</compile_context>

<pallas_src>
import functools

import jax
import jax.numpy as jnp
from jax import lax
from jax.experimental import pallas as pl
from jax.experimental.pallas import tpu as pltpu

LANE = 128     # pad Cout to a multiple of this (lane-dense stores)
SUBLANE = 16   # pad output width to a multiple of this (bf16 sublane packing)


def _round_up(x, m):
    return ((x + m - 1) // m) * m


def _vmem_limit_bytes():
    """Generation-aware VMEM budget (v5e/v6e: ~96 MiB, v7x: ~48 MiB)."""
    cap = 64 * 1024 * 1024
    try:
        info = pltpu.get_tpu_info()
        cap = int(getattr(info, "vmem_capacity_bytes", cap))
    except Exception:
        pass
    return max(32 * 1024 * 1024, (cap * 3) // 4)


def _choose_row_tile(ho, wo_p, cpad, batch):
    """Largest divisor of Ho s.t. the grid has >=4 steps (2 TCs on v7x stay
    busy even for the tiny conv3) and the f32 accumulator stays modest."""
    acc_budget = 8 * 1024 * 1024
    divisors = sorted((d for d in range(1, ho + 1) if ho % d == 0), reverse=True)
    for d in divisors:
        if batch * (ho // d) >= 4 and d * wo_p * cpad * 4 <= acc_budget:
            return d
    for d in divisors:
        if d * wo_p * cpad * 4 <= acc_budget:
            return d
    return 1


def _conv3x3_tap_kernel(x_ref, w_ref, b_ref, o_ref, *, tr, wo_p, relu):
    # x_ref: (Ho+2, Wo_p+2, Kc) bf16  -- full halo'd image, resident across row tiles
    # w_ref: (9, Kc, Cpad)      bf16  -- per-tap weights (grid-invariant)
    # b_ref: (1, Cpad)          f32
    # o_ref: (TR, Wo_p, Cpad)   bf16
    kc = x_ref.shape[-1]
    cpad = o_ref.shape[-1]
    r0 = pl.program_id(1) * tr
    acc = jnp.zeros((tr * wo_p, cpad), jnp.float32)
    for kh in range(3):
        for kw in range(3):
            xs = x_ref[pl.ds(r0 + kh, tr), pl.ds(kw, wo_p), :]   # (TR, Wo_p, Kc)
            xs = xs.reshape(tr * wo_p, kc)                       # Wo_p % 16 == 0
            acc = acc + jnp.dot(xs, w_ref[kh * 3 + kw],
                                preferred_element_type=jnp.float32)
    acc = acc + b_ref[...]
    if relu:
        acc = jnp.maximum(acc, 0.0)
    o_ref[...] = acc.reshape(tr, wo_p, cpad).astype(o_ref.dtype)


def conv2d_pallas(x, w, b, *, stride, padding, relu):
    """NHWC conv.  x: (B,H,W,Cin); w: (k,k,Cin,Cout) HWIO; b: (Cout,).
    Returns (B, Ho, Wo, Cout) in bf16 (bias/ReLU computed in f32)."""
    B, H, W, cin = x.shape
    k = w.shape[0]
    cout = w.shape[-1]
    ho = (H + 2 * padding - k) // stride + 1
    wo = (W + 2 * padding - k) // stride + 1
    wo_p = _round_up(wo, SUBLANE)
    cpad = _round_up(cout, LANE)
    hop2, wop2 = ho + 2, wo_p + 2

    x = x.astype(jnp.bfloat16)          # cast BEFORE any spatial rearrangement

    if stride == 1:
        assert k == 3 and padding == 1
        # Plain zero-pad: kernel tap (kh,kw) reads x_pad[ho+kh, wo+kw].
        x3 = jnp.pad(x, ((0, 0),
                         (padding, hop2 - H - padding),
                         (padding, wop2 - W - padding), (0, 0)))
        w9 = w.reshape(9, cin, cout)
        kc = cin
    else:
        assert stride == 2 and k == 5 and padding == 2
        # Space-to-depth: 5x5/s2 conv on x_pad == 3x3/s1 conv on the
        # phase-folded image (2x2 phases merged into channels).
        xpad = jnp.pad(x, ((0, 0),
                           (padding, 2 * hop2 - H - padding),
                           (padding, 2 * wop2 - W - padding), (0, 0)))
        x3 = xpad.reshape(B, hop2, 2, wop2, 2, cin)
        x3 = x3.transpose(0, 1, 3, 2, 4, 5).reshape(B, hop2, wop2, 4 * cin)
        wpad = jnp.pad(w, ((0, 1), (0, 1), (0, 0), (0, 0)))        # (6,6,Cin,Cout)
        w9 = wpad.reshape(3, 2, 3, 2, cin, cout)
        w9 = w9.transpose(0, 2, 1, 3, 4, 5).reshape(9, 4 * cin, cout)
        kc = 4 * cin

    # Lane-dense weights / bias (pad Cout up to a multiple of 128 once).
    w9 = jnp.pad(w9.astype(jnp.bfloat16), ((0, 0), (0, 0), (0, cpad - cout)))
    b2 = jnp.pad(b.astype(jnp.float32).reshape(1, cout), ((0, 0), (0, cpad - cout)))

    tr = _choose_row_tile(ho, wo_p, cpad, B)
    n_rt = ho // tr

    kernel = functools.partial(_conv3x3_tap_kernel, tr=tr, wo_p=wo_p, relu=relu)
    flops = 2 * B * ho * wo_p * 9 * kc * cpad
    bytes_accessed = (x3.size * 2 + w9.size * 2 + b2.size * 4
                      + B * ho * wo_p * cpad * 2)

    out = pl.pallas_call(
        kernel,
        out_shape=jax.ShapeDtypeStruct((B, ho, wo_p, cpad), jnp.bfloat16),
        grid_spec=pltpu.PrefetchScalarGridSpec(
            num_scalar_prefetch=0,
            grid=(B, n_rt),
            in_specs=[
                # Full image per batch element; constant index map across the
                # row-tile axis -> fetched once per batch, reused by all tiles.
                pl.BlockSpec((None, hop2, wop2, kc), lambda bb, r: (bb, 0, 0, 0)),
                pl.BlockSpec((9, kc, cpad), lambda bb, r: (0, 0, 0)),
                pl.BlockSpec((1, cpad), lambda bb, r: (0, 0)),
            ],
            out_specs=pl.BlockSpec((None, tr, wo_p, cpad),
                                   lambda bb, r: (bb, r, 0, 0)),
        ),
        compiler_params=pltpu.CompilerParams(
            dimension_semantics=("parallel", "parallel"),
            vmem_limit_bytes=_vmem_limit_bytes(),
        ),
        cost_estimate=pl.CostEstimate(flops=flops, transcendentals=0,
                                      bytes_accessed=bytes_accessed),
    )(x3, w9, b2)

    return out[:, :, :wo, :cout]


def init_params(key, M, N):
    """Deterministic synthetic parameters (HWIO weights, matching nn.Conv2d shapes)."""
    k1, k2, k3, k4, k5, k6 = jax.random.split(key, 6)
    scale = 0.1
    return {
        "w1": scale * jax.random.normal(k1, (3, 3, M, N), jnp.float32),
        "b1": scale * jax.random.normal(k2, (N,), jnp.float32),
        "w2": scale * jax.random.normal(k3, (5, 5, N, N), jnp.float32),
        "b2": scale * jax.random.normal(k4, (N,), jnp.float32),
        "w3": scale * jax.random.normal(k5, (5, 5, N, N), jnp.float32),
        "b3": scale * jax.random.normal(k6, (N,), jnp.float32),
    }


def hyper_analysis_ex(x_nchw, params):
    """Forward pass. x_nchw: (B, M, H, W) -> (B, N, H//4, W//4) f32."""
    x = jnp.transpose(x_nchw, (0, 2, 3, 1))   # NCHW -> NHWC once, at the entry
    x = conv2d_pallas(x, params["w1"], params["b1"], stride=1, padding=1, relu=True)
    x = conv2d_pallas(x, params["w2"], params["b2"], stride=2, padding=2, relu=True)
    x = conv2d_pallas(x, params["w3"], params["b3"], stride=2, padding=2, relu=False)
    return jnp.transpose(x, (0, 3, 1, 2)).astype(jnp.float32)


# -------- pure-JAX reference (matched bf16 layer boundaries, f32 accumulation) -----
def _ref_conv(x, w, b, stride, padding, relu):
    y = lax.conv_general_dilated(
        x.astype(jnp.bfloat16), w.astype(jnp.bfloat16),
        window_strides=(stride, stride),
        padding=((padding, padding), (padding, padding)),
        dimension_numbers=("NHWC", "HWIO", "NHWC"),
        preferred_element_type=jnp.float32)
    y = y + b.astype(jnp.float32).reshape(1, 1, 1, -1)
    if relu:
        y = jnp.maximum(y, 0.0)
    return y.astype(jnp.bfloat16)


def hyper_analysis_ex_ref(x_nchw, params):
    x = jnp.transpose(x_nchw, (0, 2, 3, 1))
    x = _ref_conv(x, params["w1"], params["b1"], 1, 1, True)
    x = _ref_conv(x, params["w2"], params["b2"], 2, 2, True)
    x = _ref_conv(x, params["w3"], params["b3"], 2, 2, False)
    return jnp.transpose(x, (0, 3, 1, 2)).astype(jnp.float32)


if __name__ == "__main__":
    B, M, N, H, W = 2, 4, 8, 16, 16
    key = jax.random.PRNGKey(0)
    kx, kp = jax.random.split(key)
    x = jax.random.normal(kx, (B, M, H, W), jnp.float32)
    params = init_params(kp, M, N)

    out = jax.jit(hyper_analysis_ex)(x, params)
    out = jax.block_until_ready(out)

    ref = jax.block_until_ready(hyper_analysis_ex_ref(x, params))
    assert out.shape == (B, N, H // 4, W // 4), out.shape
    assert jnp.allclose(out, ref, atol=2e-2, rtol=2e-2), \
        float(jnp.max(jnp.abs(out - ref)))

    print("KERNEL_OK")
</pallas_src>

<mosaic_0001>
module attributes {stable_mosaic.version = 11 : i64} {
  func.func @_conv3x3_tap_kernel(%arg0: i32, %arg1: i32, %arg2: memref<1x18x18x4xbf16, #tpu.memory_space<vmem>>, %arg3: memref<9x4x128xbf16, #tpu.memory_space<vmem>>, %arg4: memref<1x128xf32, #tpu.memory_space<vmem>>, %arg5: memref<1x8x16x128xbf16, #tpu.memory_space<vmem>>) attributes {dimension_semantics = [#tpu.dimension_semantics<parallel>, #tpu.dimension_semantics<parallel>], iteration_bounds = array<i64: 2, 2>, scalar_prefetch = 0 : i64, scratch_operands = 0 : i64, tpu.core_type = #tpu.core_type<tc>, window_params = [{transform_indices = @transform_0, window_bounds = array<i64: 1, 18, 18, 4>}, {pipeline_mode = #tpu.pipeline_mode<synchronous>, transform_indices = @transform_1, window_bounds = array<i64: 9, 4, 128>}, {pipeline_mode = #tpu.pipeline_mode<synchronous>, transform_indices = @transform_2, window_bounds = array<i64: 1, 128>}, {transform_indices = @transform_3, window_bounds = array<i64: 1, 8, 16, 128>}]} {
    %c8_i32 = arith.constant 8 : i32
    %0 = arith.muli %arg1, %c8_i32 : i32
    %cst = arith.constant 0.000000e+00 : f32
    %1 = vector.broadcast %cst : f32 to vector<128x128xf32>
    %c0_i32 = arith.constant 0 : i32
    %2 = arith.addi %0, %c0_i32 : i32
    %c0 = arith.constant 0 : index
    %3 = arith.index_cast %2 : i32 to index
    %c0_0 = arith.constant 0 : index
    %c0_1 = arith.constant 0 : index
    %4 = vector.load %arg2[%c0, %3, %c0_0, %c0_1] : memref<1x18x18x4xbf16, #tpu.memory_space<vmem>>, vector<1x8x16x4xbf16>
    %5 = vector.shape_cast %4 : vector<1x8x16x4xbf16> to vector<8x16x4xbf16>
    %6 = vector.shape_cast %5 : vector<8x16x4xbf16> to vector<128x4xbf16>
    %c0_2 = arith.constant 0 : index
    %c0_3 = arith.constant 0 : index
    %c0_4 = arith.constant 0 : index
    %7 = vector.load %arg3[%c0_2, %c0_3, %c0_4] : memref<9x4x128xbf16, #tpu.memory_space<vmem>>, vector<1x4x128xbf16>
    %8 = vector.shape_cast %7 : vector<1x4x128xbf16> to vector<4x128xbf16>
    %cst_5 = arith.constant dense<0.000000e+00> : vector<128x128xf32>
    %9 = tpu.matmul %6, %8, %cst_5 {dimension_numbers = #tpu.dot_dimension_numbers<[1], [0], [0], [1], [0, 0, 1, 1], [], []>} : vector<128x4xbf16>, vector<4x128xbf16>, vector<128x128xf32> -> vector<128x128xf32>
    %10 = arith.addf %1, %9 : vector<128x128xf32>
    %c0_i32_6 = arith.constant 0 : i32
    %11 = arith.addi %0, %c0_i32_6 : i32
    %c0_7 = arith.constant 0 : index
    %12 = arith.index_cast %11 : i32 to index
    %c1 = arith.constant 1 : index
    %c0_8 = arith.constant 0 : index
    %13 = vector.load %arg2[%c0_7, %12, %c1, %c0_8] : memref<1x18x18x4xbf16, #tpu.memory_space<vmem>>, vector<1x8x16x4xbf16>
    %14 = vector.shape_cast %13 : vector<1x8x16x4xbf16> to vector<8x16x4xbf16>
    %15 = vector.shape_cast %14 : vector<8x16x4xbf16> to vector<128x4xbf16>
    %c1_9 = arith.constant 1 : index
    %c0_10 = arith.constant 0 : index
    %c0_11 = arith.constant 0 : index
    %16 = vector.load %arg3[%c1_9, %c0_10, %c0_11] : memref<9x4x128xbf16, #tpu.memory_space<vmem>>, vector<1x4x128xbf16>
    %17 = vector.shape_cast %16 : vector<1x4x128xbf16> to vector<4x128xbf16>
    %cst_12 = arith.constant dense<0.000000e+00> : vector<128x128xf32>
    %18 = tpu.matmul %15, %17, %cst_12 {dimension_numbers = #tpu.dot_dimension_numbers<[1], [0], [0], [1], [0, 0, 1, 1], [], []>} : vector<128x4xbf16>, vector<4x128xbf16>, vector<128x128xf32> -> vector<128x128xf32>
    %19 = arith.addf %10, %18 : vector<128x128xf32>
    %c0_i32_13 = arith.constant 0 : i32
    %20 = arith.addi %0, %c0_i32_13 : i32
    %c0_14 = arith.constant 0 : index
    %21 = arith.index_cast %20 : i32 to index
    %c2 = arith.constant 2 : index
    %c0_15 = arith.constant 0 : index
    %22 = vector.load %arg2[%c0_14, %21, %c2, %c0_15] : memref<1x18x18x4xbf16, #tpu.memory_space<vmem>>, vector<1x8x16x4xbf16>
    %23 = vector.shape_cast %22 : vector<1x8x16x4xbf16> to vector<8x16x4xbf16>
    %24 = vector.shape_cast %23 : vector<8x16x4xbf16> to vector<128x4xbf16>
    %c2_16 = arith.constant 2 : index
    %c0_17 = arith.constant 0 : index
    %c0_18 = arith.constant 0 : index
    %25 = vector.load %arg3[%c2_16, %c0_17, %c0_18] : memref<9x4x128xbf16, #tpu.memory_space<vmem>>, vector<1x4x128xbf16>
    %26 = vector.shape_cast %25 : vector<1x4x128xbf16> to vector<4x128xbf16>
    %cst_19 = arith.constant dense<0.000000e+00> : vector<128x128xf32>
    %27 = tpu.matmul %24, %26, %cst_19 {dimension_numbers = #tpu.dot_dimension_numbers<[1], [0], [0], [1], [0, 0, 1, 1], [], []>} : vector<128x4xbf16>, vector<4x128xbf16>, vector<128x128xf32> -> vector<128x128xf32>
    %28 = arith.addf %19, %27 : vector<128x128xf32>
    %c1_i32 = arith.constant 1 : i32
    %29 = arith.addi %0, %c1_i32 : i32
    %c0_20 = arith.constant 0 : index
    %30 = arith.index_cast %29 : i32 to index
    %c0_21 = arith.constant 0 : index
    %c0_22 = arith.constant 0 : index
    %31 = vector.load %arg2[%c0_20, %30, %c0_21, %c0_22] : memref<1x18x18x4xbf16, #tpu.memory_space<vmem>>, vector<1x8x16x4xbf16>
    %32 = vector.shape_cast %31 : vector<1x8x16x4xbf16> to vector<8x16x4xbf16>
    %33 = vector.shape_cast %32 : vector<8x16x4xbf16> to vector<128x4xbf16>
    %c3 = arith.constant 3 : index
    %c0_23 = arith.constant 0 : index
    %c0_24 = arith.constant 0 : index
    %34 = vector.load %arg3[%c3, %c0_23, %c0_24] : memref<9x4x128xbf16, #tpu.memory_space<vmem>>, vector<1x4x128xbf16>
    %35 = vector.shape_cast %34 : vector<1x4x128xbf16> to vector<4x128xbf16>
    %cst_25 = arith.constant dense<0.000000e+00> : vector<128x128xf32>
    %36 = tpu.matmul %33, %35, %cst_25 {dimension_numbers = #tpu.dot_dimension_numbers<[1], [0], [0], [1], [0, 0, 1, 1], [], []>} : vector<128x4xbf16>, vector<4x128xbf16>, vector<128x128xf32> -> vector<128x128xf32>
    %37 = arith.addf %28, %36 : vector<128x128xf32>
    %c1_i32_26 = arith.constant 1 : i32
    %38 = arith.addi %0, %c1_i32_26 : i32
    %c0_27 = arith.constant 0 : index
    %39 = arith.index_cast %38 : i32 to index
    %c1_28 = arith.constant 1 : index
    %c0_29 = arith.constant 0 : index
    %40 = vector.load %arg2[%c0_27, %39, %c1_28, %c0_29] : memref<1x18x18x4xbf16, #tpu.memory_space<vmem>>, vector<1x8x16x4xbf16>
    %41 = vector.shape_cast %40 : vector<1x8x16x4xbf16> to vector<8x16x4xbf16>
    %42 = vector.shape_cast %41 : vector<8x16x4xbf16> to vector<128x4xbf16>
    %c4 = arith.constant 4 : index
    %c0_30 = arith.constant 0 : index
    %c0_31 = arith.constant 0 : index
    %43 = vector.load %arg3[%c4, %c0_30, %c0_31] : memref<9x4x128xbf16, #tpu.memory_space<vmem>>, vector<1x4x128xbf16>
    %44 = vector.shape_cast %43 : vector<1x4x128xbf16> to vector<4x128xbf16>
    %cst_32 = arith.constant dense<0.000000e+00> : vector<128x128xf32>
    %45 = tpu.matmul %42, %44, %cst_32 {dimension_numbers = #tpu.dot_dimension_numbers<[1], [0], [0], [1], [0, 0, 1, 1], [], []>} : vector<128x4xbf16>, vector<4x128xbf16>, vector<128x128xf32> -> vector<128x128xf32>
    %46 = arith.addf %37, %45 : vector<128x128xf32>
    %c1_i32_33 = arith.constant 1 : i32
    %47 = arith.addi %0, %c1_i32_33 : i32
    %c0_34 = arith.constant 0 : index
    %48 = arith.index_cast %47 : i32 to index
    %c2_35 = arith.constant 2 : index
    %c0_36 = arith.constant 0 : index
    %49 = vector.load %arg2[%c0_34, %48, %c2_35, %c0_36] : memref<1x18x18x4xbf16, #tpu.memory_space<vmem>>, vector<1x8x16x4xbf16>
    %50 = vector.shape_cast %49 : vector<1x8x16x4xbf16> to vector<8x16x4xbf16>
    %51 = vector.shape_cast %50 : vector<8x16x4xbf16> to vector<128x4xbf16>
    %c5 = arith.constant 5 : index
    %c0_37 = arith.constant 0 : index
    %c0_38 = arith.constant 0 : index
    %52 = vector.load %arg3[%c5, %c0_37, %c0_38] : memref<9x4x128xbf16, #tpu.memory_space<vmem>>, vector<1x4x128xbf16>
    %53 = vector.shape_cast %52 : vector<1x4x128xbf16> to vector<4x128xbf16>
    %cst_39 = arith.constant dense<0.000000e+00> : vector<128x128xf32>
    %54 = tpu.matmul %51, %53, %cst_39 {dimension_numbers = #tpu.dot_dimension_numbers<[1], [0], [0], [1], [0, 0, 1, 1], [], []>} : vector<128x4xbf16>, vector<4x128xbf16>, vector<128x128xf32> -> vector<128x128xf32>
    %55 = arith.addf %46, %54 : vector<128x128xf32>
    %c2_i32 = arith.constant 2 : i32
    %56 = arith.addi %0, %c2_i32 : i32
    %c0_40 = arith.constant 0 : index
    %57 = arith.index_cast %56 : i32 to index
    %c0_41 = arith.constant 0 : index
    %c0_42 = arith.constant 0 : index
    %58 = vector.load %arg2[%c0_40, %57, %c0_41, %c0_42] : memref<1x18x18x4xbf16, #tpu.memory_space<vmem>>, vector<1x8x16x4xbf16>
    %59 = vector.shape_cast %58 : vector<1x8x16x4xbf16> to vector<8x16x4xbf16>
    %60 = vector.shape_cast %59 : vector<8x16x4xbf16> to vector<128x4xbf16>
    %c6 = arith.constant 6 : index
    %c0_43 = arith.constant 0 : index
    %c0_44 = arith.constant 0 : index
    %61 = vector.load %arg3[%c6, %c0_43, %c0_44] : memref<9x4x128xbf16, #tpu.memory_space<vmem>>, vector<1x4x128xbf16>
    %62 = vector.shape_cast %61 : vector<1x4x128xbf16> to vector<4x128xbf16>
    %cst_45 = arith.constant dense<0.000000e+00> : vector<128x128xf32>
    %63 = tpu.matmul %60, %62, %cst_45 {dimension_numbers = #tpu.dot_dimension_numbers<[1], [0], [0], [1], [0, 0, 1, 1], [], []>} : vector<128x4xbf16>, vector<4x128xbf16>, vector<128x128xf32> -> vector<128x128xf32>
    %64 = arith.addf %55, %63 : vector<128x128xf32>
    %c2_i32_46 = arith.constant 2 : i32
    %65 = arith.addi %0, %c2_i32_46 : i32
    %c0_47 = arith.constant 0 : index
    %66 = arith.index_cast %65 : i32 to index
    %c1_48 = arith.constant 1 : index
    %c0_49 = arith.constant 0 : index
    %67 = vector.load %arg2[%c0_47, %66, %c1_48, %c0_49] : memref<1x18x18x4xbf16, #tpu.memory_space<vmem>>, vector<1x8x16x4xbf16>
    %68 = vector.shape_cast %67 : vector<1x8x16x4xbf16> to vector<8x16x4xbf16>
    %69 = vector.shape_cast %68 : vector<8x16x4xbf16> to vector<128x4xbf16>
    %c7 = arith.constant 7 : index
    %c0_50 = arith.constant 0 : index
    %c0_51 = arith.constant 0 : index
    %70 = vector.load %arg3[%c7, %c0_50, %c0_51] : memref<9x4x128xbf16, #tpu.memory_space<vmem>>, vector<1x4x128xbf16>
    %71 = vector.shape_cast %70 : vector<1x4x128xbf16> to vector<4x128xbf16>
    %cst_52 = arith.constant dense<0.000000e+00> : vector<128x128xf32>
    %72 = tpu.matmul %69, %71, %cst_52 {dimension_numbers = #tpu.dot_dimension_numbers<[1], [0], [0], [1], [0, 0, 1, 1], [], []>} : vector<128x4xbf16>, vector<4x128xbf16>, vector<128x128xf32> -> vector<128x128xf32>
    %73 = arith.addf %64, %72 : vector<128x128xf32>
    %c2_i32_53 = arith.constant 2 : i32
    %74 = arith.addi %0, %c2_i32_53 : i32
    %c0_54 = arith.constant 0 : index
    %75 = arith.index_cast %74 : i32 to index
    %c2_55 = arith.constant 2 : index
    %c0_56 = arith.constant 0 : index
    %76 = vector.load %arg2[%c0_54, %75, %c2_55, %c0_56] : memref<1x18x18x4xbf16, #tpu.memory_space<vmem>>, vector<1x8x16x4xbf16>
    %77 = vector.shape_cast %76 : vector<1x8x16x4xbf16> to vector<8x16x4xbf16>
    %78 = vector.shape_cast %77 : vector<8x16x4xbf16> to vector<128x4xbf16>
    %c8 = arith.constant 8 : index
    %c0_57 = arith.constant 0 : index
    %c0_58 = arith.constant 0 : index
    %79 = vector.load %arg3[%c8, %c0_57, %c0_58] : memref<9x4x128xbf16, #tpu.memory_space<vmem>>, vector<1x4x128xbf16>
    %80 = vector.shape_cast %79 : vector<1x4x128xbf16> to vector<4x128xbf16>
    %cst_59 = arith.constant dense<0.000000e+00> : vector<128x128xf32>
    %81 = tpu.matmul %78, %80, %cst_59 {dimension_numbers = #tpu.dot_dimension_numbers<[1], [0], [0], [1], [0, 0, 1, 1], [], []>} : vector<128x4xbf16>, vector<4x128xbf16>, vector<128x128xf32> -> vector<128x128xf32>
    %82 = arith.addf %73, %81 : vector<128x128xf32>
    %c0_60 = arith.constant 0 : index
    %c0_61 = arith.constant 0 : index
    %83 = vector.load %arg4[%c0_60, %c0_61] : memref<1x128xf32, #tpu.memory_space<vmem>>, vector<1x128xf32>
    %84 = vector.broadcast %83 : vector<1x128xf32> to vector<128x128xf32>
    %85 = arith.addf %82, %84 : vector<128x128xf32>
    %cst_62 = arith.constant 0.000000e+00 : f32
    %86 = vector.broadcast %cst_62 : f32 to vector<128x128xf32>
    %87 = arith.maximumf %85, %86 : vector<128x128xf32>
    %88 = vector.shape_cast %87 : vector<128x128xf32> to vector<8x16x128xf32>
    %89 = arith.truncf %88 : vector<8x16x128xf32> to vector<8x16x128xbf16>
    %c0_63 = arith.constant 0 : index
    %c0_64 = arith.constant 0 : index
    %c0_65 = arith.constant 0 : index
    %c0_66 = arith.constant 0 : index
    %90 = vector.load %arg5[%c0_63, %c0_64, %c0_65, %c0_66] : memref<1x8x16x128xbf16, #tpu.memory_space<vmem>>, vector<1x8x16x128xbf16>
    %91 = vector.shape_cast %90 : vector<1x8x16x128xbf16> to vector<8x16x128xbf16>
    %92 = vector.shape_cast %89 : vector<8x16x128xbf16> to vector<1x8x16x128xbf16>
    tpu.vector_store %arg5[%c0_63, %c0_64, %c0_65, %c0_66], %92 {strides = array<i32>} : memref<1x8x16x128xbf16, #tpu.memory_space<vmem>>, vector<1x8x16x128xbf16>,
    return
  }
  func.func @transform_0(%arg0: i32, %arg1: i32) -> (i32, i32, i32, i32) {
    %c0_i32 = arith.constant 0 : i32
    %c0_i32_0 = arith.constant 0 : i32
    %c0_i32_1 = arith.constant 0 : i32
    %c0_i32_2 = arith.constant 0 : i32
    return %arg0, %c0_i32, %c0_i32_0, %c0_i32_1 : i32, i32, i32, i32
  }
  func.func @transform_1(%arg0: i32, %arg1: i32) -> (i32, i32, i32) {
    %c0_i32 = arith.constant 0 : i32
    %c0_i32_0 = arith.constant 0 : i32
    %c0_i32_1 = arith.constant 0 : i32
    %c0_i32_2 = arith.constant 0 : i32
    return %c0_i32, %c0_i32_0, %c0_i32_1 : i32, i32, i32
  }
  func.func @transform_2(%arg0: i32, %arg1: i32) -> (i32, i32) {
    %c0_i32 = arith.constant 0 : i32
    %c0_i32_0 = arith.constant 0 : i32
    %c0_i32_1 = arith.constant 0 : i32
    return %c0_i32, %c0_i32_0 : i32, i32
  }
  func.func @transform_3(%arg0: i32, %arg1: i32) -> (i32, i32, i32, i32) {
    %c0_i32 = arith.constant 0 : i32
    %c0_i32_0 = arith.constant 0 : i32
    %c0_i32_1 = arith.constant 0 : i32
    return %arg0, %arg1, %c0_i32, %c0_i32_0 : i32, i32, i32, i32
  }
}

module attributes {stable_mosaic.version = 11 : i64} {
  func.func @_conv3x3_tap_kernel(%arg0: i32, %arg1: i32, %arg2: memref<1x10x18x32xbf16, #tpu.memory_space<vmem>>, %arg3: memref<9x32x128xbf16, #tpu.memory_space<vmem>>, %arg4: memref<1x128xf32, #tpu.memory_space<vmem>>, %arg5: memref<1x4x16x128xbf16, #tpu.memory_space<vmem>>) attributes {dimension_semantics = [#tpu.dimension_semantics<parallel>, #tpu.dimension_semantics<parallel>], iteration_bounds = array<i64: 2, 2>, scalar_prefetch = 0 : i64, scratch_operands = 0 : i64, tpu.core_type = #tpu.core_type<tc>, window_params = [{transform_indices = @transform_0, window_bounds = array<i64: 1, 10, 18, 32>}, {pipeline_mode = #tpu.pipeline_mode<synchronous>, transform_indices = @transform_1, window_bounds = array<i64: 9, 32, 128>}, {pipeline_mode = #tpu.pipeline_mode<synchronous>, transform_indices = @transform_2, window_bounds = array<i64: 1, 128>}, {transform_indices = @transform_3, window_bounds = array<i64: 1, 4, 16, 128>}]} {
    %c4_i32 = arith.constant 4 : i32
    %0 = arith.muli %arg1, %c4_i32 : i32
    %cst = arith.constant 0.000000e+00 : f32
    %1 = vector.broadcast %cst : f32 to vector<64x128xf32>
    %c0_i32 = arith.constant 0 : i32
    %2 = arith.addi %0, %c0_i32 : i32
    %c0 = arith.constant 0 : index
    %3 = arith.index_cast %2 : i32 to index
    %c0_0 = arith.constant 0 : index
    %c0_1 = arith.constant 0 : index
    %4 = vector.load %arg2[%c0, %3, %c0_0, %c0_1] : memref<1x10x18x32xbf16, #tpu.memory_space<vmem>>, vector<1x4x16x32xbf16>
    %5 = vector.shape_cast %4 : vector<1x4x16x32xbf16> to vector<4x16x32xbf16>
    %6 = vector.shape_cast %5 : vector<4x16x32xbf16> to vector<64x32xbf16>
    %c0_2 = arith.constant 0 : index
    %c0_3 = arith.constant 0 : index
    %c0_4 = arith.constant 0 : index
    %7 = vector.load %arg3[%c0_2, %c0_3, %c0_4] : memref<9x32x128xbf16, #tpu.memory_space<vmem>>, vector<1x32x128xbf16>
    %8 = vector.shape_cast %7 : vector<1x32x128xbf16> to vector<32x128xbf16>
    %cst_5 = arith.constant dense<0.000000e+00> : vector<64x128xf32>
    %9 = tpu.matmul %6, %8, %cst_5 {dimension_numbers = #tpu.dot_dimension_numbers<[1], [0], [0], [1], [0, 0, 1, 1], [], []>} : vector<64x32xbf16>, vector<32x128xbf16>, vector<64x128xf32> -> vector<64x128xf32>
    %10 = arith.addf %1, %9 : vector<64x128xf32>
    %c0_i32_6 = arith.constant 0 : i32
    %11 = arith.addi %0, %c0_i32_6 : i32
    %c0_7 = arith.constant 0 : index
    %12 = arith.index_cast %11 : i32 to index
    %c1 = arith.constant 1 : index
    %c0_8 = arith.constant 0 : index
    %13 = vector.load %arg2[%c0_7, %12, %c1, %c0_8] : memref<1x10x18x32xbf16, #tpu.memory_space<vmem>>, vector<1x4x16x32xbf16>
    %14 = vector.shape_cast %13 : vector<1x4x16x32xbf16> to vector<4x16x32xbf16>
    %15 = vector.shape_cast %14 : vector<4x16x32xbf16> to vector<64x32xbf16>
    %c1_9 = arith.constant 1 : index
    %c0_10 = arith.constant 0 : index
    %c0_11 = arith.constant 0 : index
    %16 = vector.load %arg3[%c1_9, %c0_10, %c0_11] : memref<9x32x128xbf16, #tpu.memory_space<vmem>>, vector<1x32x128xbf16>
    %17 = vector.shape_cast %16 : vector<1x32x128xbf16> to vector<32x128xbf16>
    %cst_12 = arith.constant dense<0.000000e+00> : vector<64x128xf32>
    %18 = tpu.matmul %15, %17, %cst_12 {dimension_numbers = #tpu.dot_dimension_numbers<[1], [0], [0], [1], [0, 0, 1, 1], [], []>} : vector<64x32xbf16>, vector<32x128xbf16>, vector<64x128xf32> -> vector<64x128xf32>
    %19 = arith.addf %10, %18 : vector<64x128xf32>
    %c0_i32_13 = arith.constant 0 : i32
    %20 = arith.addi %0, %c0_i32_13 : i32
    %c0_14 = arith.constant 0 : index
    %21 = arith.index_cast %20 : i32 to index
    %c2 = arith.constant 2 : index
    %c0_15 = arith.constant 0 : index
    %22 = vector.load %arg2[%c0_14, %21, %c2, %c0_15] : memref<1x10x18x32xbf16, #tpu.memory_space<vmem>>, vector<1x4x16x32xbf16>
    %23 = vector.shape_cast %22 : vector<1x4x16x32xbf16> to vector<4x16x32xbf16>
    %24 = vector.shape_cast %23 : vector<4x16x32xbf16> to vector<64x32xbf16>
    %c2_16 = arith.constant 2 : index
    %c0_17 = arith.constant 0 : index
    %c0_18 = arith.constant 0 : index
    %25 = vector.load %arg3[%c2_16, %c0_17, %c0_18] : memref<9x32x128xbf16, #tpu.memory_space<vmem>>, vector<1x32x128xbf16>
    %26 = vector.shape_cast %25 : vector<1x32x128xbf16> to vector<32x128xbf16>
    %cst_19 = arith.constant dense<0.000000e+00> : vector<64x128xf32>
    %27 = tpu.matmul %24, %26, %cst_19 {dimension_numbers = #tpu.dot_dimension_numbers<[1], [0], [0], [1], [0, 0, 1, 1], [], []>} : vector<64x32xbf16>, vector<32x128xbf16>, vector<64x128xf32> -> vector<64x128xf32>
    %28 = arith.addf %19, %27 : vector<64x128xf32>
    %c1_i32 = arith.constant 1 : i32
    %29 = arith.addi %0, %c1_i32 : i32
    %c0_20 = arith.constant 0 : index
    %30 = arith.index_cast %29 : i32 to index
    %c0_21 = arith.constant 0 : index
    %c0_22 = arith.constant 0 : index
    %31 = vector.load %arg2[%c0_20, %30, %c0_21, %c0_22] : memref<1x10x18x32xbf16, #tpu.memory_space<vmem>>, vector<1x4x16x32xbf16>
    %32 = vector.shape_cast %31 : vector<1x4x16x32xbf16> to vector<4x16x32xbf16>
    %33 = vector.shape_cast %32 : vector<4x16x32xbf16> to vector<64x32xbf16>
    %c3 = arith.constant 3 : index
    %c0_23 = arith.constant 0 : index
    %c0_24 = arith.constant 0 : index
    %34 = vector.load %arg3[%c3, %c0_23, %c0_24] : memref<9x32x128xbf16, #tpu.memory_space<vmem>>, vector<1x32x128xbf16>
    %35 = vector.shape_cast %34 : vector<1x32x128xbf16> to vector<32x128xbf16>
    %cst_25 = arith.constant dense<0.000000e+00> : vector<64x128xf32>
    %36 = tpu.matmul %33, %35, %cst_25 {dimension_numbers = #tpu.dot_dimension_numbers<[1], [0], [0], [1], [0, 0, 1, 1], [], []>} : vector<64x32xbf16>, vector<32x128xbf16>, vector<64x128xf32> -> vector<64x128xf32>
    %37 = arith.addf %28, %36 : vector<64x128xf32>
    %c1_i32_26 = arith.constant 1 : i32
    %38 = arith.addi %0, %c1_i32_26 : i32
    %c0_27 = arith.constant 0 : index
    %39 = arith.index_cast %38 : i32 to index
    %c1_28 = arith.constant 1 : index
    %c0_29 = arith.constant 0 : index
    %40 = vector.load %arg2[%c0_27, %39, %c1_28, %c0_29] : memref<1x10x18x32xbf16, #tpu.memory_space<vmem>>, vector<1x4x16x32xbf16>
    %41 = vector.shape_cast %40 : vector<1x4x16x32xbf16> to vector<4x16x32xbf16>
    %42 = vector.shape_cast %41 : vector<4x16x32xbf16> to vector<64x32xbf16>
    %c4 = arith.constant 4 : index
    %c0_30 = arith.constant 0 : index
    %c0_31 = arith.constant 0 : index
    %43 = vector.load %arg3[%c4, %c0_30, %c0_31] : memref<9x32x128xbf16, #tpu.memory_space<vmem>>, vector<1x32x128xbf16>
    %44 = vector.shape_cast %43 : vector<1x32x128xbf16> to vector<32x128xbf16>
    %cst_32 = arith.constant dense<0.000000e+00> : vector<64x128xf32>
    %45 = tpu.matmul %42, %44, %cst_32 {dimension_numbers = #tpu.dot_dimension_numbers<[1], [0], [0], [1], [0, 0, 1, 1], [], []>} : vector<64x32xbf16>, vector<32x128xbf16>, vector<64x128xf32> -> vector<64x128xf32>
    %46 = arith.addf %37, %45 : vector<64x128xf32>
    %c1_i32_33 = arith.constant 1 : i32
    %47 = arith.addi %0, %c1_i32_33 : i32
    %c0_34 = arith.constant 0 : index
    %48 = arith.index_cast %47 : i32 to index
    %c2_35 = arith.constant 2 : index
    %c0_36 = arith.constant 0 : index
    %49 = vector.load %arg2[%c0_34, %48, %c2_35, %c0_36] : memref<1x10x18x32xbf16, #tpu.memory_space<vmem>>, vector<1x4x16x32xbf16>
    %50 = vector.shape_cast %49 : vector<1x4x16x32xbf16> to vector<4x16x32xbf16>
    %51 = vector.shape_cast %50 : vector<4x16x32xbf16> to vector<64x32xbf16>
    %c5 = arith.constant 5 : index
    %c0_37 = arith.constant 0 : index
    %c0_38 = arith.constant 0 : index
    %52 = vector.load %arg3[%c5, %c0_37, %c0_38] : memref<9x32x128xbf16, #tpu.memory_space<vmem>>, vector<1x32x128xbf16>
    %53 = vector.shape_cast %52 : vector<1x32x128xbf16> to vector<32x128xbf16>
    %cst_39 = arith.constant dense<0.000000e+00> : vector<64x128xf32>
    %54 = tpu.matmul %51, %53, %cst_39 {dimension_numbers = #tpu.dot_dimension_numbers<[1], [0], [0], [1], [0, 0, 1, 1], [], []>} : vector<64x32xbf16>, vector<32x128xbf16>, vector<64x128xf32> -> vector<64x128xf32>
    %55 = arith.addf %46, %54 : vector<64x128xf32>
    %c2_i32 = arith.constant 2 : i32
    %56 = arith.addi %0, %c2_i32 : i32
    %c0_40 = arith.constant 0 : index
    %57 = arith.index_cast %56 : i32 to index
    %c0_41 = arith.constant 0 : index
    %c0_42 = arith.constant 0 : index
    %58 = vector.load %arg2[%c0_40, %57, %c0_41, %c0_42] : memref<1x10x18x32xbf16, #tpu.memory_space<vmem>>, vector<1x4x16x32xbf16>
    %59 = vector.shape_cast %58 : vector<1x4x16x32xbf16> to vector<4x16x32xbf16>
    %60 = vector.shape_cast %59 : vector<4x16x32xbf16> to vector<64x32xbf16>
    %c6 = arith.constant 6 : index
    %c0_43 = arith.constant 0 : index
    %c0_44 = arith.constant 0 : index
    %61 = vector.load %arg3[%c6, %c0_43, %c0_44] : memref<9x32x128xbf16, #tpu.memory_space<vmem>>, vector<1x32x128xbf16>
    %62 = vector.shape_cast %61 : vector<1x32x128xbf16> to vector<32x128xbf16>
    %cst_45 = arith.constant dense<0.000000e+00> : vector<64x128xf32>
    %63 = tpu.matmul %60, %62, %cst_45 {dimension_numbers = #tpu.dot_dimension_numbers<[1], [0], [0], [1], [0, 0, 1, 1], [], []>} : vector<64x32xbf16>, vector<32x128xbf16>, vector<64x128xf32> -> vector<64x128xf32>
    %64 = arith.addf %55, %63 : vector<64x128xf32>
    %c2_i32_46 = arith.constant 2 : i32
    %65 = arith.addi %0, %c2_i32_46 : i32
    %c0_47 = arith.constant 0 : index
    %66 = arith.index_cast %65 : i32 to index
    %c1_48 = arith.constant 1 : index
    %c0_49 = arith.constant 0 : index
    %67 = vector.load %arg2[%c0_47, %66, %c1_48, %c0_49] : memref<1x10x18x32xbf16, #tpu.memory_space<vmem>>, vector<1x4x16x32xbf16>
    %68 = vector.shape_cast %67 : vector<1x4x16x32xbf16> to vector<4x16x32xbf16>
    %69 = vector.shape_cast %68 : vector<4x16x32xbf16> to vector<64x32xbf16>
    %c7 = arith.constant 7 : index
    %c0_50 = arith.constant 0 : index
    %c0_51 = arith.constant 0 : index
    %70 = vector.load %arg3[%c7, %c0_50, %c0_51] : memref<9x32x128xbf16, #tpu.memory_space<vmem>>, vector<1x32x128xbf16>
    %71 = vector.shape_cast %70 : vector<1x32x128xbf16> to vector<32x128xbf16>
    %cst_52 = arith.constant dense<0.000000e+00> : vector<64x128xf32>
    %72 = tpu.matmul %69, %71, %cst_52 {dimension_numbers = #tpu.dot_dimension_numbers<[1], [0], [0], [1], [0, 0, 1, 1], [], []>} : vector<64x32xbf16>, vector<32x128xbf16>, vector<64x128xf32> -> vector<64x128xf32>
    %73 = arith.addf %64, %72 : vector<64x128xf32>
    %c2_i32_53 = arith.constant 2 : i32
    %74 = arith.addi %0, %c2_i32_53 : i32
    %c0_54 = arith.constant 0 : index
    %75 = arith.index_cast %74 : i32 to index
    %c2_55 = arith.constant 2 : index
    %c0_56 = arith.constant 0 : index
    %76 = vector.load %arg2[%c0_54, %75, %c2_55, %c0_56] : memref<1x10x18x32xbf16, #tpu.memory_space<vmem>>, vector<1x4x16x32xbf16>
    %77 = vector.shape_cast %76 : vector<1x4x16x32xbf16> to vector<4x16x32xbf16>
    %78 = vector.shape_cast %77 : vector<4x16x32xbf16> to vector<64x32xbf16>
    %c8 = arith.constant 8 : index
    %c0_57 = arith.constant 0 : index
    %c0_58 = arith.constant 0 : index
    %79 = vector.load %arg3[%c8, %c0_57, %c0_58] : memref<9x32x128xbf16, #tpu.memory_space<vmem>>, vector<1x32x128xbf16>
    %80 = vector.shape_cast %79 : vector<1x32x128xbf16> to vector<32x128xbf16>
    %cst_59 = arith.constant dense<0.000000e+00> : vector<64x128xf32>
    %81 = tpu.matmul %78, %80, %cst_59 {dimension_numbers = #tpu.dot_dimension_numbers<[1], [0], [0], [1], [0, 0, 1, 1], [], []>} : vector<64x32xbf16>, vector<32x128xbf16>, vector<64x128xf32> -> vector<64x128xf32>
    %82 = arith.addf %73, %81 : vector<64x128xf32>
    %c0_60 = arith.constant 0 : index
    %c0_61 = arith.constant 0 : index
    %83 = vector.load %arg4[%c0_60, %c0_61] : memref<1x128xf32, #tpu.memory_space<vmem>>, vector<1x128xf32>
    %84 = vector.broadcast %83 : vector<1x128xf32> to vector<64x128xf32>
    %85 = arith.addf %82, %84 : vector<64x128xf32>
    %cst_62 = arith.constant 0.000000e+00 : f32
    %86 = vector.broadcast %cst_62 : f32 to vector<64x128xf32>
    %87 = arith.maximumf %85, %86 : vector<64x128xf32>
    %88 = vector.shape_cast %87 : vector<64x128xf32> to vector<4x16x128xf32>
    %89 = arith.truncf %88 : vector<4x16x128xf32> to vector<4x16x128xbf16>
    %c0_63 = arith.constant 0 : index
    %c0_64 = arith.constant 0 : index
    %c0_65 = arith.constant 0 : index
    %c0_66 = arith.constant 0 : index
    %90 = vector.load %arg5[%c0_63, %c0_64, %c0_65, %c0_66] : memref<1x4x16x128xbf16, #tpu.memory_space<vmem>>, vector<1x4x16x128xbf16>
    %91 = vector.shape_cast %90 : vector<1x4x16x128xbf16> to vector<4x16x128xbf16>
    %92 = vector.shape_cast %89 : vector<4x16x128xbf16> to vector<1x4x16x128xbf16>
    tpu.vector_store %arg5[%c0_63, %c0_64, %c0_65, %c0_66], %92 {strides = array<i32>} : memref<1x4x16x128xbf16, #tpu.memory_space<vmem>>, vector<1x4x16x128xbf16>,
    return
  }
  func.func @transform_0(%arg0: i32, %arg1: i32) -> (i32, i32, i32, i32) {
    %c0_i32 = arith.constant 0 : i32
    %c0_i32_0 = arith.constant 0 : i32
    %c0_i32_1 = arith.constant 0 : i32
    %c0_i32_2 = arith.constant 0 : i32
    return %arg0, %c0_i32, %c0_i32_0, %c0_i32_1 : i32, i32, i32, i32
  }
  func.func @transform_1(%arg0: i32, %arg1: i32) -> (i32, i32, i32) {
    %c0_i32 = arith.constant 0 : i32
    %c0_i32_0 = arith.constant 0 : i32
    %c0_i32_1 = arith.constant 0 : i32
    %c0_i32_2 = arith.constant 0 : i32
    return %c0_i32, %c0_i32_0, %c0_i32_1 : i32, i32, i32
  }
  func.func @transform_2(%arg0: i32, %arg1: i32) -> (i32, i32) {
    %c0_i32 = arith.constant 0 : i32
    %c0_i32_0 = arith.constant 0 : i32
    %c0_i32_1 = arith.constant 0 : i32
    return %c0_i32, %c0_i32_0 : i32, i32
  }
  func.func @transform_3(%arg0: i32, %arg1: i32) -> (i32, i32, i32, i32) {
    %c0_i32 = arith.constant 0 : i32
    %c0_i32_0 = arith.constant 0 : i32
    %c0_i32_1 = arith.constant 0 : i32
    return %arg0, %arg1, %c0_i32, %c0_i32_0 : i32, i32, i32, i32
  }
}

module attributes {stable_mosaic.version = 11 : i64} {
  func.func @_conv3x3_tap_kernel(%arg0: i32, %arg1: i32, %arg2: memref<1x6x18x32xbf16, #tpu.memory_space<vmem>>, %arg3: memref<9x32x128xbf16, #tpu.memory_space<vmem>>, %arg4: memref<1x128xf32, #tpu.memory_space<vmem>>, %arg5: memref<1x2x16x128xbf16, #tpu.memory_space<vmem>>) attributes {dimension_semantics = [#tpu.dimension_semantics<parallel>, #tpu.dimension_semantics<parallel>], iteration_bounds = array<i64: 2, 2>, scalar_prefetch = 0 : i64, scratch_operands = 0 : i64, tpu.core_type = #tpu.core_type<tc>, window_params = [{transform_indices = @transform_0, window_bounds = array<i64: 1, 6, 18, 32>}, {pipeline_mode = #tpu.pipeline_mode<synchronous>, transform_indices = @transform_1, window_bounds = array<i64: 9, 32, 128>}, {pipeline_mode = #tpu.pipeline_mode<synchronous>, transform_indices = @transform_2, window_bounds = array<i64: 1, 128>}, {transform_indices = @transform_3, window_bounds = array<i64: 1, 2, 16, 128>}]} {
    %c2_i32 = arith.constant 2 : i32
    %0 = arith.muli %arg1, %c2_i32 : i32
    %cst = arith.constant 0.000000e+00 : f32
    %1 = vector.broadcast %cst : f32 to vector<32x128xf32>
    %c0_i32 = arith.constant 0 : i32
    %2 = arith.addi %0, %c0_i32 : i32
    %c0 = arith.constant 0 : index
    %3 = arith.index_cast %2 : i32 to index
    %c0_0 = arith.constant 0 : index
    %c0_1 = arith.constant 0 : index
    %4 = vector.load %arg2[%c0, %3, %c0_0, %c0_1] : memref<1x6x18x32xbf16, #tpu.memory_space<vmem>>, vector<1x2x16x32xbf16>
    %5 = vector.shape_cast %4 : vector<1x2x16x32xbf16> to vector<2x16x32xbf16>
    %6 = vector.shape_cast %5 : vector<2x16x32xbf16> to vector<32x32xbf16>
    %c0_2 = arith.constant 0 : index
    %c0_3 = arith.constant 0 : index
    %c0_4 = arith.constant 0 : index
    %7 = vector.load %arg3[%c0_2, %c0_3, %c0_4] : memref<9x32x128xbf16, #tpu.memory_space<vmem>>, vector<1x32x128xbf16>
    %8 = vector.shape_cast %7 : vector<1x32x128xbf16> to vector<32x128xbf16>
    %cst_5 = arith.constant dense<0.000000e+00> : vector<32x128xf32>
    %9 = tpu.matmul %6, %8, %cst_5 {dimension_numbers = #tpu.dot_dimension_numbers<[1], [0], [0], [1], [0, 0, 1, 1], [], []>} : vector<32x32xbf16>, vector<32x128xbf16>, vector<32x128xf32> -> vector<32x128xf32>
    %10 = arith.addf %1, %9 : vector<32x128xf32>
    %c0_i32_6 = arith.constant 0 : i32
    %11 = arith.addi %0, %c0_i32_6 : i32
    %c0_7 = arith.constant 0 : index
    %12 = arith.index_cast %11 : i32 to index
    %c1 = arith.constant 1 : index
    %c0_8 = arith.constant 0 : index
    %13 = vector.load %arg2[%c0_7, %12, %c1, %c0_8] : memref<1x6x18x32xbf16, #tpu.memory_space<vmem>>, vector<1x2x16x32xbf16>
    %14 = vector.shape_cast %13 : vector<1x2x16x32xbf16> to vector<2x16x32xbf16>
    %15 = vector.shape_cast %14 : vector<2x16x32xbf16> to vector<32x32xbf16>
    %c1_9 = arith.constant 1 : index
    %c0_10 = arith.constant 0 : index
    %c0_11 = arith.constant 0 : index
    %16 = vector.load %arg3[%c1_9, %c0_10, %c0_11] : memref<9x32x128xbf16, #tpu.memory_space<vmem>>, vector<1x32x128xbf16>
    %17 = vector.shape_cast %16 : vector<1x32x128xbf16> to vector<32x128xbf16>
    %cst_12 = arith.constant dense<0.000000e+00> : vector<32x128xf32>
    %18 = tpu.matmul %15, %17, %cst_12 {dimension_numbers = #tpu.dot_dimension_numbers<[1], [0], [0], [1], [0, 0, 1, 1], [], []>} : vector<32x32xbf16>, vector<32x128xbf16>, vector<32x128xf32> -> vector<32x128xf32>
    %19 = arith.addf %10, %18 : vector<32x128xf32>
    %c0_i32_13 = arith.constant 0 : i32
    %20 = arith.addi %0, %c0_i32_13 : i32
    %c0_14 = arith.constant 0 : index
    %21 = arith.index_cast %20 : i32 to index
    %c2 = arith.constant 2 : index
    %c0_15 = arith.constant 0 : index
    %22 = vector.load %arg2[%c0_14, %21, %c2, %c0_15] : memref<1x6x18x32xbf16, #tpu.memory_space<vmem>>, vector<1x2x16x32xbf16>
    %23 = vector.shape_cast %22 : vector<1x2x16x32xbf16> to vector<2x16x32xbf16>
    %24 = vector.shape_cast %23 : vector<2x16x32xbf16> to vector<32x32xbf16>
    %c2_16 = arith.constant 2 : index
    %c0_17 = arith.constant 0 : index
    %c0_18 = arith.constant 0 : index
    %25 = vector.load %arg3[%c2_16, %c0_17, %c0_18] : memref<9x32x128xbf16, #tpu.memory_space<vmem>>, vector<1x32x128xbf16>
    %26 = vector.shape_cast %25 : vector<1x32x128xbf16> to vector<32x128xbf16>
    %cst_19 = arith.constant dense<0.000000e+00> : vector<32x128xf32>
    %27 = tpu.matmul %24, %26, %cst_19 {dimension_numbers = #tpu.dot_dimension_numbers<[1], [0], [0], [1], [0, 0, 1, 1], [], []>} : vector<32x32xbf16>, vector<32x128xbf16>, vector<32x128xf32> -> vector<32x128xf32>
    %28 = arith.addf %19, %27 : vector<32x128xf32>
    %c1_i32 = arith.constant 1 : i32
    %29 = arith.addi %0, %c1_i32 : i32
    %c0_20 = arith.constant 0 : index
    %30 = arith.index_cast %29 : i32 to index
    %c0_21 = arith.constant 0 : index
    %c0_22 = arith.constant 0 : index
    %31 = vector.load %arg2[%c0_20, %30, %c0_21, %c0_22] : memref<1x6x18x32xbf16, #tpu.memory_space<vmem>>, vector<1x2x16x32xbf16>
    %32 = vector.shape_cast %31 : vector<1x2x16x32xbf16> to vector<2x16x32xbf16>
    %33 = vector.shape_cast %32 : vector<2x16x32xbf16> to vector<32x32xbf16>
    %c3 = arith.constant 3 : index
    %c0_23 = arith.constant 0 : index
    %c0_24 = arith.constant 0 : index
    %34 = vector.load %arg3[%c3, %c0_23, %c0_24] : memref<9x32x128xbf16, #tpu.memory_space<vmem>>, vector<1x32x128xbf16>
    %35 = vector.shape_cast %34 : vector<1x32x128xbf16> to vector<32x128xbf16>
    %cst_25 = arith.constant dense<0.000000e+00> : vector<32x128xf32>
    %36 = tpu.matmul %33, %35, %cst_25 {dimension_numbers = #tpu.dot_dimension_numbers<[1], [0], [0], [1], [0, 0, 1, 1], [], []>} : vector<32x32xbf16>, vector<32x128xbf16>, vector<32x128xf32> -> vector<32x128xf32>
    %37 = arith.addf %28, %36 : vector<32x128xf32>
    %c1_i32_26 = arith.constant 1 : i32
    %38 = arith.addi %0, %c1_i32_26 : i32
    %c0_27 = arith.constant 0 : index
    %39 = arith.index_cast %38 : i32 to index
    %c1_28 = arith.constant 1 : index
    %c0_29 = arith.constant 0 : index
    %40 = vector.load %arg2[%c0_27, %39, %c1_28, %c0_29] : memref<1x6x18x32xbf16, #tpu.memory_space<vmem>>, vector<1x2x16x32xbf16>
    %41 = vector.shape_cast %40 : vector<1x2x16x32xbf16> to vector<2x16x32xbf16>
    %42 = vector.shape_cast %41 : vector<2x16x32xbf16> to vector<32x32xbf16>
    %c4 = arith.constant 4 : index
    %c0_30 = arith.constant 0 : index
    %c0_31 = arith.constant 0 : index
    %43 = vector.load %arg3[%c4, %c0_30, %c0_31] : memref<9x32x128xbf16, #tpu.memory_space<vmem>>, vector<1x32x128xbf16>
    %44 = vector.shape_cast %43 : vector<1x32x128xbf16> to vector<32x128xbf16>
    %cst_32 = arith.constant dense<0.000000e+00> : vector<32x128xf32>
    %45 = tpu.matmul %42, %44, %cst_32 {dimension_numbers = #tpu.dot_dimension_numbers<[1], [0], [0], [1], [0, 0, 1, 1], [], []>} : vector<32x32xbf16>, vector<32x128xbf16>, vector<32x128xf32> -> vector<32x128xf32>
    %46 = arith.addf %37, %45 : vector<32x128xf32>
    %c1_i32_33 = arith.constant 1 : i32
    %47 = arith.addi %0, %c1_i32_33 : i32
    %c0_34 = arith.constant 0 : index
    %48 = arith.index_cast %47 : i32 to index
    %c2_35 = arith.constant 2 : index
    %c0_36 = arith.constant 0 : index
    %49 = vector.load %arg2[%c0_34, %48, %c2_35, %c0_36] : memref<1x6x18x32xbf16, #tpu.memory_space<vmem>>, vector<1x2x16x32xbf16>
    %50 = vector.shape_cast %49 : vector<1x2x16x32xbf16> to vector<2x16x32xbf16>
    %51 = vector.shape_cast %50 : vector<2x16x32xbf16> to vector<32x32xbf16>
    %c5 = arith.constant 5 : index
    %c0_37 = arith.constant 0 : index
    %c0_38 = arith.constant 0 : index
    %52 = vector.load %arg3[%c5, %c0_37, %c0_38] : memref<9x32x128xbf16, #tpu.memory_space<vmem>>, vector<1x32x128xbf16>
    %53 = vector.shape_cast %52 : vector<1x32x128xbf16> to vector<32x128xbf16>
    %cst_39 = arith.constant dense<0.000000e+00> : vector<32x128xf32>
    %54 = tpu.matmul %51, %53, %cst_39 {dimension_numbers = #tpu.dot_dimension_numbers<[1], [0], [0], [1], [0, 0, 1, 1], [], []>} : vector<32x32xbf16>, vector<32x128xbf16>, vector<32x128xf32> -> vector<32x128xf32>
    %55 = arith.addf %46, %54 : vector<32x128xf32>
    %c2_i32_40 = arith.constant 2 : i32
    %56 = arith.addi %0, %c2_i32_40 : i32
    %c0_41 = arith.constant 0 : index
    %57 = arith.index_cast %56 : i32 to index
    %c0_42 = arith.constant 0 : index
    %c0_43 = arith.constant 0 : index
    %58 = vector.load %arg2[%c0_41, %57, %c0_42, %c0_43] : memref<1x6x18x32xbf16, #tpu.memory_space<vmem>>, vector<1x2x16x32xbf16>
    %59 = vector.shape_cast %58 : vector<1x2x16x32xbf16> to vector<2x16x32xbf16>
    %60 = vector.shape_cast %59 : vector<2x16x32xbf16> to vector<32x32xbf16>
    %c6 = arith.constant 6 : index
    %c0_44 = arith.constant 0 : index
    %c0_45 = arith.constant 0 : index
    %61 = vector.load %arg3[%c6, %c0_44, %c0_45] : memref<9x32x128xbf16, #tpu.memory_space<vmem>>, vector<1x32x128xbf16>
    %62 = vector.shape_cast %61 : vector<1x32x128xbf16> to vector<32x128xbf16>
    %cst_46 = arith.constant dense<0.000000e+00> : vector<32x128xf32>
    %63 = tpu.matmul %60, %62, %cst_46 {dimension_numbers = #tpu.dot_dimension_numbers<[1], [0], [0], [1], [0, 0, 1, 1], [], []>} : vector<32x32xbf16>, vector<32x128xbf16>, vector<32x128xf32> -> vector<32x128xf32>
    %64 = arith.addf %55, %63 : vector<32x128xf32>
    %c2_i32_47 = arith.constant 2 : i32
    %65 = arith.addi %0, %c2_i32_47 : i32
    %c0_48 = arith.constant 0 : index
    %66 = arith.index_cast %65 : i32 to index
    %c1_49 = arith.constant 1 : index
    %c0_50 = arith.constant 0 : index
    %67 = vector.load %arg2[%c0_48, %66, %c1_49, %c0_50] : memref<1x6x18x32xbf16, #tpu.memory_space<vmem>>, vector<1x2x16x32xbf16>
    %68 = vector.shape_cast %67 : vector<1x2x16x32xbf16> to vector<2x16x32xbf16>
    %69 = vector.shape_cast %68 : vector<2x16x32xbf16> to vector<32x32xbf16>
    %c7 = arith.constant 7 : index
    %c0_51 = arith.constant 0 : index
    %c0_52 = arith.constant 0 : index
    %70 = vector.load %arg3[%c7, %c0_51, %c0_52] : memref<9x32x128xbf16, #tpu.memory_space<vmem>>, vector<1x32x128xbf16>
    %71 = vector.shape_cast %70 : vector<1x32x128xbf16> to vector<32x128xbf16>
    %cst_53 = arith.constant dense<0.000000e+00> : vector<32x128xf32>
    %72 = tpu.matmul %69, %71, %cst_53 {dimension_numbers = #tpu.dot_dimension_numbers<[1], [0], [0], [1], [0, 0, 1, 1], [], []>} : vector<32x32xbf16>, vector<32x128xbf16>, vector<32x128xf32> -> vector<32x128xf32>
    %73 = arith.addf %64, %72 : vector<32x128xf32>
    %c2_i32_54 = arith.constant 2 : i32
    %74 = arith.addi %0, %c2_i32_54 : i32
    %c0_55 = arith.constant 0 : index
    %75 = arith.index_cast %74 : i32 to index
    %c2_56 = arith.constant 2 : index
    %c0_57 = arith.constant 0 : index
    %76 = vector.load %arg2[%c0_55, %75, %c2_56, %c0_57] : memref<1x6x18x32xbf16, #tpu.memory_space<vmem>>, vector<1x2x16x32xbf16>
    %77 = vector.shape_cast %76 : vector<1x2x16x32xbf16> to vector<2x16x32xbf16>
    %78 = vector.shape_cast %77 : vector<2x16x32xbf16> to vector<32x32xbf16>
    %c8 = arith.constant 8 : index
    %c0_58 = arith.constant 0 : index
    %c0_59 = arith.constant 0 : index
    %79 = vector.load %arg3[%c8, %c0_58, %c0_59] : memref<9x32x128xbf16, #tpu.memory_space<vmem>>, vector<1x32x128xbf16>
    %80 = vector.shape_cast %79 : vector<1x32x128xbf16> to vector<32x128xbf16>
    %cst_60 = arith.constant dense<0.000000e+00> : vector<32x128xf32>
    %81 = tpu.matmul %78, %80, %cst_60 {dimension_numbers = #tpu.dot_dimension_numbers<[1], [0], [0], [1], [0, 0, 1, 1], [], []>} : vector<32x32xbf16>, vector<32x128xbf16>, vector<32x128xf32> -> vector<32x128xf32>
    %82 = arith.addf %73, %81 : vector<32x128xf32>
    %c0_61 = arith.constant 0 : index
    %c0_62 = arith.constant 0 : index
    %83 = vector.load %arg4[%c0_61, %c0_62] : memref<1x128xf32, #tpu.memory_space<vmem>>, vector<1x128xf32>
    %84 = vector.broadcast %83 : vector<1x128xf32> to vector<32x128xf32>
    %85 = arith.addf %82, %84 : vector<32x128xf32>
    %86 = vector.shape_cast %85 : vector<32x128xf32> to vector<2x16x128xf32>
    %87 = arith.truncf %86 : vector<2x16x128xf32> to vector<2x16x128xbf16>
    %c0_63 = arith.constant 0 : index
    %c0_64 = arith.constant 0 : index
    %c0_65 = arith.constant 0 : index
    %c0_66 = arith.constant 0 : index
    %88 = vector.load %arg5[%c0_63, %c0_64, %c0_65, %c0_66] : memref<1x2x16x128xbf16, #tpu.memory_space<vmem>>, vector<1x2x16x128xbf16>
    %89 = vector.shape_cast %88 : vector<1x2x16x128xbf16> to vector<2x16x128xbf16>
    %90 = vector.shape_cast %87 : vector<2x16x128xbf16> to vector<1x2x16x128xbf16>
    tpu.vector_store %arg5[%c0_63, %c0_64, %c0_65, %c0_66], %90 {strides = array<i32>} : memref<1x2x16x128xbf16, #tpu.memory_space<vmem>>, vector<1x2x16x128xbf16>,
    return
  }
  func.func @transform_0(%arg0: i32, %arg1: i32) -> (i32, i32, i32, i32) {
    %c0_i32 = arith.constant 0 : i32
    %c0_i32_0 = arith.constant 0 : i32
    %c0_i32_1 = arith.constant 0 : i32
    %c0_i32_2 = arith.constant 0 : i32
    return %arg0, %c0_i32, %c0_i32_0, %c0_i32_1 : i32, i32, i32, i32
  }
  func.func @transform_1(%arg0: i32, %arg1: i32) -> (i32, i32, i32) {
    %c0_i32 = arith.constant 0 : i32
    %c0_i32_0 = arith.constant 0 : i32
    %c0_i32_1 = arith.constant 0 : i32
    %c0_i32_2 = arith.constant 0 : i32
    return %c0_i32, %c0_i32_0, %c0_i32_1 : i32, i32, i32
  }
  func.func @transform_2(%arg0: i32, %arg1: i32) -> (i32, i32) {
    %c0_i32 = arith.constant 0 : i32
    %c0_i32_0 = arith.constant 0 : i32
    %c0_i32_1 = arith.constant 0 : i32
    return %c0_i32, %c0_i32_0 : i32, i32
  }
  func.func @transform_3(%arg0: i32, %arg1: i32) -> (i32, i32, i32, i32) {
    %c0_i32 = arith.constant 0 : i32
    %c0_i32_0 = arith.constant 0 : i32
    %c0_i32_1 = arith.constant 0 : i32
    return %arg0, %arg1, %c0_i32, %c0_i32_0 : i32, i32, i32, i32
  }
}

</mosaic_0001>

<llo_original>
// kernel: hyper_analysis_ex.4
$region0: #{hyper_analysis_ex.4}
  #allocation0 [shape = 'u32[]', space=smem, size = 0x4, offset = 0x4, fixed_abs, tag = 'smem constant byte address 0x4 - core index']
  #allocation1 [shape = 'u32[144,128]{1,0:T(1,128)}', space=vmem, size = 0x12000, scoped, tag = 'internal scratch']
  %s0 = inlined_call_operand.vmem [shape: bf16[2,10,18,32], index: 0, kind: input, shape index: {}]
  %s1 = inlined_call_operand.vmem [shape: bf16[9,32,128], index: 1, kind: input, shape index: {}]
  %s2 = inlined_call_operand.vmem [shape: f32[1,128], index: 2, kind: input, shape index: {}]
  %s3 = inlined_call_operand.vmem [shape: bf16[2,8,16,128], index: 3, kind: output, shape index: {}]
  %s4 = sld [smem:[#allocation0]]
  $region45: #{hyper_analysis_ex.4} parent=0
    _
  %s6 = ssub.s32 1, %s4
  %s7 = scalar_select 0, %s6, %s4
  loop: start=0, step=1, limit=6
  $region2: #{hyper_analysis_ex.4} parent=0 // loop_pre_header
    _
  $region3: #{hyper_analysis_ex.4} parent=0 // loop_header
    %s9 = sphi 0, %s13
    %p10 = scmp.ge.s32.totalorder %s9, 6
    %s16 = sphi 0, %s28
    %s17 = sphi 0, %s24
    %s18 = sphi 0, %s16
    %s19 = sphi 0, %s17
    %s20 = sphi 0, %s18
    %s21 = sphi 0, %s19
    %s31 = sphi 0, %s33
    %s34 = sphi 0, %s31
    %s35 = sphi 0, %s34
    %s51 = sphi 0, %s35
    %s55 = sphi 0, %s55
    %s57 = sphi 0, %s55
    %s58 = sphi 0, %s57
    %s72 = sphi 0, %s58
    %s76 = sphi 0, %s76
    %s78 = sphi 0, %s76
    %s79 = sphi 0, %s78
    %s93 = sphi 0, %s79
    %s101 = sphi 0, %s103
    %s104 = sphi 0, %s101
    %s105 = sphi 0, %s104
    %s121 = sphi 0, %s105
  $region4: #{hyper_analysis_ex.4} parent=0 // loop_header_branch
    %12 = sbr.rel (%p10) target = $region8
  $region5: #{hyper_analysis_ex.4} parent=0 // loop_body
    %s14 = ssub.s32 %s9, 1
    %s15 = ssub.s32 %s9, 2
    %s22 = sadd.s32 1, %s17
    %p23 = scmp.ge.s32.totalorder %s22, 2
    %s24 = scalar_select %p23, 0, %s22
    %s25 = sadd.s32 1, %s16
    %s26 = scalar_select %p23, %s25, %s16
    %p27 = scmp.ge.s32.totalorder %s26, 2
    %s28 = scalar_select %p27, 0, %s26
    %s29 = ssub.s32 %s16, %s28
    %p30 = scmp.eq.s32.totalorder %s29, 0
    %s32 = sadd.s32 %s31, 1
    %s33 = scalar_select %p30, %s31, %s32
    %p36 = pneg %p30
    %p37 = scmp.eq.s32.totalorder %s9, 3
    %p38 = por %p36, %p37
    %p39 = scmp.ne.s32.totalorder %s31, %s34
    %p40 = scmp.eq.s32.totalorder %s9, 0
    %p41 = por %p39, %p40
    %p42 = scmp.ne.s32.totalorder %s31, %s34
    %p43 = scmp.eq.s32.totalorder %s14, 3
    %p44 = por %p42, %p43
    %p45 = scmp.ne.s32.totalorder %s34, %s35
    %p46 = scmp.eq.s32.totalorder %s14, 0
    %p47 = por %p45, %p46
    %p48 = scmp.ne.s32.totalorder %s34, %s35
    %p49 = scmp.eq.s32.totalorder %s15, 3
    %p50 = por %p48, %p49
    %p52 = scmp.ne.s32.totalorder %s35, %s51
    %p53 = scmp.eq.s32.totalorder %s15, 0
    %p54 = por %p52, %p53
    %s56 = sadd.s32 %s55, 1
    %p59 = scmp.eq.s32.totalorder %s9, 3
    %p60 = scmp.ne.s32.totalorder %s55, %s57
    %p61 = scmp.eq.s32.totalorder %s9, 0
    %p62 = por %p60, %p61
    %p63 = scmp.ne.s32.totalorder %s55, %s57
    %p64 = scmp.eq.s32.totalorder %s14, 3
    %p65 = por %p63, %p64
    %p66 = scmp.ne.s32.totalorder %s57, %s58
    %p67 = scmp.eq.s32.totalorder %s14, 0
    %p68 = por %p66, %p67
    %p69 = scmp.ne.s32.totalorder %s57, %s58
    %p70 = scmp.eq.s32.totalorder %s15, 3
    %p71 = por %p69, %p70
    %p73 = scmp.ne.s32.totalorder %s58, %s72
    %p74 = scmp.eq.s32.totalorder %s15, 0
    %p75 = por %p73, %p74
    %s77 = sadd.s32 %s76, 1
    %p80 = scmp.eq.s32.totalorder %s9, 3
    %p81 = scmp.ne.s32.totalorder %s76, %s78
    %p82 = scmp.eq.s32.totalorder %s9, 0
    %p83 = por %p81, %p82
    %p84 = scmp.ne.s32.totalorder %s76, %s78
    %p85 = scmp.eq.s32.totalorder %s14, 3
    %p86 = por %p84, %p85
    %p87 = scmp.ne.s32.totalorder %s78, %s79
    %p88 = scmp.eq.s32.totalorder %s14, 0
    %p89 = por %p87, %p88
    %p90 = scmp.ne.s32.totalorder %s78, %s79
    %p91 = scmp.eq.s32.totalorder %s15, 3
    %p92 = por %p90, %p91
    %p94 = scmp.ne.s32.totalorder %s79, %s93
    %p95 = scmp.eq.s32.totalorder %s15, 0
    %p96 = por %p94, %p95
    %s97 = ssub.s32 %s16, %s28
    %s98 = ssub.s32 %s17, %s24
    %s99 = sor.u32 %s97, %s98
    %p100 = scmp.eq.s32.totalorder %s99, 0
    %s102 = sadd.s32 %s101, 1
    %s103 = scalar_select %p100, %s101, %s102
    %p106 = pneg %p100
    %p107 = scmp.eq.s32.totalorder %s9, 3
    %p108 = por %p106, %p107
    %p109 = scmp.ne.s32.totalorder %s101, %s104
    %p110 = scmp.eq.s32.totalorder %s9, 0
    %p111 = por %p109, %p110
    %p112 = scmp.ne.s32.totalorder %s101, %s104
    %p113 = scmp.eq.s32.totalorder %s14, 3
    %p114 = por %p112, %p113
    %p115 = scmp.ne.s32.totalorder %s104, %s105
    %p116 = scmp.eq.s32.totalorder %s14, 0
    %p117 = por %p115, %p116
    %p118 = scmp.ne.s32.totalorder %s104, %s105
    %p119 = scmp.eq.s32.totalorder %s15, 3
    %p120 = por %p118, %p119
    %p122 = scmp.ne.s32.totalorder %s105, %s121
    %p123 = scmp.eq.s32.totalorder %s15, 0
    %p124 = por %p122, %p123
    %p125 = scmp.le.s32.totalorder 1, %s9
    %p126 = scmp.lt.s32.totalorder %s9, 5
    %p127 = pnand %p125, %p126
    %p128 = pneg %p127
    // Predicated region
    $region9: #{hyper_analysis_ex.4} parent=5 // pred_check
      _
    $region10: #{hyper_analysis_ex.4} parent=5 // pred_check_branch
      %130 = sbr.rel (%p127) target = $region12
    $region11: #{hyper_analysis_ex.4} parent=5 // pred_region
      %s131 = ssub.s32 %s9, 1
      // Predicated region
      $region13: #{hyper_analysis_ex.4} parent=11 // pred_check
        %p132 = pneg %p68
      $region14: #{hyper_analysis_ex.4} parent=11 // pred_check_branch
        %134 = sbr.rel (%p132) target = $region16
      $region15: #{hyper_analysis_ex.4} parent=11 // pred_region
        _
      $region16: #{hyper_analysis_ex.4} parent=11 // pred_fallthru
        _
      // Predicated region
      $region17: #{hyper_analysis_ex.4} parent=11 // pred_check
        %p135 = pneg %p89
      $region18: #{hyper_analysis_ex.4} parent=11 // pred_check_branch
        %137 = sbr.rel (%p135) target = $region20
      $region19: #{hyper_analysis_ex.4} parent=11 // pred_region
        _
      $region20: #{hyper_analysis_ex.4} parent=11 // pred_fallthru
        _
    $region12: #{hyper_analysis_ex.4} parent=5 // pred_fallthru
      _
    %p138 = scmp.lt.s32.totalorder %s9, 4
    // Predicated region
    $region21: #{hyper_analysis_ex.4} parent=5 // pred_check
      %p139 = pneg %p138
    $region22: #{hyper_analysis_ex.4} parent=5 // pred_check_branch
      %141 = sbr.rel (%p139) target = $region24
    $region23: #{hyper_analysis_ex.4} parent=5 // pred_region
      // Predicated region
      $region25: #{hyper_analysis_ex.4} parent=23 // pred_check
        %p142 = pneg %p41
      $region26: #{hyper_analysis_ex.4} parent=23 // pred_check_branch
        %144 = sbr.rel (%p142) target = $region28
      $region27: #{hyper_analysis_ex.4} parent=23 // pred_region
        %p145 = scmp.lt.s32.totalorder %s16, 1
        %s146 = scalar_select %p145, %s16, 1
        %s147 = smul.addr %s146, 30
        %s148 = smul.addr %s147, 4
        %s149 = scalar_lea.vmem %s0, %s148
      $region28: #{hyper_analysis_ex.4} parent=23 // pred_fallthru
        _
    $region24: #{hyper_analysis_ex.4} parent=5 // pred_fallthru
      _
    %p150 = scmp.le.s32.totalorder 1, %s9
    %p151 = scmp.lt.s32.totalorder %s9, 5
    %p152 = pnand %p150, %p151
    %p153 = pneg %p152
    // Predicated region
    $region29: #{hyper_analysis_ex.4} parent=5 // pred_check
      _
    $region30: #{hyper_analysis_ex.4} parent=5 // pred_check_branch
      %155 = sbr.rel (%p152) target = $region32
    $region31: #{hyper_analysis_ex.4} parent=5 // pred_region
      %s156 = ssub.s32 %s9, 1
      %p157 = scmp.lt.s32.totalorder %s18, 1
      %s158 = scalar_select %p157, %s18, 1
      %s159 = smul.addr %s158, 30
      %s160 = smul.addr %s159, 4
      %s161 = scalar_lea.vmem %s0, %s160
      %p162 = pneg %p47
      %p163 = pneg %p44
      %p164 = pneg %p68
      %p165 = pneg %p65
      %p166 = pneg %p89
      %p167 = pneg %p86
      %p168 = pneg %p117
      %p169 = pneg %p114
      %s170 = smul.u32 4, %s19
      %p171 = scmp.lt.s32.totalorder %s18, 1
      %s172 = scalar_select %p171, %s18, 1
      %p173 = scmp.lt.s32.totalorder %s170, 7
      %s174 = scalar_select %p173, %s170, 7
      %s175 = smul.addr %s174, 2
      %s176 = smul.addr %s172, 16
      %s177 = sadd.s32 %s175, %s176
      %s178 = smul.addr %s177, 4
      %s179 = scalar_lea.vmem %s3, %s178
      %p180 = scmp.lt.s32.totalorder %s18, 1
      %s181 = scalar_select %p180, %s18, 1
      %s182 = smul.addr %s181, 30
      %s183 = smul.addr %s182, 4
      %s184 = scalar_lea.vmem %s0, %s183
      %s185 = smul.u32 4, %s19
      %p186 = scmp.lt.s32.totalorder %s18, 1
      %s187 = scalar_select %p186, %s18, 1
      %p188 = scmp.lt.s32.totalorder %s185, 7
      %s189 = scalar_select %p188, %s185, 7
      %s190 = smul.addr %s189, 2
      %s191 = smul.addr %s187, 16
      %s192 = sadd.s32 %s190, %s191
      %s193 = smul.addr %s192, 4
      %s194 = scalar_lea.vmem %s3, %s193
      %s195 = smul.u32 4, %s19
      %s197 = smul.u32 %s19, 4
      %s198 = smul.u32 %s197, 3
      %s199 = smul.addr %s198, 4
      %s200 = scalar_lea.vmem %s184, %s199
      %v201 = vld [vmem:[%s200] sm:$0xf]
      %v202 = vld [vmem:[%s200 + $0x4] sm:$0xf]
      %v203 = vld [vmem:[%s200 + $0xc] sm:$0xf]
      %v204 = vld [vmem:[%s200 + $0x10] sm:$0xf]
      %v205 = vld [vmem:[%s200 + $0x18] sm:$0xf]
      %v206 = vld [vmem:[%s200 + $0x1c] sm:$0xf]
      %v207 = vld [vmem:[%s200 + $0x24] sm:$0xf]
      %v208 = vld [vmem:[%s200 + $0x28] sm:$0xf]
      %v209 = vld [vmem:[%s1] sm:$0xf]
      %v210 = vld [vmem:[%s1 + $0x4] sm:$0xf]
      %v211 = vld [vmem:[%s1 + $0x8] sm:$0xf]
      %v212 = vld [vmem:[%s1 + $0xc] sm:$0xf]
      %v213 = vld [vmem:[%s200 + $0x8] sm:$0x1]
      %v214 = vld [vmem:[%s200 + $0x14] sm:$0x1]
      %v215 = vld [vmem:[%s200 + $0x20] sm:$0x1]
      %v216 = vld [vmem:[%s200 + $0x2c] sm:$0x1]
      %vm217 = vsmask.f32 3328
      %vm218 = vsmask.f32 7440
      %vm219 = vmor %vm217, %vm218
      %v221 = vshrl.u32 %v201, 16
      %v223 = vrot.slane %v221, 4
      %v224 = vshll.u32 %v201, 16
      %v226 = vrot.slane %v224, 5
      %v227 = vor.u32 %v223, %v226
      %v228 = vrot.slane %v227, 4
      %v230 = vshll.u32 %v202, 16
      %v232 = vrot.slane %v230, 5
      %v233 = vsel %vm219, %v228, %v232
      %v234 = vshrl.u32 %v202, 16
      %v236 = vrot.slane %v234, 4
      %v237 = vor.u32 %v236, %v232
      %v238 = vrot.slane %v237, 4
      %v240 = vshll.u32 %v213, 16
      %v242 = vrot.slane %v240, 5
      %v243 = vsel %vm219, %v238, %v242
      %v245 = vshrl.u32 %v203, 16
      %v247 = vrot.slane %v245, 4
      %v248 = vshll.u32 %v203, 16
      %v250 = vrot.slane %v248, 5
      %v251 = vor.u32 %v247, %v250
      %v252 = vrot.slane %v251, 4
      %v254 = vshll.u32 %v204, 16
      %v256 = vrot.slane %v254, 5
      %v257 = vsel %vm219, %v252, %v256
      %v258 = vshrl.u32 %v204, 16
      %v260 = vrot.slane %v258, 4
      %v261 = vor.u32 %v260, %v256
      %v262 = vrot.slane %v261, 4
      %v264 = vshll.u32 %v214, 16
      %v266 = vrot.slane %v264, 5
      %v267 = vsel %vm219, %v262, %v266
      %v269 = vshrl.u32 %v205, 16
      %v271 = vrot.slane %v269, 4
      %v272 = vshll.u32 %v205, 16
      %v274 = vrot.slane %v272, 5
      %v275 = vor.u32 %v271, %v274
      %v276 = vrot.slane %v275, 4
      %v278 = vshll.u32 %v206, 16
      %v280 = vrot.slane %v278, 5
      %v281 = vsel %vm219, %v276, %v280
      %v282 = vshrl.u32 %v206, 16
      %v284 = vrot.slane %v282, 4
      %v285 = vor.u32 %v284, %v280
      %v286 = vrot.slane %v285, 4
      %v288 = vshll.u32 %v215, 16
      %v290 = vrot.slane %v288, 5
      %v291 = vsel %vm219, %v286, %v290
      %v293 = vshrl.u32 %v207, 16
      %v295 = vrot.slane %v293, 4
      %v296 = vshll.u32 %v207, 16
      %v298 = vrot.slane %v296, 5
      %v299 = vor.u32 %v295, %v298
      %v300 = vrot.slane %v299, 4
      %v302 = vshll.u32 %v208, 16
      %v304 = vrot.slane %v302, 5
      %v305 = vsel %vm219, %v300, %v304
      %v306 = vshrl.u32 %v208, 16
      %v308 = vrot.slane %v306, 4
      %v309 = vor.u32 %v308, %v304
      %v310 = vrot.slane %v309, 4
      %v312 = vshll.u32 %v216, 16
      %v314 = vrot.slane %v312, 5
      %v315 = vsel %vm219, %v310, %v314
      %s316 = scalar_lea.vmem %s1, 16
      %v317 = vld [vmem:[%s316] sm:$0xf]
      %v318 = vld [vmem:[%s316 + $0x4] sm:$0xf]
      %v319 = vld [vmem:[%s316 + $0x8] sm:$0xf]
      %v320 = vld [vmem:[%s316 + $0xc] sm:$0xf]
      %v321 = vunpack.c.l.b16 %v233
      %v322 = vunpack.c.l.b16 %v243
      %v323 = vunpack.c.l.b16 %v257
      %v324 = vunpack.c.l.b16 %v267
      %v325 = vunpack.c.l.b16 %v281
      %v326 = vunpack.c.l.b16 %v291
      %v327 = vunpack.c.l.b16 %v305
      %v328 = vunpack.c.l.b16 %v315
      %v329 = vpack.c.b16 %v322, %v321
      %v330 = vpack.c.b16 %v324, %v323
      %v331 = vpack.c.b16 %v326, %v325
      %v332 = vpack.c.b16 %v328, %v327
      %v337 = vunpack.c.l.b16 %v317
      %v338 = vunpack.c.l.b16 %v318
      %v339 = vunpack.c.l.b16 %v319
      %v340 = vunpack.c.l.b16 %v320
      %v341 = vpack.c.b16 %v338, %v337
      %v342 = vpack.c.b16 %v340, %v339
      %vm345 = vcmask 261120
      %v347 = vsel %vm345, %v329, 0
      %v350 = vsel %vm345, %v330, 0
      %v353 = vsel %vm345, %v331, 0
      %v356 = vsel %vm345, %v332, 0
      %358 = vmatprep.subr.bf16.mxu0 0
      %359 = vmatpush1.bf16.msra.mxu0 0
      %360 = vmatprep.subr.bf16.mxu0 0
      %361 = vmatpush1.bf16.msra.mxu0 0
      %362 = vmatprep.subr.bf16.mxu0 0
      %363 = vmatpush1.bf16.msra.mxu0 0
      %364 = vmatprep.subr.bf16.mxu0 0
      %365 = vmatpush1.bf16.msra.mxu0 0
      %366 = vmatprep.subr.bf16.mxu0 0
      %367 = vmatpush1.bf16.msra.mxu0 0
      %368 = vmatprep.subr.bf16.mxu0 0
      %369 = vmatpush1.bf16.msra.mxu0 0
      %370 = vmatprep.subr.bf16.mxu0 0
      %371 = vmatpush1.bf16.msra.mxu0 %v342
      %372 = vmatprep.subr.bf16.mxu0 0
      %373 = vmatpush1.bf16.msra.mxu0 %v341
      %374 = vmatprep.subr.bf16.mxu0 0
      %375 = vmatpush2.bf16.msra.mxu0 0
      %376 = vmatprep.subr.bf16.mxu0 0
      %377 = vmatpush2.bf16.msra.mxu0 0
      %378 = vmatprep.subr.bf16.mxu0 0
      %379 = vmatpush2.bf16.msra.mxu0 0
      %380 = vmatprep.subr.bf16.mxu0 0
      %381 = vmatpush2.bf16.msra.mxu0 0
      %382 = vmatprep.subr.bf16.mxu0 0
      %383 = vmatpush2.bf16.msra.mxu0 0
      %384 = vmatprep.subr.bf16.mxu0 0
      %385 = vmatpush2.bf16.msra.mxu0 0
      %386 = vmatprep.subr.bf16.mxu0 0
      %387 = vmatpush2.bf16.msra.mxu0 0
      %388 = vmatprep.subr.bf16.mxu0 0
      %389 = vmatpush2.bf16.msra.mxu0 0
      %390 = vmatprep.mubr.bf16.mxu0 0
      %391 = vmatmul.mubr.bf16.gmra.mxu0 %v347
      %v392 = vpop.f32.mrf.mxu0
      %v393 = vadd.f32 0.0, %v392
      %v394 = vpop.f32.mrf.mxu0
      %v395 = vpop.f32.mrf.mxu0
      %v396 = vadd.f32 0.0, %v395
      %v397 = vpop.f32.mrf.mxu0
      %398 = vmatprep.mubr.bf16.mxu0 0
      %399 = vmatmul.mubr.bf16.gmra.mxu0 %v350
      %v400 = vpop.f32.mrf.mxu0
      %v401 = vadd.f32 0.0, %v400
      %v402 = vpop.f32.mrf.mxu0
      %v403 = vpop.f32.mrf.mxu0
      %v404 = vadd.f32 0.0, %v403
      %v405 = vpop.f32.mrf.mxu0
      %406 = vmatprep.mubr.bf16.mxu0 0
      %407 = vmatmul.mubr.bf16.gmra.mxu0 %v353
      %v408 = vpop.f32.mrf.mxu0
      %v409 = vadd.f32 0.0, %v408
      %v410 = vpop.f32.mrf.mxu0
      %v411 = vpop.f32.mrf.mxu0
      %v412 = vadd.f32 0.0, %v411
      %v413 = vpop.f32.mrf.mxu0
      %414 = vmatprep.mubr.bf16.mxu0 0
      %415 = vmatmul.mubr.bf16.gmra.mxu0 %v356
      %v416 = vpop.f32.mrf.mxu0
      %v417 = vadd.f32 0.0, %v416
      %v418 = vpop.f32.mrf.mxu0
      %v419 = vpop.f32.mrf.mxu0
      %v420 = vadd.f32 0.0, %v419
      %v421 = vpop.f32.mrf.mxu0
      %422 = vdwg.mxu0
      %v431 = vunpack.c.l.b16 %v201
      %v432 = vunpack.c.l.b16 %v202
      %v433 = vunpack.c.l.b16 %v203
      %v434 = vunpack.c.l.b16 %v204
      %v435 = vunpack.c.l.b16 %v205
      %v436 = vunpack.c.l.b16 %v206
      %v437 = vunpack.c.l.b16 %v207
      %v438 = vunpack.c.l.b16 %v208
      %v439 = vpack.c.b16 %v432, %v431
      %v440 = vpack.c.b16 %v434, %v433
      %v441 = vpack.c.b16 %v436, %v435
      %v442 = vpack.c.b16 %v438, %v437
      %v447 = vunpack.c.l.b16 %v209
      %v448 = vunpack.c.l.b16 %v210
      %v449 = vunpack.c.l.b16 %v211
      %v450 = vunpack.c.l.b16 %v212
      %v451 = vpack.c.b16 %v448, %v447
      %v452 = vpack.c.b16 %v450, %v449
      %v456 = vsel %vm345, %v439, 0
      %v459 = vsel %vm345, %v440, 0
      %v462 = vsel %vm345, %v441, 0
      %v465 = vsel %vm345, %v442, 0
      %467 = vmatprep.subr.bf16.mxu0 0
      %468 = vmatpush1.bf16.msra.mxu0 0
      %469 = vmatprep.subr.bf16.mxu0 0
      %470 = vmatpush1.bf16.msra.mxu0 0
      %471 = vmatprep.subr.bf16.mxu0 0
      %472 = vmatpush1.bf16.msra.mxu0 0
      %473 = vmatprep.subr.bf16.mxu0 0
      %474 = vmatpush1.bf16.msra.mxu0 0
      %475 = vmatprep.subr.bf16.mxu0 0
      %476 = vmatpush1.bf16.msra.mxu0 0
      %477 = vmatprep.subr.bf16.mxu0 0
      %478 = vmatpush1.bf16.msra.mxu0 0
      %479 = vmatprep.subr.bf16.mxu0 0
      %480 = vmatpush1.bf16.msra.mxu0 %v452
      %481 = vmatprep.subr.bf16.mxu0 0
      %482 = vmatpush1.bf16.msra.mxu0 %v451
      %483 = vmatprep.subr.bf16.mxu0 0
      %484 = vmatpush2.bf16.msra.mxu0 0
      %485 = vmatprep.subr.bf16.mxu0 0
      %486 = vmatpush2.bf16.msra.mxu0 0
      %487 = vmatprep.subr.bf16.mxu0 0
      %488 = vmatpush2.bf16.msra.mxu0 0
      %489 = vmatprep.subr.bf16.mxu0 0
      %490 = vmatpush2.bf16.msra.mxu0 0
      %491 = vmatprep.subr.bf16.mxu0 0
      %492 = vmatpush2.bf16.msra.mxu0 0
      %493 = vmatprep.subr.bf16.mxu0 0
      %494 = vmatpush2.bf16.msra.mxu0 0
      %495 = vmatprep.subr.bf16.mxu0 0
      %496 = vmatpush2.bf16.msra.mxu0 0
      %497 = vmatprep.subr.bf16.mxu0 0
      %498 = vmatpush2.bf16.msra.mxu0 0
      %499 = vmatprep.mubr.bf16.mxu0 0
      %500 = vmatmul.mubr.bf16.gmra.mxu0 %v456
      %v501 = vpop.f32.mrf.mxu0
      %v502 = vadd.f32 %v393, %v501
      %v503 = vpop.f32.mrf.mxu0
      %v504 = vpop.f32.mrf.mxu0
      %v505 = vadd.f32 %v396, %v504
      %v506 = vpop.f32.mrf.mxu0
      %507 = vmatprep.mubr.bf16.mxu0 0
      %508 = vmatmul.mubr.bf16.gmra.mxu0 %v459
      %v509 = vpop.f32.mrf.mxu0
      %v510 = vadd.f32 %v401, %v509
      %v511 = vpop.f32.mrf.mxu0
      %v512 = vpop.f32.mrf.mxu0
      %v513 = vadd.f32 %v404, %v512
      %v514 = vpop.f32.mrf.mxu0
      %515 = vmatprep.mubr.bf16.mxu0 0
      %516 = vmatmul.mubr.bf16.gmra.mxu0 %v462
      %v517 = vpop.f32.mrf.mxu0
      %v518 = vadd.f32 %v409, %v517
      %v519 = vpop.f32.mrf.mxu0
      %v520 = vpop.f32.mrf.mxu0
      %v521 = vadd.f32 %v412, %v520
      %v522 = vpop.f32.mrf.mxu0
      %523 = vmatprep.mubr.bf16.mxu0 0
      %524 = vmatmul.mubr.bf16.gmra.mxu0 %v465
      %v525 = vpop.f32.mrf.mxu0
      %v526 = vadd.f32 %v417, %v525
      %v527 = vpop.f32.mrf.mxu0
      %v528 = vpop.f32.mrf.mxu0
      %v529 = vadd.f32 %v420, %v528
      %v530 = vpop.f32.mrf.mxu0
      %531 = vdwg.mxu0
      %v532 = vld [vmem:[%s200] sm:$0xe]
      %v533 = vld [vmem:[%s200 + $0xc] sm:$0xe]
      %v534 = vld [vmem:[%s200 + $0x18] sm:$0xe]
      %v535 = vld [vmem:[%s200 + $0x24] sm:$0xe]
      %vm544 = vcmask 1042432
      %vm545 = vcmask 1046532
      %vm546 = vmor %vm544, %vm545
      %v547 = vrot.slane %v532, 5
      %v548 = vrot.slane %v547, 4
      %v549 = vrot.slane %v202, 5
      %v550 = vsel %vm546, %v548, %v549
      %v551 = vrot.slane %v549, 4
      %v552 = vrot.slane %v213, 5
      %v553 = vsel %vm546, %v551, %v552
      %v554 = vrot.slane %v533, 5
      %v555 = vrot.slane %v554, 4
      %v556 = vrot.slane %v204, 5
      %v557 = vsel %vm546, %v555, %v556
      %v558 = vrot.slane %v556, 4
      %v559 = vrot.slane %v214, 5
      %v560 = vsel %vm546, %v558, %v559
      %v561 = vrot.slane %v534, 5
      %v562 = vrot.slane %v561, 4
      %v563 = vrot.slane %v206, 5
      %v564 = vsel %vm546, %v562, %v563
      %v565 = vrot.slane %v563, 4
      %v566 = vrot.slane %v215, 5
      %v567 = vsel %vm546, %v565, %v566
      %v568 = vrot.slane %v535, 5
      %v569 = vrot.slane %v568, 4
      %v570 = vrot.slane %v208, 5
      %v571 = vsel %vm546, %v569, %v570
      %v572 = vrot.slane %v570, 4
      %v573 = vrot.slane %v216, 5
      %v574 = vsel %vm546, %v572, %v573
      %s575 = scalar_lea.vmem %s1, 32
      %v576 = vld [vmem:[%s575] sm:$0xf]
      %v577 = vld [vmem:[%s575 + $0x4] sm:$0xf]
      %v578 = vld [vmem:[%s575 + $0x8] sm:$0xf]
      %v579 = vld [vmem:[%s575 + $0xc] sm:$0xf]
      %v580 = vunpack.c.l.b16 %v550
      %v581 = vunpack.c.l.b16 %v553
      %v582 = vunpack.c.l.b16 %v557
      %v583 = vunpack.c.l.b16 %v560
      %v584 = vunpack.c.l.b16 %v564
      %v585 = vunpack.c.l.b16 %v567
      %v586 = vunpack.c.l.b16 %v571
      %v587 = vunpack.c.l.b16 %v574
      %v588 = vpack.c.b16 %v581, %v580
      %v589 = vpack.c.b16 %v583, %v582
      %v590 = vpack.c.b16 %v585, %v584
      %v591 = vpack.c.b16 %v587, %v586
      %v596 = vunpack.c.l.b16 %v576
      %v597 = vunpack.c.l.b16 %v577
      %v598 = vunpack.c.l.b16 %v578
      %v599 = vunpack.c.l.b16 %v579
      %v600 = vpack.c.b16 %v597, %v596
      %v601 = vpack.c.b16 %v599, %v598
      %v605 = vsel %vm345, %v588, 0
      %v608 = vsel %vm345, %v589, 0
      %v611 = vsel %vm345, %v590, 0
      %v614 = vsel %vm345, %v591, 0
      %616 = vmatprep.subr.bf16.mxu0 0
      %617 = vmatpush1.bf16.msra.mxu0 0
      %618 = vmatprep.subr.bf16.mxu0 0
      %619 = vmatpush1.bf16.msra.mxu0 0
      %620 = vmatprep.subr.bf16.mxu0 0
      %621 = vmatpush1.bf16.msra.mxu0 0
      %622 = vmatprep.subr.bf16.mxu0 0
      %623 = vmatpush1.bf16.msra.mxu0 0
      %624 = vmatprep.subr.bf16.mxu0 0
      %625 = vmatpush1.bf16.msra.mxu0 0
      %626 = vmatprep.subr.bf16.mxu0 0
      %627 = vmatpush1.bf16.msra.mxu0 0
      %628 = vmatprep.subr.bf16.mxu0 0
      %629 = vmatpush1.bf16.msra.mxu0 %v601
      %630 = vmatprep.subr.bf16.mxu0 0
      %631 = vmatpush1.bf16.msra.mxu0 %v600
      %632 = vmatprep.subr.bf16.mxu0 0
      %633 = vmatpush2.bf16.msra.mxu0 0
      %634 = vmatprep.subr.bf16.mxu0 0
      %635 = vmatpush2.bf16.msra.mxu0 0
      %636 = vmatprep.subr.bf16.mxu0 0
      %637 = vmatpush2.bf16.msra.mxu0 0
      %638 = vmatprep.subr.bf16.mxu0 0
      %639 = vmatpush2.bf16.msra.mxu0 0
      %640 = vmatprep.subr.bf16.mxu0 0
      %641 = vmatpush2.bf16.msra.mxu0 0
      %642 = vmatprep.subr.bf16.mxu0 0
      %643 = vmatpush2.bf16.msra.mxu0 0
      %644 = vmatprep.subr.bf16.mxu0 0
      %645 = vmatpush2.bf16.msra.mxu0 0
      %646 = vmatprep.subr.bf16.mxu0 0
      %647 = vmatpush2.bf16.msra.mxu0 0
      %648 = vmatprep.mubr.bf16.mxu0 0
      %649 = vmatmul.mubr.bf16.gmra.mxu0 %v605
      %v650 = vpop.f32.mrf.mxu0
      %v651 = vadd.f32 0.0, %v650
      %v652 = vpop.f32.mrf.mxu0
      %v653 = vpop.f32.mrf.mxu0
      %v654 = vadd.f32 0.0, %v653
      %v655 = vpop.f32.mrf.mxu0
      %656 = vmatprep.mubr.bf16.mxu0 0
      %657 = vmatmul.mubr.bf16.gmra.mxu0 %v608
      %v658 = vpop.f32.mrf.mxu0
      %v659 = vadd.f32 0.0, %v658
      %v660 = vpop.f32.mrf.mxu0
      %v661 = vpop.f32.mrf.mxu0
      %v662 = vadd.f32 0.0, %v661
      %v663 = vpop.f32.mrf.mxu0
      %664 = vmatprep.mubr.bf16.mxu0 0
      %665 = vmatmul.mubr.bf16.gmra.mxu0 %v611
      %v666 = vpop.f32.mrf.mxu0
      %v667 = vadd.f32 0.0, %v666
      %v668 = vpop.f32.mrf.mxu0
      %v669 = vpop.f32.mrf.mxu0
      %v670 = vadd.f32 0.0, %v669
      %v671 = vpop.f32.mrf.mxu0
      %672 = vmatprep.mubr.bf16.mxu0 0
      %673 = vmatmul.mubr.bf16.gmra.mxu0 %v614
      %v674 = vpop.f32.mrf.mxu0
      %v675 = vadd.f32 0.0, %v674
      %v676 = vpop.f32.mrf.mxu0
      %v677 = vpop.f32.mrf.mxu0
      %v678 = vadd.f32 0.0, %v677
      %v679 = vpop.f32.mrf.mxu0
      %680 = vdwg.mxu0
      %v681 = vadd.f32 %v502, %v651
      %v682 = vadd.f32 %v505, %v654
      %v683 = vadd.f32 %v510, %v659
      %v684 = vadd.f32 %v513, %v662
      %v685 = vadd.f32 %v518, %v667
      %v686 = vadd.f32 %v521, %v670
      %v687 = vadd.f32 %v526, %v675
      %v688 = vadd.f32 %v529, %v678
      %s689 = sadd.s32 %s197, 1
      %s690 = smul.u32 %s689, 3
      %s691 = smul.addr %s690, 4
      %s692 = scalar_lea.vmem %s184, %s691
      %v693 = vld [vmem:[%s692] sm:$0xf]
      %v694 = vld [vmem:[%s692 + $0x4] sm:$0xf]
      %v695 = vld [vmem:[%s692 + $0xc] sm:$0xf]
      %v696 = vld [vmem:[%s692 + $0x10] sm:$0xf]
      %v697 = vld [vmem:[%s692 + $0x18] sm:$0xf]
      %v698 = vld [vmem:[%s692 + $0x1c] sm:$0xf]
      %v699 = vld [vmem:[%s692 + $0x24] sm:$0xf]
      %v700 = vld [vmem:[%s692 + $0x28] sm:$0xf]
      %s701 = scalar_lea.vmem %s1, 48
      %v702 = vld [vmem:[%s701] sm:$0xf]
      %v703 = vld [vmem:[%s701 + $0x4] sm:$0xf]
      %v704 = vld [vmem:[%s701 + $0x8] sm:$0xf]
      %v705 = vld [vmem:[%s701 + $0xc] sm:$0xf]
      %v714 = vunpack.c.l.b16 %v693
      %v715 = vunpack.c.l.b16 %v694
      %v716 = vunpack.c.l.b16 %v695
      %v717 = vunpack.c.l.b16 %v696
      %v718 = vunpack.c.l.b16 %v697
      %v719 = vunpack.c.l.b16 %v698
      %v720 = vunpack.c.l.b16 %v699
      %v721 = vunpack.c.l.b16 %v700
      %v722 = vpack.c.b16 %v715, %v714
      %v723 = vpack.c.b16 %v717, %v716
      %v724 = vpack.c.b16 %v719, %v718
      %v725 = vpack.c.b16 %v721, %v720
      %v730 = vunpack.c.l.b16 %v702
      %v731 = vunpack.c.l.b16 %v703
      %v732 = vunpack.c.l.b16 %v704
      %v733 = vunpack.c.l.b16 %v705
      %v734 = vpack.c.b16 %v731, %v730
      %v735 = vpack.c.b16 %v733, %v732
      %v739 = vsel %vm345, %v722, 0
      %v742 = vsel %vm345, %v723, 0
      %v745 = vsel %vm345, %v724, 0
      %v748 = vsel %vm345, %v725, 0
      %750 = vmatprep.subr.bf16.mxu0 0
      %751 = vmatpush1.bf16.msra.mxu0 0
      %752 = vmatprep.subr.bf16.mxu0 0
      %753 = vmatpush1.bf16.msra.mxu0 0
      %754 = vmatprep.subr.bf16.mxu0 0
      %755 = vmatpush1.bf16.msra.mxu0 0
      %756 = vmatprep.subr.bf16.mxu0 0
      %757 = vmatpush1.bf16.msra.mxu0 0
      %758 = vmatprep.subr.bf16.mxu0 0
      %759 = vmatpush1.bf16.msra.mxu0 0
      %760 = vmatprep.subr.bf16.mxu0 0
      %761 = vmatpush1.bf16.msra.mxu0 0
      %762 = vmatprep.subr.bf16.mxu0 0
      %763 = vmatpush1.bf16.msra.mxu0 %v735
      %764 = vmatprep.subr.bf16.mxu0 0
      %765 = vmatpush1.bf16.msra.mxu0 %v734
      %766 = vmatprep.subr.bf16.mxu0 0
      %767 = vmatpush2.bf16.msra.mxu0 0
      %768 = vmatprep.subr.bf16.mxu0 0
      %769 = vmatpush2.bf16.msra.mxu0 0
      %770 = vmatprep.subr.bf16.mxu0 0
      %771 = vmatpush2.bf16.msra.mxu0 0
      %772 = vmatprep.subr.bf16.mxu0 0
      %773 = vmatpush2.bf16.msra.mxu0 0
      %774 = vmatprep.subr.bf16.mxu0 0
      %775 = vmatpush2.bf16.msra.mxu0 0
      %776 = vmatprep.subr.bf16.mxu0 0
      %777 = vmatpush2.bf16.msra.mxu0 0
      %778 = vmatprep.subr.bf16.mxu0 0
      %779 = vmatpush2.bf16.msra.mxu0 0
      %780 = vmatprep.subr.bf16.mxu0 0
      %781 = vmatpush2.bf16.msra.mxu0 0
      %782 = vmatprep.mubr.bf16.mxu0 0
      %783 = vmatmul.mubr.bf16.gmra.mxu0 %v739
      %v784 = vpop.f32.mrf.mxu0
      %v785 = vadd.f32 0.0, %v784
      %v786 = vpop.f32.mrf.mxu0
      %v787 = vpop.f32.mrf.mxu0
      %v788 = vadd.f32 0.0, %v787
      %v789 = vpop.f32.mrf.mxu0
      %790 = vmatprep.mubr.bf16.mxu0 0
      %791 = vmatmul.mubr.bf16.gmra.mxu0 %v742
      %v792 = vpop.f32.mrf.mxu0
      %v793 = vadd.f32 0.0, %v792
      %v794 = vpop.f32.mrf.mxu0
      %v795 = vpop.f32.mrf.mxu0
      %v796 = vadd.f32 0.0, %v795
      %v797 = vpop.f32.mrf.mxu0
      %798 = vmatprep.mubr.bf16.mxu0 0
      %799 = vmatmul.mubr.bf16.gmra.mxu0 %v745
      %v800 = vpop.f32.mrf.mxu0
      %v801 = vadd.f32 0.0, %v800
      %v802 = vpop.f32.mrf.mxu0
      %v803 = vpop.f32.mrf.mxu0
      %v804 = vadd.f32 0.0, %v803
      %v805 = vpop.f32.mrf.mxu0
      %806 = vmatprep.mubr.bf16.mxu0 0
      %807 = vmatmul.mubr.bf16.gmra.mxu0 %v748
      %v808 = vpop.f32.mrf.mxu0
      %v809 = vadd.f32 0.0, %v808
      %v810 = vpop.f32.mrf.mxu0
      %v811 = vpop.f32.mrf.mxu0
      %v812 = vadd.f32 0.0, %v811
      %v813 = vpop.f32.mrf.mxu0
      %814 = vdwg.mxu0
      %v815 = vadd.f32 %v681, %v785
      %v816 = vadd.f32 %v682, %v788
      %v817 = vadd.f32 %v683, %v793
      %v818 = vadd.f32 %v684, %v796
      %v819 = vadd.f32 %v685, %v801
      %v820 = vadd.f32 %v686, %v804
      %v821 = vadd.f32 %v687, %v809
      %v822 = vadd.f32 %v688, %v812
      %v823 = vld [vmem:[%s692] sm:$0xf]
      %v824 = vld [vmem:[%s692 + $0x4] sm:$0xf]
      %v825 = vld [vmem:[%s692 + $0x8] sm:$0x1]
      %v826 = vld [vmem:[%s692 + $0xc] sm:$0xf]
      %v827 = vld [vmem:[%s692 + $0x10] sm:$0xf]
      %v828 = vld [vmem:[%s692 + $0x14] sm:$0x1]
      %v829 = vld [vmem:[%s692 + $0x18] sm:$0xf]
      %v830 = vld [vmem:[%s692 + $0x1c] sm:$0xf]
      %v831 = vld [vmem:[%s692 + $0x20] sm:$0x1]
      %v832 = vld [vmem:[%s692 + $0x24] sm:$0xf]
      %v833 = vld [vmem:[%s692 + $0x28] sm:$0xf]
      %v834 = vld [vmem:[%s692 + $0x2c] sm:$0x1]
      %v836 = vshrl.u32 %v823, 16
      %v838 = vrot.slane %v836, 4
      %v839 = vshll.u32 %v823, 16
      %v841 = vrot.slane %v839, 5
      %v842 = vor.u32 %v838, %v841
      %v843 = vrot.slane %v842, 4
      %v845 = vshll.u32 %v824, 16
      %v847 = vrot.slane %v845, 5
      %v848 = vsel %vm219, %v843, %v847
      %v849 = vshrl.u32 %v824, 16
      %v851 = vrot.slane %v849, 4
      %v852 = vor.u32 %v851, %v847
      %v853 = vrot.slane %v852, 4
      %v855 = vshll.u32 %v825, 16
      %v857 = vrot.slane %v855, 5
      %v858 = vsel %vm219, %v853, %v857
      %v860 = vshrl.u32 %v826, 16
      %v862 = vrot.slane %v860, 4
      %v863 = vshll.u32 %v826, 16
      %v865 = vrot.slane %v863, 5
      %v866 = vor.u32 %v862, %v865
      %v867 = vrot.slane %v866, 4
      %v869 = vshll.u32 %v827, 16
      %v871 = vrot.slane %v869, 5
      %v872 = vsel %vm219, %v867, %v871
      %v873 = vshrl.u32 %v827, 16
      %v875 = vrot.slane %v873, 4
      %v876 = vor.u32 %v875, %v871
      %v877 = vrot.slane %v876, 4
      %v879 = vshll.u32 %v828, 16
      %v881 = vrot.slane %v879, 5
      %v882 = vsel %vm219, %v877, %v881
      %v884 = vshrl.u32 %v829, 16
      %v886 = vrot.slane %v884, 4
      %v887 = vshll.u32 %v829, 16
      %v889 = vrot.slane %v887, 5
      %v890 = vor.u32 %v886, %v889
      %v891 = vrot.slane %v890, 4
      %v893 = vshll.u32 %v830, 16
      %v895 = vrot.slane %v893, 5
      %v896 = vsel %vm219, %v891, %v895
      %v897 = vshrl.u32 %v830, 16
      %v899 = vrot.slane %v897, 4
      %v900 = vor.u32 %v899, %v895
      %v901 = vrot.slane %v900, 4
      %v903 = vshll.u32 %v831, 16
      %v905 = vrot.slane %v903, 5
      %v906 = vsel %vm219, %v901, %v905
      %v908 = vshrl.u32 %v832, 16
      %v910 = vrot.slane %v908, 4
      %v911 = vshll.u32 %v832, 16
      %v913 = vrot.slane %v911, 5
      %v914 = vor.u32 %v910, %v913
      %v915 = vrot.slane %v914, 4
      %v917 = vshll.u32 %v833, 16
      %v919 = vrot.slane %v917, 5
      %v920 = vsel %vm219, %v915, %v919
      %v921 = vshrl.u32 %v833, 16
      %v923 = vrot.slane %v921, 4
      %v924 = vor.u32 %v923, %v919
      %v925 = vrot.slane %v924, 4
      %v927 = vshll.u32 %v834, 16
      %v929 = vrot.slane %v927, 5
      %v930 = vsel %vm219, %v925, %v929
      %s931 = scalar_lea.vmem %s1, 64
      %v932 = vld [vmem:[%s931] sm:$0xf]
      %v933 = vld [vmem:[%s931 + $0x4] sm:$0xf]
      %v934 = vld [vmem:[%s931 + $0x8] sm:$0xf]
      %v935 = vld [vmem:[%s931 + $0xc] sm:$0xf]
      %v936 = vunpack.c.l.b16 %v848
      %v937 = vunpack.c.l.b16 %v858
      %v938 = vunpack.c.l.b16 %v872
      %v939 = vunpack.c.l.b16 %v882
      %v940 = vunpack.c.l.b16 %v896
      %v941 = vunpack.c.l.b16 %v906
      %v942 = vunpack.c.l.b16 %v920
      %v943 = vunpack.c.l.b16 %v930
      %v944 = vpack.c.b16 %v937, %v936
      %v945 = vpack.c.b16 %v939, %v938
      %v946 = vpack.c.b16 %v941, %v940
      %v947 = vpack.c.b16 %v943, %v942
      %v952 = vunpack.c.l.b16 %v932
      %v953 = vunpack.c.l.b16 %v933
      %v954 = vunpack.c.l.b16 %v934
      %v955 = vunpack.c.l.b16 %v935
      %v956 = vpack.c.b16 %v953, %v952
      %v957 = vpack.c.b16 %v955, %v954
      %v961 = vsel %vm345, %v944, 0
      %v964 = vsel %vm345, %v945, 0
      %v967 = vsel %vm345, %v946, 0
      %v970 = vsel %vm345, %v947, 0
      %972 = vmatprep.subr.bf16.mxu0 0
      %973 = vmatpush1.bf16.msra.mxu0 0
      %974 = vmatprep.subr.bf16.mxu0 0
      %975 = vmatpush1.bf16.msra.mxu0 0
      %976 = vmatprep.subr.bf16.mxu0 0
      %977 = vmatpush1.bf16.msra.mxu0 0
      %978 = vmatprep.subr.bf16.mxu0 0
      %979 = vmatpush1.bf16.msra.mxu0 0
      %980 = vmatprep.subr.bf16.mxu0 0
      %981 = vmatpush1.bf16.msra.mxu0 0
      %982 = vmatprep.subr.bf16.mxu0 0
      %983 = vmatpush1.bf16.msra.mxu0 0
      %984 = vmatprep.subr.bf16.mxu0 0
      %985 = vmatpush1.bf16.msra.mxu0 %v957
      %986 = vmatprep.subr.bf16.mxu0 0
      %987 = vmatpush1.bf16.msra.mxu0 %v956
      %988 = vmatprep.subr.bf16.mxu0 0
      %989 = vmatpush2.bf16.msra.mxu0 0
      %990 = vmatprep.subr.bf16.mxu0 0
      %991 = vmatpush2.bf16.msra.mxu0 0
      %992 = vmatprep.subr.bf16.mxu0 0
      %993 = vmatpush2.bf16.msra.mxu0 0
      %994 = vmatprep.subr.bf16.mxu0 0
      %995 = vmatpush2.bf16.msra.mxu0 0
      %996 = vmatprep.subr.bf16.mxu0 0
      %997 = vmatpush2.bf16.msra.mxu0 0
      %998 = vmatprep.subr.bf16.mxu0 0
      %999 = vmatpush2.bf16.msra.mxu0 0
      %1000 = vmatprep.subr.bf16.mxu0 0
      %1001 = vmatpush2.bf16.msra.mxu0 0
      %1002 = vmatprep.subr.bf16.mxu0 0
      %1003 = vmatpush2.bf16.msra.mxu0 0
      %1004 = vmatprep.mubr.bf16.mxu0 0
      %1005 = vmatmul.mubr.bf16.gmra.mxu0 %v961
      %v1006 = vpop.f32.mrf.mxu0
      %v1007 = vadd.f32 0.0, %v1006
      %v1008 = vpop.f32.mrf.mxu0
      %v1009 = vpop.f32.mrf.mxu0
      %v1010 = vadd.f32 0.0, %v1009
      %v1011 = vpop.f32.mrf.mxu0
      %1012 = vmatprep.mubr.bf16.mxu0 0
      %1013 = vmatmul.mubr.bf16.gmra.mxu0 %v964
      %v1014 = vpop.f32.mrf.mxu0
      %v1015 = vadd.f32 0.0, %v1014
      %v1016 = vpop.f32.mrf.mxu0
      %v1017 = vpop.f32.mrf.mxu0
      %v1018 = vadd.f32 0.0, %v1017
      %v1019 = vpop.f32.mrf.mxu0
      %1020 = vmatprep.mubr.bf16.mxu0 0
      %1021 = vmatmul.mubr.bf16.gmra.mxu0 %v967
      %v1022 = vpop.f32.mrf.mxu0
      %v1023 = vadd.f32 0.0, %v1022
      %v1024 = vpop.f32.mrf.mxu0
      %v1025 = vpop.f32.mrf.mxu0
      %v1026 = vadd.f32 0.0, %v1025
      %v1027 = vpop.f32.mrf.mxu0
      %1028 = vmatprep.mubr.bf16.mxu0 0
      %1029 = vmatmul.mubr.bf16.gmra.mxu0 %v970
      %v1030 = vpop.f32.mrf.mxu0
      %v1031 = vadd.f32 0.0, %v1030
      %v1032 = vpop.f32.mrf.mxu0
      %v1033 = vpop.f32.mrf.mxu0
      %v1034 = vadd.f32 0.0, %v1033
      %v1035 = vpop.f32.mrf.mxu0
      %1036 = vdwg.mxu0
      %v1037 = vadd.f32 %v815, %v1007
      %v1038 = vadd.f32 %v816, %v1010
      %v1039 = vadd.f32 %v817, %v1015
      %v1040 = vadd.f32 %v818, %v1018
      %v1041 = vadd.f32 %v819, %v1023
      %v1042 = vadd.f32 %v820, %v1026
      %v1043 = vadd.f32 %v821, %v1031
      %v1044 = vadd.f32 %v822, %v1034
      %v1045 = vld [vmem:[%s692] sm:$0xe]
      %v1046 = vld [vmem:[%s692 + $0xc] sm:$0xe]
      %v1047 = vld [vmem:[%s692 + $0x18] sm:$0xe]
      %v1048 = vld [vmem:[%s692 + $0x24] sm:$0xe]
      %v1061 = vrot.slane %v1045, 5
      %v1062 = vrot.slane %v1061, 4
      %v1063 = vrot.slane %v824, 5
      %v1064 = vsel %vm546, %v1062, %v1063
      %v1065 = vrot.slane %v1063, 4
      %v1066 = vrot.slane %v825, 5
      %v1067 = vsel %vm546, %v1065, %v1066
      %v1068 = vrot.slane %v1046, 5
      %v1069 = vrot.slane %v1068, 4
      %v1070 = vrot.slane %v827, 5
      %v1071 = vsel %vm546, %v1069, %v1070
      %v1072 = vrot.slane %v1070, 4
      %v1073 = vrot.slane %v828, 5
      %v1074 = vsel %vm546, %v1072, %v1073
      %v1075 = vrot.slane %v1047, 5
      %v1076 = vrot.slane %v1075, 4
      %v1077 = vrot.slane %v830, 5
      %v1078 = vsel %vm546, %v1076, %v1077
      %v1079 = vrot.slane %v1077, 4
      %v1080 = vrot.slane %v831, 5
      %v1081 = vsel %vm546, %v1079, %v1080
      %v1082 = vrot.slane %v1048, 5
      %v1083 = vrot.slane %v1082, 4
      %v1084 = vrot.slane %v833, 5
      %v1085 = vsel %vm546, %v1083, %v1084
      %v1086 = vrot.slane %v1084, 4
      %v1087 = vrot.slane %v834, 5
      %v1088 = vsel %vm546, %v1086, %v1087
      %s1089 = scalar_lea.vmem %s1, 80
      %v1090 = vld [vmem:[%s1089] sm:$0xf]
      %v1091 = vld [vmem:[%s1089 + $0x4] sm:$0xf]
      %v1092 = vld [vmem:[%s1089 + $0x8] sm:$0xf]
      %v1093 = vld [vmem:[%s1089 + $0xc] sm:$0xf]
      %v1094 = vunpack.c.l.b16 %v1064
      %v1095 = vunpack.c.l.b16 %v1067
      %v1096 = vunpack.c.l.b16 %v1071
      %v1097 = vunpack.c.l.b16 %v1074
      %v1098 = vunpack.c.l.b16 %v1078
      %v1099 = vunpack.c.l.b16 %v1081
      %v1100 = vunpack.c.l.b16 %v1085
      %v1101 = vunpack.c.l.b16 %v1088
      %v1102 = vpack.c.b16 %v1095, %v1094
      %v1103 = vpack.c.b16 %v1097, %v1096
      %v1104 = vpack.c.b16 %v1099, %v1098
      %v1105 = vpack.c.b16 %v1101, %v1100
      %v1110 = vunpack.c.l.b16 %v1090
      %v1111 = vunpack.c.l.b16 %v1091
      %v1112 = vunpack.c.l.b16 %v1092
      %v1113 = vunpack.c.l.b16 %v1093
      %v1114 = vpack.c.b16 %v1111, %v1110
      %v1115 = vpack.c.b16 %v1113, %v1112
      %v1119 = vsel %vm345, %v1102, 0
      %v1122 = vsel %vm345, %v1103, 0
      %v1125 = vsel %vm345, %v1104, 0
      %v1128 = vsel %vm345, %v1105, 0
      %1130 = vmatprep.subr.bf16.mxu0 0
      %1131 = vmatpush1.bf16.msra.mxu0 0
      %1132 = vmatprep.subr.bf16.mxu0 0
      %1133 = vmatpush1.bf16.msra.mxu0 0
      %1134 = vmatprep.subr.bf16.mxu0 0
      %1135 = vmatpush1.bf16.msra.mxu0 0
      %1136 = vmatprep.subr.bf16.mxu0 0
      %1137 = vmatpush1.bf16.msra.mxu0 0
      %1138 = vmatprep.subr.bf16.mxu0 0
      %1139 = vmatpush1.bf16.msra.mxu0 0
      %1140 = vmatprep.subr.bf16.mxu0 0
      %1141 = vmatpush1.bf16.msra.mxu0 0
      %1142 = vmatprep.subr.bf16.mxu0 0
      %1143 = vmatpush1.bf16.msra.mxu0 %v1115
      %1144 = vmatprep.subr.bf16.mxu0 0
      %1145 = vmatpush1.bf16.msra.mxu0 %v1114
      %1146 = vmatprep.subr.bf16.mxu0 0
      %1147 = vmatpush2.bf16.msra.mxu0 0
      %1148 = vmatprep.subr.bf16.mxu0 0
      %1149 = vmatpush2.bf16.msra.mxu0 0
      %1150 = vmatprep.subr.bf16.mxu0 0
      %1151 = vmatpush2.bf16.msra.mxu0 0
      %1152 = vmatprep.subr.bf16.mxu0 0
      %1153 = vmatpush2.bf16.msra.mxu0 0
      %1154 = vmatprep.subr.bf16.mxu0 0
      %1155 = vmatpush2.bf16.msra.mxu0 0
      %1156 = vmatprep.subr.bf16.mxu0 0
      %1157 = vmatpush2.bf16.msra.mxu0 0
      %1158 = vmatprep.subr.bf16.mxu0 0
      %1159 = vmatpush2.bf16.msra.mxu0 0
      %1160 = vmatprep.subr.bf16.mxu0 0
      %1161 = vmatpush2.bf16.msra.mxu0 0
      %1162 = vmatprep.mubr.bf16.mxu0 0
      %1163 = vmatmul.mubr.bf16.gmra.mxu0 %v1119
      %v1164 = vpop.f32.mrf.mxu0
      %v1165 = vadd.f32 0.0, %v1164
      %v1166 = vpop.f32.mrf.mxu0
      %v1167 = vpop.f32.mrf.mxu0
      %v1168 = vadd.f32 0.0, %v1167
      %v1169 = vpop.f32.mrf.mxu0
      %1170 = vmatprep.mubr.bf16.mxu0 0
      %1171 = vmatmul.mubr.bf16.gmra.mxu0 %v1122
      %v1172 = vpop.f32.mrf.mxu0
      %v1173 = vadd.f32 0.0, %v1172
      %v1174 = vpop.f32.mrf.mxu0
      %v1175 = vpop.f32.mrf.mxu0
      %v1176 = vadd.f32 0.0, %v1175
      %v1177 = vpop.f32.mrf.mxu0
      %1178 = vmatprep.mubr.bf16.mxu0 0
      %1179 = vmatmul.mubr.bf16.gmra.mxu0 %v1125
      %v1180 = vpop.f32.mrf.mxu0
      %v1181 = vadd.f32 0.0, %v1180
      %v1182 = vpop.f32.mrf.mxu0
      %v1183 = vpop.f32.mrf.mxu0
      %v1184 = vadd.f32 0.0, %v1183
      %v1185 = vpop.f32.mrf.mxu0
      %1186 = vmatprep.mubr.bf16.mxu0 0
      %1187 = vmatmul.mubr.bf16.gmra.mxu0 %v1128
      %v1188 = vpop.f32.mrf.mxu0
      %v1189 = vadd.f32 0.0, %v1188
      %v1190 = vpop.f32.mrf.mxu0
      %v1191 = vpop.f32.mrf.mxu0
      %v1192 = vadd.f32 0.0, %v1191
      %v1193 = vpop.f32.mrf.mxu0
      %1194 = vdwg.mxu0
      %v1195 = vadd.f32 %v1037, %v1165
      %v1196 = vadd.f32 %v1038, %v1168
      %v1197 = vadd.f32 %v1039, %v1173
      %v1198 = vadd.f32 %v1040, %v1176
      %v1199 = vadd.f32 %v1041, %v1181
      %v1200 = vadd.f32 %v1042, %v1184
      %v1201 = vadd.f32 %v1043, %v1189
      %v1202 = vadd.f32 %v1044, %v1192
      %s1203 = sadd.s32 %s197, 2
      %s1204 = smul.u32 %s1203, 3
      %s1205 = smul.addr %s1204, 4
      %s1206 = scalar_lea.vmem %s184, %s1205
      %v1207 = vld [vmem:[%s1206] sm:$0xf]
      %v1208 = vld [vmem:[%s1206 + $0x4] sm:$0xf]
      %v1209 = vld [vmem:[%s1206 + $0xc] sm:$0xf]
      %v1210 = vld [vmem:[%s1206 + $0x10] sm:$0xf]
      %v1211 = vld [vmem:[%s1206 + $0x18] sm:$0xf]
      %v1212 = vld [vmem:[%s1206 + $0x1c] sm:$0xf]
      %v1213 = vld [vmem:[%s1206 + $0x24] sm:$0xf]
      %v1214 = vld [vmem:[%s1206 + $0x28] sm:$0xf]
      %s1215 = scalar_lea.vmem %s1, 96
      %v1216 = vld [vmem:[%s1215] sm:$0xf]
      %v1217 = vld [vmem:[%s1215 + $0x4] sm:$0xf]
      %v1218 = vld [vmem:[%s1215 + $0x8] sm:$0xf]
      %v1219 = vld [vmem:[%s1215 + $0xc] sm:$0xf]
      %v1228 = vunpack.c.l.b16 %v1207
      %v1229 = vunpack.c.l.b16 %v1208
      %v1230 = vunpack.c.l.b16 %v1209
      %v1231 = vunpack.c.l.b16 %v1210
      %v1232 = vunpack.c.l.b16 %v1211
      %v1233 = vunpack.c.l.b16 %v1212
      %v1234 = vunpack.c.l.b16 %v1213
      %v1235 = vunpack.c.l.b16 %v1214
      %v1236 = vpack.c.b16 %v1229, %v1228
      %v1237 = vpack.c.b16 %v1231, %v1230
      %v1238 = vpack.c.b16 %v1233, %v1232
      %v1239 = vpack.c.b16 %v1235, %v1234
      %v1244 = vunpack.c.l.b16 %v1216
      %v1245 = vunpack.c.l.b16 %v1217
      %v1246 = vunpack.c.l.b16 %v1218
      %v1247 = vunpack.c.l.b16 %v1219
      %v1248 = vpack.c.b16 %v1245, %v1244
      %v1249 = vpack.c.b16 %v1247, %v1246
      %v1253 = vsel %vm345, %v1236, 0
      %v1256 = vsel %vm345, %v1237, 0
      %v1259 = vsel %vm345, %v1238, 0
      %v1262 = vsel %vm345, %v1239, 0
      %1264 = vmatprep.subr.bf16.mxu0 0
      %1265 = vmatpush1.bf16.msra.mxu0 0
      %1266 = vmatprep.subr.bf16.mxu0 0
      %1267 = vmatpush1.bf16.msra.mxu0 0
      %1268 = vmatprep.subr.bf16.mxu0 0
      %1269 = vmatpush1.bf16.msra.mxu0 0
      %1270 = vmatprep.subr.bf16.mxu0 0
      %1271 = vmatpush1.bf16.msra.mxu0 0
      %1272 = vmatprep.subr.bf16.mxu0 0
      %1273 = vmatpush1.bf16.msra.mxu0 0
      %1274 = vmatprep.subr.bf16.mxu0 0
      %1275 = vmatpush1.bf16.msra.mxu0 0
      %1276 = vmatprep.subr.bf16.mxu0 0
      %1277 = vmatpush1.bf16.msra.mxu0 %v1249
      %1278 = vmatprep.subr.bf16.mxu0 0
      %1279 = vmatpush1.bf16.msra.mxu0 %v1248
      %1280 = vmatprep.subr.bf16.mxu0 0
      %1281 = vmatpush2.bf16.msra.mxu0 0
      %1282 = vmatprep.subr.bf16.mxu0 0
      %1283 = vmatpush2.bf16.msra.mxu0 0
      %1284 = vmatprep.subr.bf16.mxu0 0
      %1285 = vmatpush2.bf16.msra.mxu0 0
      %1286 = vmatprep.subr.bf16.mxu0 0
      %1287 = vmatpush2.bf16.msra.mxu0 0
      %1288 = vmatprep.subr.bf16.mxu0 0
      %1289 = vmatpush2.bf16.msra.mxu0 0
      %1290 = vmatprep.subr.bf16.mxu0 0
      %1291 = vmatpush2.bf16.msra.mxu0 0
      %1292 = vmatprep.subr.bf16.mxu0 0
      %1293 = vmatpush2.bf16.msra.mxu0 0
      %1294 = vmatprep.subr.bf16.mxu0 0
      %1295 = vmatpush2.bf16.msra.mxu0 0
      %1296 = vmatprep.mubr.bf16.mxu0 0
      %1297 = vmatmul.mubr.bf16.gmra.mxu0 %v1253
      %v1298 = vpop.f32.mrf.mxu0
      %v1299 = vadd.f32 0.0, %v1298
      %v1300 = vpop.f32.mrf.mxu0
      %v1301 = vpop.f32.mrf.mxu0
      %v1302 = vadd.f32 0.0, %v1301
      %v1303 = vpop.f32.mrf.mxu0
      %1304 = vmatprep.mubr.bf16.mxu0 0
      %1305 = vmatmul.mubr.bf16.gmra.mxu0 %v1256
      %v1306 = vpop.f32.mrf.mxu0
      %v1307 = vadd.f32 0.0, %v1306
      %v1308 = vpop.f32.mrf.mxu0
      %v1309 = vpop.f32.mrf.mxu0
      %v1310 = vadd.f32 0.0, %v1309
      %v1311 = vpop.f32.mrf.mxu0
      %1312 = vmatprep.mubr.bf16.mxu0 0
      %1313 = vmatmul.mubr.bf16.gmra.mxu0 %v1259
      %v1314 = vpop.f32.mrf.mxu0
      %v1315 = vadd.f32 0.0, %v1314
      %v1316 = vpop.f32.mrf.mxu0
      %v1317 = vpop.f32.mrf.mxu0
      %v1318 = vadd.f32 0.0, %v1317
      %v1319 = vpop.f32.mrf.mxu0
      %1320 = vmatprep.mubr.bf16.mxu0 0
      %1321 = vmatmul.mubr.bf16.gmra.mxu0 %v1262
      %v1322 = vpop.f32.mrf.mxu0
      %v1323 = vadd.f32 0.0, %v1322
      %v1324 = vpop.f32.mrf.mxu0
      %v1325 = vpop.f32.mrf.mxu0
      %v1326 = vadd.f32 0.0, %v1325
      %v1327 = vpop.f32.mrf.mxu0
      %1328 = vdwg.mxu0
      %v1329 = vadd.f32 %v1195, %v1299
      %v1330 = vadd.f32 %v1196, %v1302
      %v1331 = vadd.f32 %v1197, %v1307
      %v1332 = vadd.f32 %v1198, %v1310
      %v1333 = vadd.f32 %v1199, %v1315
      %v1334 = vadd.f32 %v1200, %v1318
      %v1335 = vadd.f32 %v1201, %v1323
      %v1336 = vadd.f32 %v1202, %v1326
      %v1337 = vld [vmem:[%s1206] sm:$0xf]
      %v1338 = vld [vmem:[%s1206 + $0x4] sm:$0xf]
      %v1339 = vld [vmem:[%s1206 + $0x8] sm:$0x1]
      %v1340 = vld [vmem:[%s1206 + $0xc] sm:$0xf]
      %v1341 = vld [vmem:[%s1206 + $0x10] sm:$0xf]
      %v1342 = vld [vmem:[%s1206 + $0x14] sm:$0x1]
      %v1343 = vld [vmem:[%s1206 + $0x18] sm:$0xf]
      %v1344 = vld [vmem:[%s1206 + $0x1c] sm:$0xf]
      %v1345 = vld [vmem:[%s1206 + $0x20] sm:$0x1]
      %v1346 = vld [vmem:[%s1206 + $0x24] sm:$0xf]
      %v1347 = vld [vmem:[%s1206 + $0x28] sm:$0xf]
      %v1348 = vld [vmem:[%s1206 + $0x2c] sm:$0x1]
      %v1350 = vshrl.u32 %v1337, 16
      %v1352 = vrot.slane %v1350, 4
      %v1353 = vshll.u32 %v1337, 16
      %v1355 = vrot.slane %v1353, 5
      %v1356 = vor.u32 %v1352, %v1355
      %v1357 = vrot.slane %v1356, 4
      %v1359 = vshll.u32 %v1338, 16
      %v1361 = vrot.slane %v1359, 5
      %v1362 = vsel %vm219, %v1357, %v1361
      %v1363 = vshrl.u32 %v1338, 16
      %v1365 = vrot.slane %v1363, 4
      %v1366 = vor.u32 %v1365, %v1361
      %v1367 = vrot.slane %v1366, 4
      %v1369 = vshll.u32 %v1339, 16
      %v1371 = vrot.slane %v1369, 5
      %v1372 = vsel %vm219, %v1367, %v1371
      %v1374 = vshrl.u32 %v1340, 16
      %v1376 = vrot.slane %v1374, 4
      %v1377 = vshll.u32 %v1340, 16
      %v1379 = vrot.slane %v1377, 5
      %v1380 = vor.u32 %v1376, %v1379
      %v1381 = vrot.slane %v1380, 4
      %v1383 = vshll.u32 %v1341, 16
      %v1385 = vrot.slane %v1383, 5
      %v1386 = vsel %vm219, %v1381, %v1385
      %v1387 = vshrl.u32 %v1341, 16
      %v1389 = vrot.slane %v1387, 4
      %v1390 = vor.u32 %v1389, %v1385
      %v1391 = vrot.slane %v1390, 4
      %v1393 = vshll.u32 %v1342, 16
      %v1395 = vrot.slane %v1393, 5
      %v1396 = vsel %vm219, %v1391, %v1395
      %v1398 = vshrl.u32 %v1343, 16
      %v1400 = vrot.slane %v1398, 4
      %v1401 = vshll.u32 %v1343, 16
      %v1403 = vrot.slane %v1401, 5
      %v1404 = vor.u32 %v1400, %v1403
      %v1405 = vrot.slane %v1404, 4
      %v1407 = vshll.u32 %v1344, 16
      %v1409 = vrot.slane %v1407, 5
      %v1410 = vsel %vm219, %v1405, %v1409
      %v1411 = vshrl.u32 %v1344, 16
      %v1413 = vrot.slane %v1411, 4
      %v1414 = vor.u32 %v1413, %v1409
      %v1415 = vrot.slane %v1414, 4
      %v1417 = vshll.u32 %v1345, 16
      %v1419 = vrot.slane %v1417, 5
      %v1420 = vsel %vm219, %v1415, %v1419
      %v1422 = vshrl.u32 %v1346, 16
      %v1424 = vrot.slane %v1422, 4
      %v1425 = vshll.u32 %v1346, 16
      %v1427 = vrot.slane %v1425, 5
      %v1428 = vor.u32 %v1424, %v1427
      %v1429 = vrot.slane %v1428, 4
      %v1431 = vshll.u32 %v1347, 16
      %v1433 = vrot.slane %v1431, 5
      %v1434 = vsel %vm219, %v1429, %v1433
      %v1435 = vshrl.u32 %v1347, 16
      %v1437 = vrot.slane %v1435, 4
      %v1438 = vor.u32 %v1437, %v1433
      %v1439 = vrot.slane %v1438, 4
      %v1441 = vshll.u32 %v1348, 16
      %v1443 = vrot.slane %v1441, 5
      %v1444 = vsel %vm219, %v1439, %v1443
      %s1445 = scalar_lea.vmem %s1, 112
      %v1446 = vld [vmem:[%s1445] sm:$0xf]
      %v1447 = vld [vmem:[%s1445 + $0x4] sm:$0xf]
      %v1448 = vld [vmem:[%s1445 + $0x8] sm:$0xf]
      %v1449 = vld [vmem:[%s1445 + $0xc] sm:$0xf]
      %v1450 = vunpack.c.l.b16 %v1362
      %v1451 = vunpack.c.l.b16 %v1372
      %v1452 = vunpack.c.l.b16 %v1386
      %v1453 = vunpack.c.l.b16 %v1396
      %v1454 = vunpack.c.l.b16 %v1410
      %v1455 = vunpack.c.l.b16 %v1420
      %v1456 = vunpack.c.l.b16 %v1434
      %v1457 = vunpack.c.l.b16 %v1444
      %v1458 = vpack.c.b16 %v1451, %v1450
      %v1459 = vpack.c.b16 %v1453, %v1452
      %v1460 = vpack.c.b16 %v1455, %v1454
      %v1461 = vpack.c.b16 %v1457, %v1456
      %v1466 = vunpack.c.l.b16 %v1446
      %v1467 = vunpack.c.l.b16 %v1447
      %v1468 = vunpack.c.l.b16 %v1448
      %v1469 = vunpack.c.l.b16 %v1449
      %v1470 = vpack.c.b16 %v1467, %v1466
      %v1471 = vpack.c.b16 %v1469, %v1468
      %v1475 = vsel %vm345, %v1458, 0
      %v1478 = vsel %vm345, %v1459, 0
      %v1481 = vsel %vm345, %v1460, 0
      %v1484 = vsel %vm345, %v1461, 0
      %1486 = vmatprep.subr.bf16.mxu0 0
      %1487 = vmatpush1.bf16.msra.mxu0 0
      %1488 = vmatprep.subr.bf16.mxu0 0
      %1489 = vmatpush1.bf16.msra.mxu0 0
      %1490 = vmatprep.subr.bf16.mxu0 0
      %1491 = vmatpush1.bf16.msra.mxu0 0
      %1492 = vmatprep.subr.bf16.mxu0 0
      %1493 = vmatpush1.bf16.msra.mxu0 0
      %1494 = vmatprep.subr.bf16.mxu0 0
      %1495 = vmatpush1.bf16.msra.mxu0 0
      %1496 = vmatprep.subr.bf16.mxu0 0
      %1497 = vmatpush1.bf16.msra.mxu0 0
      %1498 = vmatprep.subr.bf16.mxu0 0
      %1499 = vmatpush1.bf16.msra.mxu0 %v1471
      %1500 = vmatprep.subr.bf16.mxu0 0
      %1501 = vmatpush1.bf16.msra.mxu0 %v1470
      %1502 = vmatprep.subr.bf16.mxu0 0
      %1503 = vmatpush2.bf16.msra.mxu0 0
      %1504 = vmatprep.subr.bf16.mxu0 0
      %1505 = vmatpush2.bf16.msra.mxu0 0
      %1506 = vmatprep.subr.bf16.mxu0 0
      %1507 = vmatpush2.bf16.msra.mxu0 0
      %1508 = vmatprep.subr.bf16.mxu0 0
      %1509 = vmatpush2.bf16.msra.mxu0 0
      %1510 = vmatprep.subr.bf16.mxu0 0
      %1511 = vmatpush2.bf16.msra.mxu0 0
      %1512 = vmatprep.subr.bf16.mxu0 0
      %1513 = vmatpush2.bf16.msra.mxu0 0
      %1514 = vmatprep.subr.bf16.mxu0 0
      %1515 = vmatpush2.bf16.msra.mxu0 0
      %1516 = vmatprep.subr.bf16.mxu0 0
      %1517 = vmatpush2.bf16.msra.mxu0 0
      %1518 = vmatprep.mubr.bf16.mxu0 0
      %1519 = vmatmul.mubr.bf16.gmra.mxu0 %v1475
      %v1520 = vpop.f32.mrf.mxu0
      %v1521 = vadd.f32 0.0, %v1520
      %v1522 = vpop.f32.mrf.mxu0
      %v1523 = vpop.f32.mrf.mxu0
      %v1524 = vadd.f32 0.0, %v1523
      %v1525 = vpop.f32.mrf.mxu0
      %1526 = vmatprep.mubr.bf16.mxu0 0
      %1527 = vmatmul.mubr.bf16.gmra.mxu0 %v1478
      %v1528 = vpop.f32.mrf.mxu0
      %v1529 = vadd.f32 0.0, %v1528
      %v1530 = vpop.f32.mrf.mxu0
      %v1531 = vpop.f32.mrf.mxu0
      %v1532 = vadd.f32 0.0, %v1531
      %v1533 = vpop.f32.mrf.mxu0
      %1534 = vmatprep.mubr.bf16.mxu0 0
      %1535 = vmatmul.mubr.bf16.gmra.mxu0 %v1481
      %v1536 = vpop.f32.mrf.mxu0
      %v1537 = vadd.f32 0.0, %v1536
      %v1538 = vpop.f32.mrf.mxu0
      %v1539 = vpop.f32.mrf.mxu0
      %v1540 = vadd.f32 0.0, %v1539
      %v1541 = vpop.f32.mrf.mxu0
      %1542 = vmatprep.mubr.bf16.mxu0 0
      %1543 = vmatmul.mubr.bf16.gmra.mxu0 %v1484
      %v1544 = vpop.f32.mrf.mxu0
      %v1545 = vadd.f32 0.0, %v1544
      %v1546 = vpop.f32.mrf.mxu0
      %v1547 = vpop.f32.mrf.mxu0
      %v1548 = vadd.f32 0.0, %v1547
      %v1549 = vpop.f32.mrf.mxu0
      %1550 = vdwg.mxu0
      %v1551 = vadd.f32 %v1329, %v1521
      %v1552 = vadd.f32 %v1330, %v1524
      %v1553 = vadd.f32 %v1331, %v1529
      %v1554 = vadd.f32 %v1332, %v1532
      %v1555 = vadd.f32 %v1333, %v1537
      %v1556 = vadd.f32 %v1334, %v1540
      %v1557 = vadd.f32 %v1335, %v1545
      %v1558 = vadd.f32 %v1336, %v1548
      %v1559 = vld [vmem:[%s1206] sm:$0xe]
      %v1560 = vld [vmem:[%s1206 + $0xc] sm:$0xe]
      %v1561 = vld [vmem:[%s1206 + $0x18] sm:$0xe]
      %v1562 = vld [vmem:[%s1206 + $0x24] sm:$0xe]
      %v1575 = vrot.slane %v1559, 5
      %v1576 = vrot.slane %v1575, 4
      %v1577 = vrot.slane %v1338, 5
      %v1578 = vsel %vm546, %v1576, %v1577
      %v1579 = vrot.slane %v1577, 4
      %v1580 = vrot.slane %v1339, 5
      %v1581 = vsel %vm546, %v1579, %v1580
      %v1582 = vrot.slane %v1560, 5
      %v1583 = vrot.slane %v1582, 4
      %v1584 = vrot.slane %v1341, 5
      %v1585 = vsel %vm546, %v1583, %v1584
      %v1586 = vrot.slane %v1584, 4
      %v1587 = vrot.slane %v1342, 5
      %v1588 = vsel %vm546, %v1586, %v1587
      %v1589 = vrot.slane %v1561, 5
      %v1590 = vrot.slane %v1589, 4
      %v1591 = vrot.slane %v1344, 5
      %v1592 = vsel %vm546, %v1590, %v1591
      %v1593 = vrot.slane %v1591, 4
      %v1594 = vrot.slane %v1345, 5
      %v1595 = vsel %vm546, %v1593, %v1594
      %v1596 = vrot.slane %v1562, 5
      %v1597 = vrot.slane %v1596, 4
      %v1598 = vrot.slane %v1347, 5
      %v1599 = vsel %vm546, %v1597, %v1598
      %v1600 = vrot.slane %v1598, 4
      %v1601 = vrot.slane %v1348, 5
      %v1602 = vsel %vm546, %v1600, %v1601
      %s1603 = scalar_lea.vmem %s1, 128
      %v1604 = vld [vmem:[%s1603] sm:$0xf]
      %v1605 = vld [vmem:[%s1603 + $0x4] sm:$0xf]
      %v1606 = vld [vmem:[%s1603 + $0x8] sm:$0xf]
      %v1607 = vld [vmem:[%s1603 + $0xc] sm:$0xf]
      %v1608 = vunpack.c.l.b16 %v1578
      %v1609 = vunpack.c.l.b16 %v1581
      %v1610 = vunpack.c.l.b16 %v1585
      %v1611 = vunpack.c.l.b16 %v1588
      %v1612 = vunpack.c.l.b16 %v1592
      %v1613 = vunpack.c.l.b16 %v1595
      %v1614 = vunpack.c.l.b16 %v1599
      %v1615 = vunpack.c.l.b16 %v1602
      %v1616 = vpack.c.b16 %v1609, %v1608
      %v1617 = vpack.c.b16 %v1611, %v1610
      %v1618 = vpack.c.b16 %v1613, %v1612
      %v1619 = vpack.c.b16 %v1615, %v1614
      %v1624 = vunpack.c.l.b16 %v1604
      %v1625 = vunpack.c.l.b16 %v1605
      %v1626 = vunpack.c.l.b16 %v1606
      %v1627 = vunpack.c.l.b16 %v1607
      %v1628 = vpack.c.b16 %v1625, %v1624
      %v1629 = vpack.c.b16 %v1627, %v1626
      %v1633 = vsel %vm345, %v1616, 0
      %v1636 = vsel %vm345, %v1617, 0
      %v1639 = vsel %vm345, %v1618, 0
      %v1642 = vsel %vm345, %v1619, 0
      %1644 = vmatprep.subr.bf16.mxu0 0
      %1645 = vmatpush1.bf16.msra.mxu0 0
      %1646 = vmatprep.subr.bf16.mxu0 0
      %1647 = vmatpush1.bf16.msra.mxu0 0
      %1648 = vmatprep.subr.bf16.mxu0 0
      %1649 = vmatpush1.bf16.msra.mxu0 0
      %1650 = vmatprep.subr.bf16.mxu0 0
      %1651 = vmatpush1.bf16.msra.mxu0 0
      %1652 = vmatprep.subr.bf16.mxu0 0
      %1653 = vmatpush1.bf16.msra.mxu0 0
      %1654 = vmatprep.subr.bf16.mxu0 0
      %1655 = vmatpush1.bf16.msra.mxu0 0
      %1656 = vmatprep.subr.bf16.mxu0 0
      %1657 = vmatpush1.bf16.msra.mxu0 %v1629
      %1658 = vmatprep.subr.bf16.mxu0 0
      %1659 = vmatpush1.bf16.msra.mxu0 %v1628
      %1660 = vmatprep.subr.bf16.mxu0 0
      %1661 = vmatpush2.bf16.msra.mxu0 0
      %1662 = vmatprep.subr.bf16.mxu0 0
      %1663 = vmatpush2.bf16.msra.mxu0 0
      %1664 = vmatprep.subr.bf16.mxu0 0
      %1665 = vmatpush2.bf16.msra.mxu0 0
      %1666 = vmatprep.subr.bf16.mxu0 0
      %1667 = vmatpush2.bf16.msra.mxu0 0
      %1668 = vmatprep.subr.bf16.mxu0 0
      %1669 = vmatpush2.bf16.msra.mxu0 0
      %1670 = vmatprep.subr.bf16.mxu0 0
      %1671 = vmatpush2.bf16.msra.mxu0 0
      %1672 = vmatprep.subr.bf16.mxu0 0
      %1673 = vmatpush2.bf16.msra.mxu0 0
      %1674 = vmatprep.subr.bf16.mxu0 0
      %1675 = vmatpush2.bf16.msra.mxu0 0
      %1676 = vmatprep.mubr.bf16.mxu0 0
      %1677 = vmatmul.mubr.bf16.gmra.mxu0 %v1633
      %v1678 = vpop.f32.mrf.mxu0
      %v1679 = vadd.f32 0.0, %v1678
      %v1680 = vpop.f32.mrf.mxu0
      %v1681 = vpop.f32.mrf.mxu0
      %v1682 = vadd.f32 0.0, %v1681
      %v1683 = vpop.f32.mrf.mxu0
      %1684 = vmatprep.mubr.bf16.mxu0 0
      %1685 = vmatmul.mubr.bf16.gmra.mxu0 %v1636
      %v1686 = vpop.f32.mrf.mxu0
      %v1687 = vadd.f32 0.0, %v1686
      %v1688 = vpop.f32.mrf.mxu0
      %v1689 = vpop.f32.mrf.mxu0
      %v1690 = vadd.f32 0.0, %v1689
      %v1691 = vpop.f32.mrf.mxu0
      %1692 = vmatprep.mubr.bf16.mxu0 0
      %1693 = vmatmul.mubr.bf16.gmra.mxu0 %v1639
      %v1694 = vpop.f32.mrf.mxu0
      %v1695 = vadd.f32 0.0, %v1694
      %v1696 = vpop.f32.mrf.mxu0
      %v1697 = vpop.f32.mrf.mxu0
      %v1698 = vadd.f32 0.0, %v1697
      %v1699 = vpop.f32.mrf.mxu0
      %1700 = vmatprep.mubr.bf16.mxu0 0
      %1701 = vmatmul.mubr.bf16.gmra.mxu0 %v1642
      %v1702 = vpop.f32.mrf.mxu0
      %v1703 = vadd.f32 0.0, %v1702
      %v1704 = vpop.f32.mrf.mxu0
      %v1705 = vpop.f32.mrf.mxu0
      %v1706 = vadd.f32 0.0, %v1705
      %v1707 = vpop.f32.mrf.mxu0
      %1708 = vdwg.mxu0
      %v1709 = vadd.f32 %v1551, %v1679
      %v1710 = vadd.f32 %v1552, %v1682
      %v1711 = vadd.f32 %v1553, %v1687
      %v1712 = vadd.f32 %v1554, %v1690
      %v1713 = vadd.f32 %v1555, %v1695
      %v1714 = vadd.f32 %v1556, %v1698
      %v1715 = vadd.f32 %v1557, %v1703
      %v1716 = vadd.f32 %v1558, %v1706
      %v1717 = vld [vmem:[%s2] sm:$0x1]
      %v1719 = vlaneseq
      %v1720 = vshrl.u32 %v1719, 7
      %v1721 = vsub.s32 0, %v1720
      %v1722 = vrot.slane %v1717, %v1721
      %v1724 = vadd.f32 %v1709, %v1722
      %v1725 = vadd.f32 %v1710, %v1722
      %v1726 = vadd.f32 %v1711, %v1722
      %v1727 = vadd.f32 %v1712, %v1722
      %v1728 = vadd.f32 %v1713, %v1722
      %v1729 = vadd.f32 %v1714, %v1722
      %v1730 = vadd.f32 %v1715, %v1722
      %v1731 = vadd.f32 %v1716, %v1722
      %v1732 = vmax.f32 %v1724, 0.0
      %v1733 = vmax.f32 %v1725, 0.0
      %v1734 = vmax.f32 %v1726, 0.0
      %v1735 = vmax.f32 %v1727, 0.0
      %v1736 = vmax.f32 %v1728, 0.0
      %v1737 = vmax.f32 %v1729, 0.0
      %v1738 = vmax.f32 %v1730, 0.0
      %v1739 = vmax.f32 %v1731, 0.0
      %v1740 = vpack.c.bf16 %v1733, %v1732
      %v1741 = vpack.c.bf16 %v1735, %v1734
      %v1742 = vpack.c.bf16 %v1737, %v1736
      %v1743 = vpack.c.bf16 %v1739, %v1738
      %v1748 = vunpack.c.l.b16 %v1740
      %v1749 = vunpack.c.h.b16 %v1740
      %v1750 = vunpack.c.l.b16 %v1741
      %v1751 = vunpack.c.h.b16 %v1741
      %v1752 = vunpack.c.l.b16 %v1742
      %v1753 = vunpack.c.h.b16 %v1742
      %v1754 = vunpack.c.l.b16 %v1743
      %v1755 = vunpack.c.h.b16 %v1743
      %v1756 = vpack.c.b16 %v1748, %v1748
      %v1757 = vpack.c.b16 %v1749, %v1749
      %v1758 = vpack.c.b16 %v1750, %v1750
      %v1759 = vpack.c.b16 %v1751, %v1751
      %v1760 = vpack.c.b16 %v1752, %v1752
      %v1761 = vpack.c.b16 %v1753, %v1753
      %v1762 = vpack.c.b16 %v1754, %v1754
      %v1763 = vpack.c.b16 %v1755, %v1755
      %1772 = vst [vmem:[%s194] sm:$0xf] %v1756
      %1773 = vst [vmem:[%s194 + $0x4] sm:$0xf] %v1757
      %1774 = vst [vmem:[%s194 + $0x8] sm:$0xf] %v1758
      %1775 = vst [vmem:[%s194 + $0xc] sm:$0xf] %v1759
      %1776 = vst [vmem:[%s194 + $0x10] sm:$0xf] %v1760
      %1777 = vst [vmem:[%s194 + $0x14] sm:$0xf] %v1761
      %1778 = vst [vmem:[%s194 + $0x18] sm:$0xf] %v1762
      %1779 = vst [vmem:[%s194 + $0x1c] sm:$0xf] %v1763
      %s1780 = smul.u32 4, %s19
      %p1781 = scmp.lt.s32.totalorder %s18, 1
      %s1782 = scalar_select %p1781, %s18, 1
      %p1783 = scmp.lt.s32.totalorder %s1780, 7
      %s1784 = scalar_select %p1783, %s1780, 7
      %s1785 = smul.addr %s1784, 2
      %s1786 = smul.addr %s1782, 16
      %s1787 = sadd.s32 %s1785, %s1786
      %s1788 = smul.addr %s1787, 4
      %s1789 = scalar_lea.vmem %s3, %s1788
      // Predicated region
      $region33: #{hyper_analysis_ex.4} parent=31 // pred_check
        %p1790 = pneg %p114
      $region34: #{hyper_analysis_ex.4} parent=31 // pred_check_branch
        %1792 = sbr.rel (%p1790) target = $region36
      $region35: #{hyper_analysis_ex.4} parent=31 // pred_region
        %s1793 = smul.u32 4, %s19
      $region36: #{hyper_analysis_ex.4} parent=31 // pred_fallthru
        _
    $region32: #{hyper_analysis_ex.4} parent=5 // pred_fallthru
      _
    %p1794 = scmp.le.s32.totalorder 2, %s9
    // Predicated region
    $region37: #{hyper_analysis_ex.4} parent=5 // pred_check
      %p1795 = pneg %p1794
    $region38: #{hyper_analysis_ex.4} parent=5 // pred_check_branch
      %1797 = sbr.rel (%p1795) target = $region40
    $region39: #{hyper_analysis_ex.4} parent=5 // pred_region
      %s1798 = ssub.s32 %s9, 2
      // Predicated region
      $region41: #{hyper_analysis_ex.4} parent=39 // pred_check
        %p1799 = pneg %p120
      $region42: #{hyper_analysis_ex.4} parent=39 // pred_check_branch
        %1801 = sbr.rel (%p1799) target = $region44
      $region43: #{hyper_analysis_ex.4} parent=39 // pred_region
        %s1802 = smul.u32 4, %s21
        %p1803 = scmp.lt.s32.totalorder %s20, 1
        %s1804 = scalar_select %p1803, %s20, 1
        %p1805 = scmp.lt.s32.totalorder %s1802, 7
        %s1806 = scalar_select %p1805, %s1802, 7
        %s1807 = smul.addr %s1806, 2
        %s1808 = smul.addr %s1804, 16
        %s1809 = sadd.s32 %s1807, %s1808
        %s1810 = smul.addr %s1809, 4
        %s1811 = scalar_lea.vmem %s3, %s1810
      $region44: #{hyper_analysis_ex.4} parent=39 // pred_fallthru
        _
    $region40: #{hyper_analysis_ex.4} parent=5 // pred_fallthru
      _
  $region6: #{hyper_analysis_ex.4} parent=0 // loop_footer
    %s13 = sadd.s32 1, %s9
  $region7: #{hyper_analysis_ex.4} parent=0 // loop_footer_branch
    %8 = sbr.rel target = $region3
  $region8: #{hyper_analysis_ex.4} parent=0 // loop_exit
    _

// kernel: hyper_analysis_ex.3
$region0: #{hyper_analysis_ex.3}
  #allocation0 [shape = 'u32[]', space=smem, size = 0x4, offset = 0x4, fixed_abs, tag = 'smem constant byte address 0x4 - core index']
  #allocation1 [shape = 'u32[144,128]{1,0:T(1,128)}', space=vmem, size = 0x12000, scoped, tag = 'internal scratch']
  %s0 = inlined_call_operand.vmem [shape: bf16[2,18,18,4], index: 0, kind: input, shape index: {}]
  %s1 = inlined_call_operand.vmem [shape: bf16[9,4,128], index: 1, kind: input, shape index: {}]
  %s2 = inlined_call_operand.vmem [shape: f32[1,128], index: 2, kind: input, shape index: {}]
  %s3 = inlined_call_operand.vmem [shape: bf16[2,16,16,128], index: 3, kind: output, shape index: {}]
  %s4 = sld [smem:[#allocation0]]
  $region45: #{hyper_analysis_ex.3} parent=0
    _
  %s6 = ssub.s32 1, %s4
  %s7 = scalar_select 0, %s6, %s4
  loop: start=0, step=1, limit=6
  $region2: #{hyper_analysis_ex.3} parent=0 // loop_pre_header
    _
  $region3: #{hyper_analysis_ex.3} parent=0 // loop_header
    %s9 = sphi 0, %s13
    %p10 = scmp.ge.s32.totalorder %s9, 6
    %s16 = sphi 0, %s28
    %s17 = sphi 0, %s24
    %s18 = sphi 0, %s16
    %s19 = sphi 0, %s17
    %s20 = sphi 0, %s18
    %s21 = sphi 0, %s19
    %s31 = sphi 0, %s33
    %s34 = sphi 0, %s31
    %s35 = sphi 0, %s34
    %s51 = sphi 0, %s35
    %s55 = sphi 0, %s55
    %s57 = sphi 0, %s55
    %s58 = sphi 0, %s57
    %s72 = sphi 0, %s58
    %s76 = sphi 0, %s76
    %s78 = sphi 0, %s76
    %s79 = sphi 0, %s78
    %s93 = sphi 0, %s79
    %s101 = sphi 0, %s103
    %s104 = sphi 0, %s101
    %s105 = sphi 0, %s104
    %s121 = sphi 0, %s105
  $region4: #{hyper_analysis_ex.3} parent=0 // loop_header_branch
    %12 = sbr.rel (%p10) target = $region8
  $region5: #{hyper_analysis_ex.3} parent=0 // loop_body
    %s14 = ssub.s32 %s9, 1
    %s15 = ssub.s32 %s9, 2
    %s22 = sadd.s32 1, %s17
    %p23 = scmp.ge.s32.totalorder %s22, 2
    %s24 = scalar_select %p23, 0, %s22
    %s25 = sadd.s32 1, %s16
    %s26 = scalar_select %p23, %s25, %s16
    %p27 = scmp.ge.s32.totalorder %s26, 2
    %s28 = scalar_select %p27, 0, %s26
    %s29 = ssub.s32 %s16, %s28
    %p30 = scmp.eq.s32.totalorder %s29, 0
    %s32 = sadd.s32 %s31, 1
    %s33 = scalar_select %p30, %s31, %s32
    %p36 = pneg %p30
    %p37 = scmp.eq.s32.totalorder %s9, 3
    %p38 = por %p36, %p37
    %p39 = scmp.ne.s32.totalorder %s31, %s34
    %p40 = scmp.eq.s32.totalorder %s9, 0
    %p41 = por %p39, %p40
    %p42 = scmp.ne.s32.totalorder %s31, %s34
    %p43 = scmp.eq.s32.totalorder %s14, 3
    %p44 = por %p42, %p43
    %p45 = scmp.ne.s32.totalorder %s34, %s35
    %p46 = scmp.eq.s32.totalorder %s14, 0
    %p47 = por %p45, %p46
    %p48 = scmp.ne.s32.totalorder %s34, %s35
    %p49 = scmp.eq.s32.totalorder %s15, 3
    %p50 = por %p48, %p49
    %p52 = scmp.ne.s32.totalorder %s35, %s51
    %p53 = scmp.eq.s32.totalorder %s15, 0
    %p54 = por %p52, %p53
    %s56 = sadd.s32 %s55, 1
    %p59 = scmp.eq.s32.totalorder %s9, 3
    %p60 = scmp.ne.s32.totalorder %s55, %s57
    %p61 = scmp.eq.s32.totalorder %s9, 0
    %p62 = por %p60, %p61
    %p63 = scmp.ne.s32.totalorder %s55, %s57
    %p64 = scmp.eq.s32.totalorder %s14, 3
    %p65 = por %p63, %p64
    %p66 = scmp.ne.s32.totalorder %s57, %s58
    %p67 = scmp.eq.s32.totalorder %s14, 0
    %p68 = por %p66, %p67
    %p69 = scmp.ne.s32.totalorder %s57, %s58
    %p70 = scmp.eq.s32.totalorder %s15, 3
    %p71 = por %p69, %p70
    %p73 = scmp.ne.s32.totalorder %s58, %s72
    %p74 = scmp.eq.s32.totalorder %s15, 0
    %p75 = por %p73, %p74
    %s77 = sadd.s32 %s76, 1
    %p80 = scmp.eq.s32.totalorder %s9, 3
    %p81 = scmp.ne.s32.totalorder %s76, %s78
    %p82 = scmp.eq.s32.totalorder %s9, 0
    %p83 = por %p81, %p82
    %p84 = scmp.ne.s32.totalorder %s76, %s78
    %p85 = scmp.eq.s32.totalorder %s14, 3
    %p86 = por %p84, %p85
    %p87 = scmp.ne.s32.totalorder %s78, %s79
    %p88 = scmp.eq.s32.totalorder %s14, 0
    %p89 = por %p87, %p88
    %p90 = scmp.ne.s32.totalorder %s78, %s79
    %p91 = scmp.eq.s32.totalorder %s15, 3
    %p92 = por %p90, %p91
    %p94 = scmp.ne.s32.totalorder %s79, %s93
    %p95 = scmp.eq.s32.totalorder %s15, 0
    %p96 = por %p94, %p95
    %s97 = ssub.s32 %s16, %s28
    %s98 = ssub.s32 %s17, %s24
    %s99 = sor.u32 %s97, %s98
    %p100 = scmp.eq.s32.totalorder %s99, 0
    %s102 = sadd.s32 %s101, 1
    %s103 = scalar_select %p100, %s101, %s102
    %p106 = pneg %p100
    %p107 = scmp.eq.s32.totalorder %s9, 3
    %p108 = por %p106, %p107
    %p109 = scmp.ne.s32.totalorder %s101, %s104
    %p110 = scmp.eq.s32.totalorder %s9, 0
    %p111 = por %p109, %p110
    %p112 = scmp.ne.s32.totalorder %s101, %s104
    %p113 = scmp.eq.s32.totalorder %s14, 3
    %p114 = por %p112, %p113
    %p115 = scmp.ne.s32.totalorder %s104, %s105
    %p116 = scmp.eq.s32.totalorder %s14, 0
    %p117 = por %p115, %p116
    %p118 = scmp.ne.s32.totalorder %s104, %s105
    %p119 = scmp.eq.s32.totalorder %s15, 3
    %p120 = por %p118, %p119
    %p122 = scmp.ne.s32.totalorder %s105, %s121
    %p123 = scmp.eq.s32.totalorder %s15, 0
    %p124 = por %p122, %p123
    %p125 = scmp.le.s32.totalorder 1, %s9
    %p126 = scmp.lt.s32.totalorder %s9, 5
    %p127 = pnand %p125, %p126
    %p128 = pneg %p127
    // Predicated region
    $region9: #{hyper_analysis_ex.3} parent=5 // pred_check
      _
    $region10: #{hyper_analysis_ex.3} parent=5 // pred_check_branch
      %130 = sbr.rel (%p127) target = $region12
    $region11: #{hyper_analysis_ex.3} parent=5 // pred_region
      %s131 = ssub.s32 %s9, 1
      // Predicated region
      $region13: #{hyper_analysis_ex.3} parent=11 // pred_check
        %p132 = pneg %p68
      $region14: #{hyper_analysis_ex.3} parent=11 // pred_check_branch
        %134 = sbr.rel (%p132) target = $region16
      $region15: #{hyper_analysis_ex.3} parent=11 // pred_region
        _
      $region16: #{hyper_analysis_ex.3} parent=11 // pred_fallthru
        _
      // Predicated region
      $region17: #{hyper_analysis_ex.3} parent=11 // pred_check
        %p135 = pneg %p89
      $region18: #{hyper_analysis_ex.3} parent=11 // pred_check_branch
        %137 = sbr.rel (%p135) target = $region20
      $region19: #{hyper_analysis_ex.3} parent=11 // pred_region
        _
      $region20: #{hyper_analysis_ex.3} parent=11 // pred_fallthru
        _
    $region12: #{hyper_analysis_ex.3} parent=5 // pred_fallthru
      _
    %p138 = scmp.lt.s32.totalorder %s9, 4
    // Predicated region
    $region21: #{hyper_analysis_ex.3} parent=5 // pred_check
      %p139 = pneg %p138
    $region22: #{hyper_analysis_ex.3} parent=5 // pred_check_branch
      %141 = sbr.rel (%p139) target = $region24
    $region23: #{hyper_analysis_ex.3} parent=5 // pred_region
      // Predicated region
      $region25: #{hyper_analysis_ex.3} parent=23 // pred_check
        %p142 = pneg %p41
      $region26: #{hyper_analysis_ex.3} parent=23 // pred_check_branch
        %144 = sbr.rel (%p142) target = $region28
      $region27: #{hyper_analysis_ex.3} parent=23 // pred_region
        %p145 = scmp.lt.s32.totalorder %s16, 1
        %s146 = scalar_select %p145, %s16, 1
        %s147 = smul.addr %s146, 54
        %s148 = smul.addr %s147, 4
        %s149 = scalar_lea.vmem %s0, %s148
      $region28: #{hyper_analysis_ex.3} parent=23 // pred_fallthru
        _
    $region24: #{hyper_analysis_ex.3} parent=5 // pred_fallthru
      _
    %p150 = scmp.le.s32.totalorder 1, %s9
    %p151 = scmp.lt.s32.totalorder %s9, 5
    %p152 = pnand %p150, %p151
    %p153 = pneg %p152
    // Predicated region
    $region29: #{hyper_analysis_ex.3} parent=5 // pred_check
      _
    $region30: #{hyper_analysis_ex.3} parent=5 // pred_check_branch
      %155 = sbr.rel (%p152) target = $region32
    $region31: #{hyper_analysis_ex.3} parent=5 // pred_region
      %s156 = ssub.s32 %s9, 1
      %p157 = scmp.lt.s32.totalorder %s18, 1
      %s158 = scalar_select %p157, %s18, 1
      %s159 = smul.addr %s158, 54
      %s160 = smul.addr %s159, 4
      %s161 = scalar_lea.vmem %s0, %s160
      %p162 = pneg %p47
      %p163 = pneg %p44
      %p164 = pneg %p68
      %p165 = pneg %p65
      %p166 = pneg %p89
      %p167 = pneg %p86
      %p168 = pneg %p117
      %p169 = pneg %p114
      %s170 = smul.u32 8, %s19
      %p171 = scmp.lt.s32.totalorder %s18, 1
      %s172 = scalar_select %p171, %s18, 1
      %p173 = scmp.lt.s32.totalorder %s170, 15
      %s174 = scalar_select %p173, %s170, 15
      %s175 = smul.addr %s174, 2
      %s176 = smul.addr %s172, 32
      %s177 = sadd.s32 %s175, %s176
      %s178 = smul.addr %s177, 4
      %s179 = scalar_lea.vmem %s3, %s178
      %p180 = scmp.lt.s32.totalorder %s18, 1
      %s181 = scalar_select %p180, %s18, 1
      %s182 = smul.addr %s181, 54
      %s183 = smul.addr %s182, 4
      %s184 = scalar_lea.vmem %s0, %s183
      %s185 = smul.u32 8, %s19
      %p186 = scmp.lt.s32.totalorder %s18, 1
      %s187 = scalar_select %p186, %s18, 1
      %p188 = scmp.lt.s32.totalorder %s185, 15
      %s189 = scalar_select %p188, %s185, 15
      %s190 = smul.addr %s189, 2
      %s191 = smul.addr %s187, 32
      %s192 = sadd.s32 %s190, %s191
      %s193 = smul.addr %s192, 4
      %s194 = scalar_lea.vmem %s3, %s193
      %s195 = smul.u32 8, %s19
      %s197 = smul.u32 %s19, 8
      %s198 = smul.u32 %s197, 3
      %s199 = smul.addr %s198, 4
      %s200 = scalar_lea.vmem %s184, %s199
      %v201 = vld [vmem:[%s200] sm:$0xf]
      %v202 = vld [vmem:[%s200 + $0x4] sm:$0xf]
      %v203 = vld [vmem:[%s200 + $0xc] sm:$0xf]
      %v204 = vld [vmem:[%s200 + $0x10] sm:$0xf]
      %v205 = vld [vmem:[%s200 + $0x18] sm:$0xf]
      %v206 = vld [vmem:[%s200 + $0x1c] sm:$0xf]
      %v207 = vld [vmem:[%s200 + $0x24] sm:$0xf]
      %v208 = vld [vmem:[%s200 + $0x28] sm:$0xf]
      %v209 = vld [vmem:[%s200 + $0x30] sm:$0xf]
      %v210 = vld [vmem:[%s200 + $0x34] sm:$0xf]
      %v211 = vld [vmem:[%s200 + $0x3c] sm:$0xf]
      %v212 = vld [vmem:[%s200 + $0x40] sm:$0xf]
      %v213 = vld [vmem:[%s200 + $0x48] sm:$0xf]
      %v214 = vld [vmem:[%s200 + $0x4c] sm:$0xf]
      %v215 = vld [vmem:[%s200 + $0x54] sm:$0xf]
      %v216 = vld [vmem:[%s200 + $0x58] sm:$0xf]
      %v217 = vld [vmem:[%s1] sm:$0x3]
      %v218 = vld [vmem:[%s200 + $0x8] sm:$0x1]
      %v219 = vld [vmem:[%s200 + $0x14] sm:$0x1]
      %v220 = vld [vmem:[%s200 + $0x20] sm:$0x1]
      %v221 = vld [vmem:[%s200 + $0x2c] sm:$0x1]
      %v222 = vld [vmem:[%s200 + $0x38] sm:$0x1]
      %v223 = vld [vmem:[%s200 + $0x44] sm:$0x1]
      %v224 = vld [vmem:[%s200 + $0x50] sm:$0x1]
      %v225 = vld [vmem:[%s200 + $0x5c] sm:$0x1]
      %vm226 = vsmask.f32 3328
      %vm227 = vsmask.f32 7440
      %vm228 = vmor %vm226, %vm227
      %v230 = vshrl.u32 %v201, 16
      %v232 = vrot.slane %v230, 4
      %v233 = vshll.u32 %v201, 16
      %v235 = vrot.slane %v233, 5
      %v236 = vor.u32 %v232, %v235
      %v237 = vrot.slane %v236, 4
      %v239 = vshll.u32 %v202, 16
      %v241 = vrot.slane %v239, 5
      %v242 = vsel %vm228, %v237, %v241
      %v243 = vshrl.u32 %v202, 16
      %v245 = vrot.slane %v243, 4
      %v246 = vor.u32 %v245, %v241
      %v247 = vrot.slane %v246, 4
      %v249 = vshll.u32 %v218, 16
      %v251 = vrot.slane %v249, 5
      %v252 = vsel %vm228, %v247, %v251
      %v254 = vshrl.u32 %v203, 16
      %v256 = vrot.slane %v254, 4
      %v257 = vshll.u32 %v203, 16
      %v259 = vrot.slane %v257, 5
      %v260 = vor.u32 %v256, %v259
      %v261 = vrot.slane %v260, 4
      %v263 = vshll.u32 %v204, 16
      %v265 = vrot.slane %v263, 5
      %v266 = vsel %vm228, %v261, %v265
      %v267 = vshrl.u32 %v204, 16
      %v269 = vrot.slane %v267, 4
      %v270 = vor.u32 %v269, %v265
      %v271 = vrot.slane %v270, 4
      %v273 = vshll.u32 %v219, 16
      %v275 = vrot.slane %v273, 5
      %v276 = vsel %vm228, %v271, %v275
      %v278 = vshrl.u32 %v205, 16
      %v280 = vrot.slane %v278, 4
      %v281 = vshll.u32 %v205, 16
      %v283 = vrot.slane %v281, 5
      %v284 = vor.u32 %v280, %v283
      %v285 = vrot.slane %v284, 4
      %v287 = vshll.u32 %v206, 16
      %v289 = vrot.slane %v287, 5
      %v290 = vsel %vm228, %v285, %v289
      %v291 = vshrl.u32 %v206, 16
      %v293 = vrot.slane %v291, 4
      %v294 = vor.u32 %v293, %v289
      %v295 = vrot.slane %v294, 4
      %v297 = vshll.u32 %v220, 16
      %v299 = vrot.slane %v297, 5
      %v300 = vsel %vm228, %v295, %v299
      %v302 = vshrl.u32 %v207, 16
      %v304 = vrot.slane %v302, 4
      %v305 = vshll.u32 %v207, 16
      %v307 = vrot.slane %v305, 5
      %v308 = vor.u32 %v304, %v307
      %v309 = vrot.slane %v308, 4
      %v311 = vshll.u32 %v208, 16
      %v313 = vrot.slane %v311, 5
      %v314 = vsel %vm228, %v309, %v313
      %v315 = vshrl.u32 %v208, 16
      %v317 = vrot.slane %v315, 4
      %v318 = vor.u32 %v317, %v313
      %v319 = vrot.slane %v318, 4
      %v321 = vshll.u32 %v221, 16
      %v323 = vrot.slane %v321, 5
      %v324 = vsel %vm228, %v319, %v323
      %v326 = vshrl.u32 %v209, 16
      %v328 = vrot.slane %v326, 4
      %v329 = vshll.u32 %v209, 16
      %v331 = vrot.slane %v329, 5
      %v332 = vor.u32 %v328, %v331
      %v333 = vrot.slane %v332, 4
      %v335 = vshll.u32 %v210, 16
      %v337 = vrot.slane %v335, 5
      %v338 = vsel %vm228, %v333, %v337
      %v339 = vshrl.u32 %v210, 16
      %v341 = vrot.slane %v339, 4
      %v342 = vor.u32 %v341, %v337
      %v343 = vrot.slane %v342, 4
      %v345 = vshll.u32 %v222, 16
      %v347 = vrot.slane %v345, 5
      %v348 = vsel %vm228, %v343, %v347
      %v350 = vshrl.u32 %v211, 16
      %v352 = vrot.slane %v350, 4
      %v353 = vshll.u32 %v211, 16
      %v355 = vrot.slane %v353, 5
      %v356 = vor.u32 %v352, %v355
      %v357 = vrot.slane %v356, 4
      %v359 = vshll.u32 %v212, 16
      %v361 = vrot.slane %v359, 5
      %v362 = vsel %vm228, %v357, %v361
      %v363 = vshrl.u32 %v212, 16
      %v365 = vrot.slane %v363, 4
      %v366 = vor.u32 %v365, %v361
      %v367 = vrot.slane %v366, 4
      %v369 = vshll.u32 %v223, 16
      %v371 = vrot.slane %v369, 5
      %v372 = vsel %vm228, %v367, %v371
      %v374 = vshrl.u32 %v213, 16
      %v376 = vrot.slane %v374, 4
      %v377 = vshll.u32 %v213, 16
      %v379 = vrot.slane %v377, 5
      %v380 = vor.u32 %v376, %v379
      %v381 = vrot.slane %v380, 4
      %v383 = vshll.u32 %v214, 16
      %v385 = vrot.slane %v383, 5
      %v386 = vsel %vm228, %v381, %v385
      %v387 = vshrl.u32 %v214, 16
      %v389 = vrot.slane %v387, 4
      %v390 = vor.u32 %v389, %v385
      %v391 = vrot.slane %v390, 4
      %v393 = vshll.u32 %v224, 16
      %v395 = vrot.slane %v393, 5
      %v396 = vsel %vm228, %v391, %v395
      %v398 = vshrl.u32 %v215, 16
      %v400 = vrot.slane %v398, 4
      %v401 = vshll.u32 %v215, 16
      %v403 = vrot.slane %v401, 5
      %v404 = vor.u32 %v400, %v403
      %v405 = vrot.slane %v404, 4
      %v407 = vshll.u32 %v216, 16
      %v409 = vrot.slane %v407, 5
      %v410 = vsel %vm228, %v405, %v409
      %v411 = vshrl.u32 %v216, 16
      %v413 = vrot.slane %v411, 4
      %v414 = vor.u32 %v413, %v409
      %v415 = vrot.slane %v414, 4
      %v417 = vshll.u32 %v225, 16
      %v419 = vrot.slane %v417, 5
      %v420 = vsel %vm228, %v415, %v419
      %s421 = scalar_lea.vmem %s1, 2
      %v422 = vld [vmem:[%s421] sm:$0x3]
      %v423 = vunpack.c.l.b16 %v242
      %v424 = vunpack.c.l.b16 %v252
      %v425 = vunpack.c.l.b16 %v266
      %v426 = vunpack.c.l.b16 %v276
      %v427 = vunpack.c.l.b16 %v290
      %v428 = vunpack.c.l.b16 %v300
      %v429 = vunpack.c.l.b16 %v314
      %v430 = vunpack.c.l.b16 %v324
      %v431 = vunpack.c.l.b16 %v338
      %v432 = vunpack.c.l.b16 %v348
      %v433 = vunpack.c.l.b16 %v362
      %v434 = vunpack.c.l.b16 %v372
      %v435 = vunpack.c.l.b16 %v386
      %v436 = vunpack.c.l.b16 %v396
      %v437 = vunpack.c.l.b16 %v410
      %v438 = vunpack.c.l.b16 %v420
      %v439 = vpack.c.b16 %v424, %v423
      %v440 = vpack.c.b16 %v426, %v425
      %v441 = vpack.c.b16 %v428, %v427
      %v442 = vpack.c.b16 %v430, %v429
      %v443 = vpack.c.b16 %v432, %v431
      %v444 = vpack.c.b16 %v434, %v433
      %v445 = vpack.c.b16 %v436, %v435
      %v446 = vpack.c.b16 %v438, %v437
      %vm447 = vcmask 31744
      %v449 = vsel %vm447, %v439, 0
      %v452 = vsel %vm447, %v440, 0
      %v455 = vsel %vm447, %v441, 0
      %v458 = vsel %vm447, %v442, 0
      %v461 = vsel %vm447, %v443, 0
      %v464 = vsel %vm447, %v444, 0
      %v467 = vsel %vm447, %v445, 0
      %v470 = vsel %vm447, %v446, 0
      %vm472 = vcmask 1041408
      %v474 = vsel %vm472, %v422, 0
      %476 = vmatprep.subr.bf16.mxu0 0
      %477 = vmatpush1.bf16.msra.mxu0 0
      %478 = vmatprep.subr.bf16.mxu0 0
      %479 = vmatpush1.bf16.msra.mxu0 0
      %480 = vmatprep.subr.bf16.mxu0 0
      %481 = vmatpush1.bf16.msra.mxu0 0
      %482 = vmatprep.subr.bf16.mxu0 0
      %483 = vmatpush1.bf16.msra.mxu0 0
      %484 = vmatprep.subr.bf16.mxu0 0
      %485 = vmatpush1.bf16.msra.mxu0 0
      %486 = vmatprep.subr.bf16.mxu0 0
      %487 = vmatpush1.bf16.msra.mxu0 0
      %488 = vmatprep.subr.bf16.mxu0 0
      %489 = vmatpush1.bf16.msra.mxu0 0
      %490 = vmatprep.subr.bf16.mxu0 0
      %491 = vmatpush1.bf16.msra.mxu0 %v474
      %492 = vmatprep.subr.bf16.mxu0 0
      %493 = vmatpush2.bf16.msra.mxu0 0
      %494 = vmatprep.subr.bf16.mxu0 0
      %495 = vmatpush2.bf16.msra.mxu0 0
      %496 = vmatprep.subr.bf16.mxu0 0
      %497 = vmatpush2.bf16.msra.mxu0 0
      %498 = vmatprep.subr.bf16.mxu0 0
      %499 = vmatpush2.bf16.msra.mxu0 0
      %500 = vmatprep.subr.bf16.mxu0 0
      %501 = vmatpush2.bf16.msra.mxu0 0
      %502 = vmatprep.subr.bf16.mxu0 0
      %503 = vmatpush2.bf16.msra.mxu0 0
      %504 = vmatprep.subr.bf16.mxu0 0
      %505 = vmatpush2.bf16.msra.mxu0 0
      %506 = vmatprep.subr.bf16.mxu0 0
      %507 = vmatpush2.bf16.msra.mxu0 0
      %508 = vmatprep.mubr.bf16.mxu0 0
      %509 = vmatmul.mubr.bf16.gmra.mxu0 %v449
      %v510 = vpop.f32.mrf.mxu0
      %v511 = vadd.f32 0.0, %v510
      %v512 = vpop.f32.mrf.mxu0
      %v513 = vpop.f32.mrf.mxu0
      %v514 = vadd.f32 0.0, %v513
      %v515 = vpop.f32.mrf.mxu0
      %516 = vmatprep.mubr.bf16.mxu0 0
      %517 = vmatmul.mubr.bf16.gmra.mxu0 %v452
      %v518 = vpop.f32.mrf.mxu0
      %v519 = vadd.f32 0.0, %v518
      %v520 = vpop.f32.mrf.mxu0
      %v521 = vpop.f32.mrf.mxu0
      %v522 = vadd.f32 0.0, %v521
      %v523 = vpop.f32.mrf.mxu0
      %524 = vmatprep.mubr.bf16.mxu0 0
      %525 = vmatmul.mubr.bf16.gmra.mxu0 %v455
      %v526 = vpop.f32.mrf.mxu0
      %v527 = vadd.f32 0.0, %v526
      %v528 = vpop.f32.mrf.mxu0
      %v529 = vpop.f32.mrf.mxu0
      %v530 = vadd.f32 0.0, %v529
      %v531 = vpop.f32.mrf.mxu0
      %532 = vmatprep.mubr.bf16.mxu0 0
      %533 = vmatmul.mubr.bf16.gmra.mxu0 %v458
      %v534 = vpop.f32.mrf.mxu0
      %v535 = vadd.f32 0.0, %v534
      %v536 = vpop.f32.mrf.mxu0
      %v537 = vpop.f32.mrf.mxu0
      %v538 = vadd.f32 0.0, %v537
      %v539 = vpop.f32.mrf.mxu0
      %540 = vmatprep.mubr.bf16.mxu0 0
      %541 = vmatmul.mubr.bf16.gmra.mxu0 %v461
      %v542 = vpop.f32.mrf.mxu0
      %v543 = vadd.f32 0.0, %v542
      %v544 = vpop.f32.mrf.mxu0
      %v545 = vpop.f32.mrf.mxu0
      %v546 = vadd.f32 0.0, %v545
      %v547 = vpop.f32.mrf.mxu0
      %548 = vmatprep.mubr.bf16.mxu0 0
      %549 = vmatmul.mubr.bf16.gmra.mxu0 %v464
      %v550 = vpop.f32.mrf.mxu0
      %v551 = vadd.f32 0.0, %v550
      %v552 = vpop.f32.mrf.mxu0
      %v553 = vpop.f32.mrf.mxu0
      %v554 = vadd.f32 0.0, %v553
      %v555 = vpop.f32.mrf.mxu0
      %556 = vmatprep.mubr.bf16.mxu0 0
      %557 = vmatmul.mubr.bf16.gmra.mxu0 %v467
      %v558 = vpop.f32.mrf.mxu0
      %v559 = vadd.f32 0.0, %v558
      %v560 = vpop.f32.mrf.mxu0
      %v561 = vpop.f32.mrf.mxu0
      %v562 = vadd.f32 0.0, %v561
      %v563 = vpop.f32.mrf.mxu0
      %564 = vmatprep.mubr.bf16.mxu0 0
      %565 = vmatmul.mubr.bf16.gmra.mxu0 %v470
      %v566 = vpop.f32.mrf.mxu0
      %v567 = vadd.f32 0.0, %v566
      %v568 = vpop.f32.mrf.mxu0
      %v569 = vpop.f32.mrf.mxu0
      %v570 = vadd.f32 0.0, %v569
      %v571 = vpop.f32.mrf.mxu0
      %572 = vdwg.mxu0
      %v589 = vunpack.c.l.b16 %v201
      %v590 = vunpack.c.l.b16 %v202
      %v591 = vunpack.c.l.b16 %v203
      %v592 = vunpack.c.l.b16 %v204
      %v593 = vunpack.c.l.b16 %v205
      %v594 = vunpack.c.l.b16 %v206
      %v595 = vunpack.c.l.b16 %v207
      %v596 = vunpack.c.l.b16 %v208
      %v597 = vunpack.c.l.b16 %v209
      %v598 = vunpack.c.l.b16 %v210
      %v599 = vunpack.c.l.b16 %v211
      %v600 = vunpack.c.l.b16 %v212
      %v601 = vunpack.c.l.b16 %v213
      %v602 = vunpack.c.l.b16 %v214
      %v603 = vunpack.c.l.b16 %v215
      %v604 = vunpack.c.l.b16 %v216
      %v605 = vpack.c.b16 %v590, %v589
      %v606 = vpack.c.b16 %v592, %v591
      %v607 = vpack.c.b16 %v594, %v593
      %v608 = vpack.c.b16 %v596, %v595
      %v609 = vpack.c.b16 %v598, %v597
      %v610 = vpack.c.b16 %v600, %v599
      %v611 = vpack.c.b16 %v602, %v601
      %v612 = vpack.c.b16 %v604, %v603
      %v614 = vsel %vm447, %v605, 0
      %v617 = vsel %vm447, %v606, 0
      %v620 = vsel %vm447, %v607, 0
      %v623 = vsel %vm447, %v608, 0
      %v626 = vsel %vm447, %v609, 0
      %v629 = vsel %vm447, %v610, 0
      %v632 = vsel %vm447, %v611, 0
      %v635 = vsel %vm447, %v612, 0
      %v638 = vsel %vm472, %v217, 0
      %640 = vmatprep.subr.bf16.mxu0 0
      %641 = vmatpush1.bf16.msra.mxu0 0
      %642 = vmatprep.subr.bf16.mxu0 0
      %643 = vmatpush1.bf16.msra.mxu0 0
      %644 = vmatprep.subr.bf16.mxu0 0
      %645 = vmatpush1.bf16.msra.mxu0 0
      %646 = vmatprep.subr.bf16.mxu0 0
      %647 = vmatpush1.bf16.msra.mxu0 0
      %648 = vmatprep.subr.bf16.mxu0 0
      %649 = vmatpush1.bf16.msra.mxu0 0
      %650 = vmatprep.subr.bf16.mxu0 0
      %651 = vmatpush1.bf16.msra.mxu0 0
      %652 = vmatprep.subr.bf16.mxu0 0
      %653 = vmatpush1.bf16.msra.mxu0 0
      %654 = vmatprep.subr.bf16.mxu0 0
      %655 = vmatpush1.bf16.msra.mxu0 %v638
      %656 = vmatprep.subr.bf16.mxu0 0
      %657 = vmatpush2.bf16.msra.mxu0 0
      %658 = vmatprep.subr.bf16.mxu0 0
      %659 = vmatpush2.bf16.msra.mxu0 0
      %660 = vmatprep.subr.bf16.mxu0 0
      %661 = vmatpush2.bf16.msra.mxu0 0
      %662 = vmatprep.subr.bf16.mxu0 0
      %663 = vmatpush2.bf16.msra.mxu0 0
      %664 = vmatprep.subr.bf16.mxu0 0
      %665 = vmatpush2.bf16.msra.mxu0 0
      %666 = vmatprep.subr.bf16.mxu0 0
      %667 = vmatpush2.bf16.msra.mxu0 0
      %668 = vmatprep.subr.bf16.mxu0 0
      %669 = vmatpush2.bf16.msra.mxu0 0
      %670 = vmatprep.subr.bf16.mxu0 0
      %671 = vmatpush2.bf16.msra.mxu0 0
      %672 = vmatprep.mubr.bf16.mxu0 0
      %673 = vmatmul.mubr.bf16.gmra.mxu0 %v614
      %v674 = vpop.f32.mrf.mxu0
      %v675 = vadd.f32 %v511, %v674
      %v676 = vpop.f32.mrf.mxu0
      %v677 = vpop.f32.mrf.mxu0
      %v678 = vadd.f32 %v514, %v677
      %v679 = vpop.f32.mrf.mxu0
      %680 = vmatprep.mubr.bf16.mxu0 0
      %681 = vmatmul.mubr.bf16.gmra.mxu0 %v617
      %v682 = vpop.f32.mrf.mxu0
      %v683 = vadd.f32 %v519, %v682
      %v684 = vpop.f32.mrf.mxu0
      %v685 = vpop.f32.mrf.mxu0
      %v686 = vadd.f32 %v522, %v685
      %v687 = vpop.f32.mrf.mxu0
      %688 = vmatprep.mubr.bf16.mxu0 0
      %689 = vmatmul.mubr.bf16.gmra.mxu0 %v620
      %v690 = vpop.f32.mrf.mxu0
      %v691 = vadd.f32 %v527, %v690
      %v692 = vpop.f32.mrf.mxu0
      %v693 = vpop.f32.mrf.mxu0
      %v694 = vadd.f32 %v530, %v693
      %v695 = vpop.f32.mrf.mxu0
      %696 = vmatprep.mubr.bf16.mxu0 0
      %697 = vmatmul.mubr.bf16.gmra.mxu0 %v623
      %v698 = vpop.f32.mrf.mxu0
      %v699 = vadd.f32 %v535, %v698
      %v700 = vpop.f32.mrf.mxu0
      %v701 = vpop.f32.mrf.mxu0
      %v702 = vadd.f32 %v538, %v701
      %v703 = vpop.f32.mrf.mxu0
      %704 = vmatprep.mubr.bf16.mxu0 0
      %705 = vmatmul.mubr.bf16.gmra.mxu0 %v626
      %v706 = vpop.f32.mrf.mxu0
      %v707 = vadd.f32 %v543, %v706
      %v708 = vpop.f32.mrf.mxu0
      %v709 = vpop.f32.mrf.mxu0
      %v710 = vadd.f32 %v546, %v709
      %v711 = vpop.f32.mrf.mxu0
      %712 = vmatprep.mubr.bf16.mxu0 0
      %713 = vmatmul.mubr.bf16.gmra.mxu0 %v629
      %v714 = vpop.f32.mrf.mxu0
      %v715 = vadd.f32 %v551, %v714
      %v716 = vpop.f32.mrf.mxu0
      %v717 = vpop.f32.mrf.mxu0
      %v718 = vadd.f32 %v554, %v717
      %v719 = vpop.f32.mrf.mxu0
      %720 = vmatprep.mubr.bf16.mxu0 0
      %721 = vmatmul.mubr.bf16.gmra.mxu0 %v632
      %v722 = vpop.f32.mrf.mxu0
      %v723 = vadd.f32 %v559, %v722
      %v724 = vpop.f32.mrf.mxu0
      %v725 = vpop.f32.mrf.mxu0
      %v726 = vadd.f32 %v562, %v725
      %v727 = vpop.f32.mrf.mxu0
      %728 = vmatprep.mubr.bf16.mxu0 0
      %729 = vmatmul.mubr.bf16.gmra.mxu0 %v635
      %v730 = vpop.f32.mrf.mxu0
      %v731 = vadd.f32 %v567, %v730
      %v732 = vpop.f32.mrf.mxu0
      %v733 = vpop.f32.mrf.mxu0
      %v734 = vadd.f32 %v570, %v733
      %v735 = vpop.f32.mrf.mxu0
      %736 = vdwg.mxu0
      %v737 = vld [vmem:[%s200] sm:$0xe]
      %v738 = vld [vmem:[%s200 + $0xc] sm:$0xe]
      %v739 = vld [vmem:[%s200 + $0x18] sm:$0xe]
      %v740 = vld [vmem:[%s200 + $0x24] sm:$0xe]
      %v741 = vld [vmem:[%s200 + $0x30] sm:$0xe]
      %v742 = vld [vmem:[%s200 + $0x3c] sm:$0xe]
      %v743 = vld [vmem:[%s200 + $0x48] sm:$0xe]
      %v744 = vld [vmem:[%s200 + $0x54] sm:$0xe]
      %vm761 = vcmask 1042432
      %vm762 = vcmask 1046532
      %vm763 = vmor %vm761, %vm762
      %v764 = vrot.slane %v737, 5
      %v765 = vrot.slane %v764, 4
      %v766 = vrot.slane %v202, 5
      %v767 = vsel %vm763, %v765, %v766
      %v768 = vrot.slane %v766, 4
      %v769 = vrot.slane %v218, 5
      %v770 = vsel %vm763, %v768, %v769
      %v771 = vrot.slane %v738, 5
      %v772 = vrot.slane %v771, 4
      %v773 = vrot.slane %v204, 5
      %v774 = vsel %vm763, %v772, %v773
      %v775 = vrot.slane %v773, 4
      %v776 = vrot.slane %v219, 5
      %v777 = vsel %vm763, %v775, %v776
      %v778 = vrot.slane %v739, 5
      %v779 = vrot.slane %v778, 4
      %v780 = vrot.slane %v206, 5
      %v781 = vsel %vm763, %v779, %v780
      %v782 = vrot.slane %v780, 4
      %v783 = vrot.slane %v220, 5
      %v784 = vsel %vm763, %v782, %v783
      %v785 = vrot.slane %v740, 5
      %v786 = vrot.slane %v785, 4
      %v787 = vrot.slane %v208, 5
      %v788 = vsel %vm763, %v786, %v787
      %v789 = vrot.slane %v787, 4
      %v790 = vrot.slane %v221, 5
      %v791 = vsel %vm763, %v789, %v790
      %v792 = vrot.slane %v741, 5
      %v793 = vrot.slane %v792, 4
      %v794 = vrot.slane %v210, 5
      %v795 = vsel %vm763, %v793, %v794
      %v796 = vrot.slane %v794, 4
      %v797 = vrot.slane %v222, 5
      %v798 = vsel %vm763, %v796, %v797
      %v799 = vrot.slane %v742, 5
      %v800 = vrot.slane %v799, 4
      %v801 = vrot.slane %v212, 5
      %v802 = vsel %vm763, %v800, %v801
      %v803 = vrot.slane %v801, 4
      %v804 = vrot.slane %v223, 5
      %v805 = vsel %vm763, %v803, %v804
      %v806 = vrot.slane %v743, 5
      %v807 = vrot.slane %v806, 4
      %v808 = vrot.slane %v214, 5
      %v809 = vsel %vm763, %v807, %v808
      %v810 = vrot.slane %v808, 4
      %v811 = vrot.slane %v224, 5
      %v812 = vsel %vm763, %v810, %v811
      %v813 = vrot.slane %v744, 5
      %v814 = vrot.slane %v813, 4
      %v815 = vrot.slane %v216, 5
      %v816 = vsel %vm763, %v814, %v815
      %v817 = vrot.slane %v815, 4
      %v818 = vrot.slane %v225, 5
      %v819 = vsel %vm763, %v817, %v818
      %s820 = scalar_lea.vmem %s1, 4
      %v821 = vld [vmem:[%s820] sm:$0x3]
      %v822 = vunpack.c.l.b16 %v767
      %v823 = vunpack.c.l.b16 %v770
      %v824 = vunpack.c.l.b16 %v774
      %v825 = vunpack.c.l.b16 %v777
      %v826 = vunpack.c.l.b16 %v781
      %v827 = vunpack.c.l.b16 %v784
      %v828 = vunpack.c.l.b16 %v788
      %v829 = vunpack.c.l.b16 %v791
      %v830 = vunpack.c.l.b16 %v795
      %v831 = vunpack.c.l.b16 %v798
      %v832 = vunpack.c.l.b16 %v802
      %v833 = vunpack.c.l.b16 %v805
      %v834 = vunpack.c.l.b16 %v809
      %v835 = vunpack.c.l.b16 %v812
      %v836 = vunpack.c.l.b16 %v816
      %v837 = vunpack.c.l.b16 %v819
      %v838 = vpack.c.b16 %v823, %v822
      %v839 = vpack.c.b16 %v825, %v824
      %v840 = vpack.c.b16 %v827, %v826
      %v841 = vpack.c.b16 %v829, %v828
      %v842 = vpack.c.b16 %v831, %v830
      %v843 = vpack.c.b16 %v833, %v832
      %v844 = vpack.c.b16 %v835, %v834
      %v845 = vpack.c.b16 %v837, %v836
      %v847 = vsel %vm447, %v838, 0
      %v850 = vsel %vm447, %v839, 0
      %v853 = vsel %vm447, %v840, 0
      %v856 = vsel %vm447, %v841, 0
      %v859 = vsel %vm447, %v842, 0
      %v862 = vsel %vm447, %v843, 0
      %v865 = vsel %vm447, %v844, 0
      %v868 = vsel %vm447, %v845, 0
      %v871 = vsel %vm472, %v821, 0
      %873 = vmatprep.subr.bf16.mxu0 0
      %874 = vmatpush1.bf16.msra.mxu0 0
      %875 = vmatprep.subr.bf16.mxu0 0
      %876 = vmatpush1.bf16.msra.mxu0 0
      %877 = vmatprep.subr.bf16.mxu0 0
      %878 = vmatpush1.bf16.msra.mxu0 0
      %879 = vmatprep.subr.bf16.mxu0 0
      %880 = vmatpush1.bf16.msra.mxu0 0
      %881 = vmatprep.subr.bf16.mxu0 0
      %882 = vmatpush1.bf16.msra.mxu0 0
      %883 = vmatprep.subr.bf16.mxu0 0
      %884 = vmatpush1.bf16.msra.mxu0 0
      %885 = vmatprep.subr.bf16.mxu0 0
      %886 = vmatpush1.bf16.msra.mxu0 0
      %887 = vmatprep.subr.bf16.mxu0 0
      %888 = vmatpush1.bf16.msra.mxu0 %v871
      %889 = vmatprep.subr.bf16.mxu0 0
      %890 = vmatpush2.bf16.msra.mxu0 0
      %891 = vmatprep.subr.bf16.mxu0 0
      %892 = vmatpush2.bf16.msra.mxu0 0
      %893 = vmatprep.subr.bf16.mxu0 0
      %894 = vmatpush2.bf16.msra.mxu0 0
      %895 = vmatprep.subr.bf16.mxu0 0
      %896 = vmatpush2.bf16.msra.mxu0 0
      %897 = vmatprep.subr.bf16.mxu0 0
      %898 = vmatpush2.bf16.msra.mxu0 0
      %899 = vmatprep.subr.bf16.mxu0 0
      %900 = vmatpush2.bf16.msra.mxu0 0
      %901 = vmatprep.subr.bf16.mxu0 0
      %902 = vmatpush2.bf16.msra.mxu0 0
      %903 = vmatprep.subr.bf16.mxu0 0
      %904 = vmatpush2.bf16.msra.mxu0 0
      %905 = vmatprep.mubr.bf16.mxu0 0
      %906 = vmatmul.mubr.bf16.gmra.mxu0 %v847
      %v907 = vpop.f32.mrf.mxu0
      %v908 = vadd.f32 0.0, %v907
      %v909 = vpop.f32.mrf.mxu0
      %v910 = vpop.f32.mrf.mxu0
      %v911 = vadd.f32 0.0, %v910
      %v912 = vpop.f32.mrf.mxu0
      %913 = vmatprep.mubr.bf16.mxu0 0
      %914 = vmatmul.mubr.bf16.gmra.mxu0 %v850
      %v915 = vpop.f32.mrf.mxu0
      %v916 = vadd.f32 0.0, %v915
      %v917 = vpop.f32.mrf.mxu0
      %v918 = vpop.f32.mrf.mxu0
      %v919 = vadd.f32 0.0, %v918
      %v920 = vpop.f32.mrf.mxu0
      %921 = vmatprep.mubr.bf16.mxu0 0
      %922 = vmatmul.mubr.bf16.gmra.mxu0 %v853
      %v923 = vpop.f32.mrf.mxu0
      %v924 = vadd.f32 0.0, %v923
      %v925 = vpop.f32.mrf.mxu0
      %v926 = vpop.f32.mrf.mxu0
      %v927 = vadd.f32 0.0, %v926
      %v928 = vpop.f32.mrf.mxu0
      %929 = vmatprep.mubr.bf16.mxu0 0
      %930 = vmatmul.mubr.bf16.gmra.mxu0 %v856
      %v931 = vpop.f32.mrf.mxu0
      %v932 = vadd.f32 0.0, %v931
      %v933 = vpop.f32.mrf.mxu0
      %v934 = vpop.f32.mrf.mxu0
      %v935 = vadd.f32 0.0, %v934
      %v936 = vpop.f32.mrf.mxu0
      %937 = vmatprep.mubr.bf16.mxu0 0
      %938 = vmatmul.mubr.bf16.gmra.mxu0 %v859
      %v939 = vpop.f32.mrf.mxu0
      %v940 = vadd.f32 0.0, %v939
      %v941 = vpop.f32.mrf.mxu0
      %v942 = vpop.f32.mrf.mxu0
      %v943 = vadd.f32 0.0, %v942
      %v944 = vpop.f32.mrf.mxu0
      %945 = vmatprep.mubr.bf16.mxu0 0
      %946 = vmatmul.mubr.bf16.gmra.mxu0 %v862
      %v947 = vpop.f32.mrf.mxu0
      %v948 = vadd.f32 0.0, %v947
      %v949 = vpop.f32.mrf.mxu0
      %v950 = vpop.f32.mrf.mxu0
      %v951 = vadd.f32 0.0, %v950
      %v952 = vpop.f32.mrf.mxu0
      %953 = vmatprep.mubr.bf16.mxu0 0
      %954 = vmatmul.mubr.bf16.gmra.mxu0 %v865
      %v955 = vpop.f32.mrf.mxu0
      %v956 = vadd.f32 0.0, %v955
      %v957 = vpop.f32.mrf.mxu0
      %v958 = vpop.f32.mrf.mxu0
      %v959 = vadd.f32 0.0, %v958
      %v960 = vpop.f32.mrf.mxu0
      %961 = vmatprep.mubr.bf16.mxu0 0
      %962 = vmatmul.mubr.bf16.gmra.mxu0 %v868
      %v963 = vpop.f32.mrf.mxu0
      %v964 = vadd.f32 0.0, %v963
      %v965 = vpop.f32.mrf.mxu0
      %v966 = vpop.f32.mrf.mxu0
      %v967 = vadd.f32 0.0, %v966
      %v968 = vpop.f32.mrf.mxu0
      %969 = vdwg.mxu0
      %v970 = vadd.f32 %v675, %v908
      %v971 = vadd.f32 %v678, %v911
      %v972 = vadd.f32 %v683, %v916
      %v973 = vadd.f32 %v686, %v919
      %v974 = vadd.f32 %v691, %v924
      %v975 = vadd.f32 %v694, %v927
      %v976 = vadd.f32 %v699, %v932
      %v977 = vadd.f32 %v702, %v935
      %v978 = vadd.f32 %v707, %v940
      %v979 = vadd.f32 %v710, %v943
      %v980 = vadd.f32 %v715, %v948
      %v981 = vadd.f32 %v718, %v951
      %v982 = vadd.f32 %v723, %v956
      %v983 = vadd.f32 %v726, %v959
      %v984 = vadd.f32 %v731, %v964
      %v985 = vadd.f32 %v734, %v967
      %s986 = sadd.s32 %s197, 1
      %s987 = smul.u32 %s986, 3
      %s988 = smul.addr %s987, 4
      %s989 = scalar_lea.vmem %s184, %s988
      %v990 = vld [vmem:[%s989] sm:$0xf]
      %v991 = vld [vmem:[%s989 + $0x4] sm:$0xf]
      %v992 = vld [vmem:[%s989 + $0xc] sm:$0xf]
      %v993 = vld [vmem:[%s989 + $0x10] sm:$0xf]
      %v994 = vld [vmem:[%s989 + $0x18] sm:$0xf]
      %v995 = vld [vmem:[%s989 + $0x1c] sm:$0xf]
      %v996 = vld [vmem:[%s989 + $0x24] sm:$0xf]
      %v997 = vld [vmem:[%s989 + $0x28] sm:$0xf]
      %v998 = vld [vmem:[%s989 + $0x30] sm:$0xf]
      %v999 = vld [vmem:[%s989 + $0x34] sm:$0xf]
      %v1000 = vld [vmem:[%s989 + $0x3c] sm:$0xf]
      %v1001 = vld [vmem:[%s989 + $0x40] sm:$0xf]
      %v1002 = vld [vmem:[%s989 + $0x48] sm:$0xf]
      %v1003 = vld [vmem:[%s989 + $0x4c] sm:$0xf]
      %v1004 = vld [vmem:[%s989 + $0x54] sm:$0xf]
      %v1005 = vld [vmem:[%s989 + $0x58] sm:$0xf]
      %s1006 = scalar_lea.vmem %s1, 6
      %v1007 = vld [vmem:[%s1006] sm:$0x3]
      %v1024 = vunpack.c.l.b16 %v990
      %v1025 = vunpack.c.l.b16 %v991
      %v1026 = vunpack.c.l.b16 %v992
      %v1027 = vunpack.c.l.b16 %v993
      %v1028 = vunpack.c.l.b16 %v994
      %v1029 = vunpack.c.l.b16 %v995
      %v1030 = vunpack.c.l.b16 %v996
      %v1031 = vunpack.c.l.b16 %v997
      %v1032 = vunpack.c.l.b16 %v998
      %v1033 = vunpack.c.l.b16 %v999
      %v1034 = vunpack.c.l.b16 %v1000
      %v1035 = vunpack.c.l.b16 %v1001
      %v1036 = vunpack.c.l.b16 %v1002
      %v1037 = vunpack.c.l.b16 %v1003
      %v1038 = vunpack.c.l.b16 %v1004
      %v1039 = vunpack.c.l.b16 %v1005
      %v1040 = vpack.c.b16 %v1025, %v1024
      %v1041 = vpack.c.b16 %v1027, %v1026
      %v1042 = vpack.c.b16 %v1029, %v1028
      %v1043 = vpack.c.b16 %v1031, %v1030
      %v1044 = vpack.c.b16 %v1033, %v1032
      %v1045 = vpack.c.b16 %v1035, %v1034
      %v1046 = vpack.c.b16 %v1037, %v1036
      %v1047 = vpack.c.b16 %v1039, %v1038
      %v1049 = vsel %vm447, %v1040, 0
      %v1052 = vsel %vm447, %v1041, 0
      %v1055 = vsel %vm447, %v1042, 0
      %v1058 = vsel %vm447, %v1043, 0
      %v1061 = vsel %vm447, %v1044, 0
      %v1064 = vsel %vm447, %v1045, 0
      %v1067 = vsel %vm447, %v1046, 0
      %v1070 = vsel %vm447, %v1047, 0
      %v1073 = vsel %vm472, %v1007, 0
      %1075 = vmatprep.subr.bf16.mxu0 0
      %1076 = vmatpush1.bf16.msra.mxu0 0
      %1077 = vmatprep.subr.bf16.mxu0 0
      %1078 = vmatpush1.bf16.msra.mxu0 0
      %1079 = vmatprep.subr.bf16.mxu0 0
      %1080 = vmatpush1.bf16.msra.mxu0 0
      %1081 = vmatprep.subr.bf16.mxu0 0
      %1082 = vmatpush1.bf16.msra.mxu0 0
      %1083 = vmatprep.subr.bf16.mxu0 0
      %1084 = vmatpush1.bf16.msra.mxu0 0
      %1085 = vmatprep.subr.bf16.mxu0 0
      %1086 = vmatpush1.bf16.msra.mxu0 0
      %1087 = vmatprep.subr.bf16.mxu0 0
      %1088 = vmatpush1.bf16.msra.mxu0 0
      %1089 = vmatprep.subr.bf16.mxu0 0
      %1090 = vmatpush1.bf16.msra.mxu0 %v1073
      %1091 = vmatprep.subr.bf16.mxu0 0
      %1092 = vmatpush2.bf16.msra.mxu0 0
      %1093 = vmatprep.subr.bf16.mxu0 0
      %1094 = vmatpush2.bf16.msra.mxu0 0
      %1095 = vmatprep.subr.bf16.mxu0 0
      %1096 = vmatpush2.bf16.msra.mxu0 0
      %1097 = vmatprep.subr.bf16.mxu0 0
      %1098 = vmatpush2.bf16.msra.mxu0 0
      %1099 = vmatprep.subr.bf16.mxu0 0
      %1100 = vmatpush2.bf16.msra.mxu0 0
      %1101 = vmatprep.subr.bf16.mxu0 0
      %1102 = vmatpush2.bf16.msra.mxu0 0
      %1103 = vmatprep.subr.bf16.mxu0 0
      %1104 = vmatpush2.bf16.msra.mxu0 0
      %1105 = vmatprep.subr.bf16.mxu0 0
      %1106 = vmatpush2.bf16.msra.mxu0 0
      %1107 = vmatprep.mubr.bf16.mxu0 0
      %1108 = vmatmul.mubr.bf16.gmra.mxu0 %v1049
      %v1109 = vpop.f32.mrf.mxu0
      %v1110 = vadd.f32 0.0, %v1109
      %v1111 = vpop.f32.mrf.mxu0
      %v1112 = vpop.f32.mrf.mxu0
      %v1113 = vadd.f32 0.0, %v1112
      %v1114 = vpop.f32.mrf.mxu0
      %1115 = vmatprep.mubr.bf16.mxu0 0
      %1116 = vmatmul.mubr.bf16.gmra.mxu0 %v1052
      %v1117 = vpop.f32.mrf.mxu0
      %v1118 = vadd.f32 0.0, %v1117
      %v1119 = vpop.f32.mrf.mxu0
      %v1120 = vpop.f32.mrf.mxu0
      %v1121 = vadd.f32 0.0, %v1120
      %v1122 = vpop.f32.mrf.mxu0
      %1123 = vmatprep.mubr.bf16.mxu0 0
      %1124 = vmatmul.mubr.bf16.gmra.mxu0 %v1055
      %v1125 = vpop.f32.mrf.mxu0
      %v1126 = vadd.f32 0.0, %v1125
      %v1127 = vpop.f32.mrf.mxu0
      %v1128 = vpop.f32.mrf.mxu0
      %v1129 = vadd.f32 0.0, %v1128
      %v1130 = vpop.f32.mrf.mxu0
      %1131 = vmatprep.mubr.bf16.mxu0 0
      %1132 = vmatmul.mubr.bf16.gmra.mxu0 %v1058
      %v1133 = vpop.f32.mrf.mxu0
      %v1134 = vadd.f32 0.0, %v1133
      %v1135 = vpop.f32.mrf.mxu0
      %v1136 = vpop.f32.mrf.mxu0
      %v1137 = vadd.f32 0.0, %v1136
      %v1138 = vpop.f32.mrf.mxu0
      %1139 = vmatprep.mubr.bf16.mxu0 0
      %1140 = vmatmul.mubr.bf16.gmra.mxu0 %v1061
      %v1141 = vpop.f32.mrf.mxu0
      %v1142 = vadd.f32 0.0, %v1141
      %v1143 = vpop.f32.mrf.mxu0
      %v1144 = vpop.f32.mrf.mxu0
      %v1145 = vadd.f32 0.0, %v1144
      %v1146 = vpop.f32.mrf.mxu0
      %1147 = vmatprep.mubr.bf16.mxu0 0
      %1148 = vmatmul.mubr.bf16.gmra.mxu0 %v1064
      %v1149 = vpop.f32.mrf.mxu0
      %v1150 = vadd.f32 0.0, %v1149
      %v1151 = vpop.f32.mrf.mxu0
      %v1152 = vpop.f32.mrf.mxu0
      %v1153 = vadd.f32 0.0, %v1152
      %v1154 = vpop.f32.mrf.mxu0
      %1155 = vmatprep.mubr.bf16.mxu0 0
      %1156 = vmatmul.mubr.bf16.gmra.mxu0 %v1067
      %v1157 = vpop.f32.mrf.mxu0
      %v1158 = vadd.f32 0.0, %v1157
      %v1159 = vpop.f32.mrf.mxu0
      %v1160 = vpop.f32.mrf.mxu0
      %v1161 = vadd.f32 0.0, %v1160
      %v1162 = vpop.f32.mrf.mxu0
      %1163 = vmatprep.mubr.bf16.mxu0 0
      %1164 = vmatmul.mubr.bf16.gmra.mxu0 %v1070
      %v1165 = vpop.f32.mrf.mxu0
      %v1166 = vadd.f32 0.0, %v1165
      %v1167 = vpop.f32.mrf.mxu0
      %v1168 = vpop.f32.mrf.mxu0
      %v1169 = vadd.f32 0.0, %v1168
      %v1170 = vpop.f32.mrf.mxu0
      %1171 = vdwg.mxu0
      %v1172 = vadd.f32 %v970, %v1110
      %v1173 = vadd.f32 %v971, %v1113
      %v1174 = vadd.f32 %v972, %v1118
      %v1175 = vadd.f32 %v973, %v1121
      %v1176 = vadd.f32 %v974, %v1126
      %v1177 = vadd.f32 %v975, %v1129
      %v1178 = vadd.f32 %v976, %v1134
      %v1179 = vadd.f32 %v977, %v1137
      %v1180 = vadd.f32 %v978, %v1142
      %v1181 = vadd.f32 %v979, %v1145
      %v1182 = vadd.f32 %v980, %v1150
      %v1183 = vadd.f32 %v981, %v1153
      %v1184 = vadd.f32 %v982, %v1158
      %v1185 = vadd.f32 %v983, %v1161
      %v1186 = vadd.f32 %v984, %v1166
      %v1187 = vadd.f32 %v985, %v1169
      %v1188 = vld [vmem:[%s989] sm:$0xf]
      %v1189 = vld [vmem:[%s989 + $0x4] sm:$0xf]
      %v1190 = vld [vmem:[%s989 + $0x8] sm:$0x1]
      %v1191 = vld [vmem:[%s989 + $0xc] sm:$0xf]
      %v1192 = vld [vmem:[%s989 + $0x10] sm:$0xf]
      %v1193 = vld [vmem:[%s989 + $0x14] sm:$0x1]
      %v1194 = vld [vmem:[%s989 + $0x18] sm:$0xf]
      %v1195 = vld [vmem:[%s989 + $0x1c] sm:$0xf]
      %v1196 = vld [vmem:[%s989 + $0x20] sm:$0x1]
      %v1197 = vld [vmem:[%s989 + $0x24] sm:$0xf]
      %v1198 = vld [vmem:[%s989 + $0x28] sm:$0xf]
      %v1199 = vld [vmem:[%s989 + $0x2c] sm:$0x1]
      %v1200 = vld [vmem:[%s989 + $0x30] sm:$0xf]
      %v1201 = vld [vmem:[%s989 + $0x34] sm:$0xf]
      %v1202 = vld [vmem:[%s989 + $0x38] sm:$0x1]
      %v1203 = vld [vmem:[%s989 + $0x3c] sm:$0xf]
      %v1204 = vld [vmem:[%s989 + $0x40] sm:$0xf]
      %v1205 = vld [vmem:[%s989 + $0x44] sm:$0x1]
      %v1206 = vld [vmem:[%s989 + $0x48] sm:$0xf]
      %v1207 = vld [vmem:[%s989 + $0x4c] sm:$0xf]
      %v1208 = vld [vmem:[%s989 + $0x50] sm:$0x1]
      %v1209 = vld [vmem:[%s989 + $0x54] sm:$0xf]
      %v1210 = vld [vmem:[%s989 + $0x58] sm:$0xf]
      %v1211 = vld [vmem:[%s989 + $0x5c] sm:$0x1]
      %v1213 = vshrl.u32 %v1188, 16
      %v1215 = vrot.slane %v1213, 4
      %v1216 = vshll.u32 %v1188, 16
      %v1218 = vrot.slane %v1216, 5
      %v1219 = vor.u32 %v1215, %v1218
      %v1220 = vrot.slane %v1219, 4
      %v1222 = vshll.u32 %v1189, 16
      %v1224 = vrot.slane %v1222, 5
      %v1225 = vsel %vm228, %v1220, %v1224
      %v1226 = vshrl.u32 %v1189, 16
      %v1228 = vrot.slane %v1226, 4
      %v1229 = vor.u32 %v1228, %v1224
      %v1230 = vrot.slane %v1229, 4
      %v1232 = vshll.u32 %v1190, 16
      %v1234 = vrot.slane %v1232, 5
      %v1235 = vsel %vm228, %v1230, %v1234
      %v1237 = vshrl.u32 %v1191, 16
      %v1239 = vrot.slane %v1237, 4
      %v1240 = vshll.u32 %v1191, 16
      %v1242 = vrot.slane %v1240, 5
      %v1243 = vor.u32 %v1239, %v1242
      %v1244 = vrot.slane %v1243, 4
      %v1246 = vshll.u32 %v1192, 16
      %v1248 = vrot.slane %v1246, 5
      %v1249 = vsel %vm228, %v1244, %v1248
      %v1250 = vshrl.u32 %v1192, 16
      %v1252 = vrot.slane %v1250, 4
      %v1253 = vor.u32 %v1252, %v1248
      %v1254 = vrot.slane %v1253, 4
      %v1256 = vshll.u32 %v1193, 16
      %v1258 = vrot.slane %v1256, 5
      %v1259 = vsel %vm228, %v1254, %v1258
      %v1261 = vshrl.u32 %v1194, 16
      %v1263 = vrot.slane %v1261, 4
      %v1264 = vshll.u32 %v1194, 16
      %v1266 = vrot.slane %v1264, 5
      %v1267 = vor.u32 %v1263, %v1266
      %v1268 = vrot.slane %v1267, 4
      %v1270 = vshll.u32 %v1195, 16
      %v1272 = vrot.slane %v1270, 5
      %v1273 = vsel %vm228, %v1268, %v1272
      %v1274 = vshrl.u32 %v1195, 16
      %v1276 = vrot.slane %v1274, 4
      %v1277 = vor.u32 %v1276, %v1272
      %v1278 = vrot.slane %v1277, 4
      %v1280 = vshll.u32 %v1196, 16
      %v1282 = vrot.slane %v1280, 5
      %v1283 = vsel %vm228, %v1278, %v1282
      %v1285 = vshrl.u32 %v1197, 16
      %v1287 = vrot.slane %v1285, 4
      %v1288 = vshll.u32 %v1197, 16
      %v1290 = vrot.slane %v1288, 5
      %v1291 = vor.u32 %v1287, %v1290
      %v1292 = vrot.slane %v1291, 4
      %v1294 = vshll.u32 %v1198, 16
      %v1296 = vrot.slane %v1294, 5
      %v1297 = vsel %vm228, %v1292, %v1296
      %v1298 = vshrl.u32 %v1198, 16
      %v1300 = vrot.slane %v1298, 4
      %v1301 = vor.u32 %v1300, %v1296
      %v1302 = vrot.slane %v1301, 4
      %v1304 = vshll.u32 %v1199, 16
      %v1306 = vrot.slane %v1304, 5
      %v1307 = vsel %vm228, %v1302, %v1306
      %v1309 = vshrl.u32 %v1200, 16
      %v1311 = vrot.slane %v1309, 4
      %v1312 = vshll.u32 %v1200, 16
      %v1314 = vrot.slane %v1312, 5
      %v1315 = vor.u32 %v1311, %v1314
      %v1316 = vrot.slane %v1315, 4
      %v1318 = vshll.u32 %v1201, 16
      %v1320 = vrot.slane %v1318, 5
      %v1321 = vsel %vm228, %v1316, %v1320
      %v1322 = vshrl.u32 %v1201, 16
      %v1324 = vrot.slane %v1322, 4
      %v1325 = vor.u32 %v1324, %v1320
      %v1326 = vrot.slane %v1325, 4
      %v1328 = vshll.u32 %v1202, 16
      %v1330 = vrot.slane %v1328, 5
      %v1331 = vsel %vm228, %v1326, %v1330
      %v1333 = vshrl.u32 %v1203, 16
      %v1335 = vrot.slane %v1333, 4
      %v1336 = vshll.u32 %v1203, 16
      %v1338 = vrot.slane %v1336, 5
      %v1339 = vor.u32 %v1335, %v1338
      %v1340 = vrot.slane %v1339, 4
      %v1342 = vshll.u32 %v1204, 16
      %v1344 = vrot.slane %v1342, 5
      %v1345 = vsel %vm228, %v1340, %v1344
      %v1346 = vshrl.u32 %v1204, 16
      %v1348 = vrot.slane %v1346, 4
      %v1349 = vor.u32 %v1348, %v1344
      %v1350 = vrot.slane %v1349, 4
      %v1352 = vshll.u32 %v1205, 16
      %v1354 = vrot.slane %v1352, 5
      %v1355 = vsel %vm228, %v1350, %v1354
      %v1357 = vshrl.u32 %v1206, 16
      %v1359 = vrot.slane %v1357, 4
      %v1360 = vshll.u32 %v1206, 16
      %v1362 = vrot.slane %v1360, 5
      %v1363 = vor.u32 %v1359, %v1362
      %v1364 = vrot.slane %v1363, 4
      %v1366 = vshll.u32 %v1207, 16
      %v1368 = vrot.slane %v1366, 5
      %v1369 = vsel %vm228, %v1364, %v1368
      %v1370 = vshrl.u32 %v1207, 16
      %v1372 = vrot.slane %v1370, 4
      %v1373 = vor.u32 %v1372, %v1368
      %v1374 = vrot.slane %v1373, 4
      %v1376 = vshll.u32 %v1208, 16
      %v1378 = vrot.slane %v1376, 5
      %v1379 = vsel %vm228, %v1374, %v1378
      %v1381 = vshrl.u32 %v1209, 16
      %v1383 = vrot.slane %v1381, 4
      %v1384 = vshll.u32 %v1209, 16
      %v1386 = vrot.slane %v1384, 5
      %v1387 = vor.u32 %v1383, %v1386
      %v1388 = vrot.slane %v1387, 4
      %v1390 = vshll.u32 %v1210, 16
      %v1392 = vrot.slane %v1390, 5
      %v1393 = vsel %vm228, %v1388, %v1392
      %v1394 = vshrl.u32 %v1210, 16
      %v1396 = vrot.slane %v1394, 4
      %v1397 = vor.u32 %v1396, %v1392
      %v1398 = vrot.slane %v1397, 4
      %v1400 = vshll.u32 %v1211, 16
      %v1402 = vrot.slane %v1400, 5
      %v1403 = vsel %vm228, %v1398, %v1402
      %s1404 = scalar_lea.vmem %s1, 8
      %v1405 = vld [vmem:[%s1404] sm:$0x3]
      %v1406 = vunpack.c.l.b16 %v1225
      %v1407 = vunpack.c.l.b16 %v1235
      %v1408 = vunpack.c.l.b16 %v1249
      %v1409 = vunpack.c.l.b16 %v1259
      %v1410 = vunpack.c.l.b16 %v1273
      %v1411 = vunpack.c.l.b16 %v1283
      %v1412 = vunpack.c.l.b16 %v1297
      %v1413 = vunpack.c.l.b16 %v1307
      %v1414 = vunpack.c.l.b16 %v1321
      %v1415 = vunpack.c.l.b16 %v1331
      %v1416 = vunpack.c.l.b16 %v1345
      %v1417 = vunpack.c.l.b16 %v1355
      %v1418 = vunpack.c.l.b16 %v1369
      %v1419 = vunpack.c.l.b16 %v1379
      %v1420 = vunpack.c.l.b16 %v1393
      %v1421 = vunpack.c.l.b16 %v1403
      %v1422 = vpack.c.b16 %v1407, %v1406
      %v1423 = vpack.c.b16 %v1409, %v1408
      %v1424 = vpack.c.b16 %v1411, %v1410
      %v1425 = vpack.c.b16 %v1413, %v1412
      %v1426 = vpack.c.b16 %v1415, %v1414
      %v1427 = vpack.c.b16 %v1417, %v1416
      %v1428 = vpack.c.b16 %v1419, %v1418
      %v1429 = vpack.c.b16 %v1421, %v1420
      %v1431 = vsel %vm447, %v1422, 0
      %v1434 = vsel %vm447, %v1423, 0
      %v1437 = vsel %vm447, %v1424, 0
      %v1440 = vsel %vm447, %v1425, 0
      %v1443 = vsel %vm447, %v1426, 0
      %v1446 = vsel %vm447, %v1427, 0
      %v1449 = vsel %vm447, %v1428, 0
      %v1452 = vsel %vm447, %v1429, 0
      %v1455 = vsel %vm472, %v1405, 0
      %1457 = vmatprep.subr.bf16.mxu0 0
      %1458 = vmatpush1.bf16.msra.mxu0 0
      %1459 = vmatprep.subr.bf16.mxu0 0
      %1460 = vmatpush1.bf16.msra.mxu0 0
      %1461 = vmatprep.subr.bf16.mxu0 0
      %1462 = vmatpush1.bf16.msra.mxu0 0
      %1463 = vmatprep.subr.bf16.mxu0 0
      %1464 = vmatpush1.bf16.msra.mxu0 0
      %1465 = vmatprep.subr.bf16.mxu0 0
      %1466 = vmatpush1.bf16.msra.mxu0 0
      %1467 = vmatprep.subr.bf16.mxu0 0
      %1468 = vmatpush1.bf16.msra.mxu0 0
      %1469 = vmatprep.subr.bf16.mxu0 0
      %1470 = vmatpush1.bf16.msra.mxu0 0
      %1471 = vmatprep.subr.bf16.mxu0 0
      %1472 = vmatpush1.bf16.msra.mxu0 %v1455
      %1473 = vmatprep.subr.bf16.mxu0 0
      %1474 = vmatpush2.bf16.msra.mxu0 0
      %1475 = vmatprep.subr.bf16.mxu0 0
      %1476 = vmatpush2.bf16.msra.mxu0 0
      %1477 = vmatprep.subr.bf16.mxu0 0
      %1478 = vmatpush2.bf16.msra.mxu0 0
      %1479 = vmatprep.subr.bf16.mxu0 0
      %1480 = vmatpush2.bf16.msra.mxu0 0
      %1481 = vmatprep.subr.bf16.mxu0 0
      %1482 = vmatpush2.bf16.msra.mxu0 0
      %1483 = vmatprep.subr.bf16.mxu0 0
      %1484 = vmatpush2.bf16.msra.mxu0 0
      %1485 = vmatprep.subr.bf16.mxu0 0
      %1486 = vmatpush2.bf16.msra.mxu0 0
      %1487 = vmatprep.subr.bf16.mxu0 0
      %1488 = vmatpush2.bf16.msra.mxu0 0
      %1489 = vmatprep.mubr.bf16.mxu0 0
      %1490 = vmatmul.mubr.bf16.gmra.mxu0 %v1431
      %v1491 = vpop.f32.mrf.mxu0
      %v1492 = vadd.f32 0.0, %v1491
      %v1493 = vpop.f32.mrf.mxu0
      %v1494 = vpop.f32.mrf.mxu0
      %v1495 = vadd.f32 0.0, %v1494
      %v1496 = vpop.f32.mrf.mxu0
      %1497 = vmatprep.mubr.bf16.mxu0 0
      %1498 = vmatmul.mubr.bf16.gmra.mxu0 %v1434
      %v1499 = vpop.f32.mrf.mxu0
      %v1500 = vadd.f32 0.0, %v1499
      %v1501 = vpop.f32.mrf.mxu0
      %v1502 = vpop.f32.mrf.mxu0
      %v1503 = vadd.f32 0.0, %v1502
      %v1504 = vpop.f32.mrf.mxu0
      %1505 = vmatprep.mubr.bf16.mxu0 0
      %1506 = vmatmul.mubr.bf16.gmra.mxu0 %v1437
      %v1507 = vpop.f32.mrf.mxu0
      %v1508 = vadd.f32 0.0, %v1507
      %v1509 = vpop.f32.mrf.mxu0
      %v1510 = vpop.f32.mrf.mxu0
      %v1511 = vadd.f32 0.0, %v1510
      %v1512 = vpop.f32.mrf.mxu0
      %1513 = vmatprep.mubr.bf16.mxu0 0
      %1514 = vmatmul.mubr.bf16.gmra.mxu0 %v1440
      %v1515 = vpop.f32.mrf.mxu0
      %v1516 = vadd.f32 0.0, %v1515
      %v1517 = vpop.f32.mrf.mxu0
      %v1518 = vpop.f32.mrf.mxu0
      %v1519 = vadd.f32 0.0, %v1518
      %v1520 = vpop.f32.mrf.mxu0
      %1521 = vmatprep.mubr.bf16.mxu0 0
      %1522 = vmatmul.mubr.bf16.gmra.mxu0 %v1443
      %v1523 = vpop.f32.mrf.mxu0
      %v1524 = vadd.f32 0.0, %v1523
      %v1525 = vpop.f32.mrf.mxu0
      %v1526 = vpop.f32.mrf.mxu0
      %v1527 = vadd.f32 0.0, %v1526
      %v1528 = vpop.f32.mrf.mxu0
      %1529 = vmatprep.mubr.bf16.mxu0 0
      %1530 = vmatmul.mubr.bf16.gmra.mxu0 %v1446
      %v1531 = vpop.f32.mrf.mxu0
      %v1532 = vadd.f32 0.0, %v1531
      %v1533 = vpop.f32.mrf.mxu0
      %v1534 = vpop.f32.mrf.mxu0
      %v1535 = vadd.f32 0.0, %v1534
      %v1536 = vpop.f32.mrf.mxu0
      %1537 = vmatprep.mubr.bf16.mxu0 0
      %1538 = vmatmul.mubr.bf16.gmra.mxu0 %v1449
      %v1539 = vpop.f32.mrf.mxu0
      %v1540 = vadd.f32 0.0, %v1539
      %v1541 = vpop.f32.mrf.mxu0
      %v1542 = vpop.f32.mrf.mxu0
      %v1543 = vadd.f32 0.0, %v1542
      %v1544 = vpop.f32.mrf.mxu0
      %1545 = vmatprep.mubr.bf16.mxu0 0
      %1546 = vmatmul.mubr.bf16.gmra.mxu0 %v1452
      %v1547 = vpop.f32.mrf.mxu0
      %v1548 = vadd.f32 0.0, %v1547
      %v1549 = vpop.f32.mrf.mxu0
      %v1550 = vpop.f32.mrf.mxu0
      %v1551 = vadd.f32 0.0, %v1550
      %v1552 = vpop.f32.mrf.mxu0
      %1553 = vdwg.mxu0
      %v1554 = vadd.f32 %v1172, %v1492
      %v1555 = vadd.f32 %v1173, %v1495
      %v1556 = vadd.f32 %v1174, %v1500
      %v1557 = vadd.f32 %v1175, %v1503
      %v1558 = vadd.f32 %v1176, %v1508
      %v1559 = vadd.f32 %v1177, %v1511
      %v1560 = vadd.f32 %v1178, %v1516
      %v1561 = vadd.f32 %v1179, %v1519
      %v1562 = vadd.f32 %v1180, %v1524
      %v1563 = vadd.f32 %v1181, %v1527
      %v1564 = vadd.f32 %v1182, %v1532
      %v1565 = vadd.f32 %v1183, %v1535
      %v1566 = vadd.f32 %v1184, %v1540
      %v1567 = vadd.f32 %v1185, %v1543
      %v1568 = vadd.f32 %v1186, %v1548
      %v1569 = vadd.f32 %v1187, %v1551
      %v1570 = vld [vmem:[%s989] sm:$0xe]
      %v1571 = vld [vmem:[%s989 + $0xc] sm:$0xe]
      %v1572 = vld [vmem:[%s989 + $0x18] sm:$0xe]
      %v1573 = vld [vmem:[%s989 + $0x24] sm:$0xe]
      %v1574 = vld [vmem:[%s989 + $0x30] sm:$0xe]
      %v1575 = vld [vmem:[%s989 + $0x3c] sm:$0xe]
      %v1576 = vld [vmem:[%s989 + $0x48] sm:$0xe]
      %v1577 = vld [vmem:[%s989 + $0x54] sm:$0xe]
      %v1602 = vrot.slane %v1570, 5
      %v1603 = vrot.slane %v1602, 4
      %v1604 = vrot.slane %v1189, 5
      %v1605 = vsel %vm763, %v1603, %v1604
      %v1606 = vrot.slane %v1604, 4
      %v1607 = vrot.slane %v1190, 5
      %v1608 = vsel %vm763, %v1606, %v1607
      %v1609 = vrot.slane %v1571, 5
      %v1610 = vrot.slane %v1609, 4
      %v1611 = vrot.slane %v1192, 5
      %v1612 = vsel %vm763, %v1610, %v1611
      %v1613 = vrot.slane %v1611, 4
      %v1614 = vrot.slane %v1193, 5
      %v1615 = vsel %vm763, %v1613, %v1614
      %v1616 = vrot.slane %v1572, 5
      %v1617 = vrot.slane %v1616, 4
      %v1618 = vrot.slane %v1195, 5
      %v1619 = vsel %vm763, %v1617, %v1618
      %v1620 = vrot.slane %v1618, 4
      %v1621 = vrot.slane %v1196, 5
      %v1622 = vsel %vm763, %v1620, %v1621
      %v1623 = vrot.slane %v1573, 5
      %v1624 = vrot.slane %v1623, 4
      %v1625 = vrot.slane %v1198, 5
      %v1626 = vsel %vm763, %v1624, %v1625
      %v1627 = vrot.slane %v1625, 4
      %v1628 = vrot.slane %v1199, 5
      %v1629 = vsel %vm763, %v1627, %v1628
      %v1630 = vrot.slane %v1574, 5
      %v1631 = vrot.slane %v1630, 4
      %v1632 = vrot.slane %v1201, 5
      %v1633 = vsel %vm763, %v1631, %v1632
      %v1634 = vrot.slane %v1632, 4
      %v1635 = vrot.slane %v1202, 5
      %v1636 = vsel %vm763, %v1634, %v1635
      %v1637 = vrot.slane %v1575, 5
      %v1638 = vrot.slane %v1637, 4
      %v1639 = vrot.slane %v1204, 5
      %v1640 = vsel %vm763, %v1638, %v1639
      %v1641 = vrot.slane %v1639, 4
      %v1642 = vrot.slane %v1205, 5
      %v1643 = vsel %vm763, %v1641, %v1642
      %v1644 = vrot.slane %v1576, 5
      %v1645 = vrot.slane %v1644, 4
      %v1646 = vrot.slane %v1207, 5
      %v1647 = vsel %vm763, %v1645, %v1646
      %v1648 = vrot.slane %v1646, 4
      %v1649 = vrot.slane %v1208, 5
      %v1650 = vsel %vm763, %v1648, %v1649
      %v1651 = vrot.slane %v1577, 5
      %v1652 = vrot.slane %v1651, 4
      %v1653 = vrot.slane %v1210, 5
      %v1654 = vsel %vm763, %v1652, %v1653
      %v1655 = vrot.slane %v1653, 4
      %v1656 = vrot.slane %v1211, 5
      %v1657 = vsel %vm763, %v1655, %v1656
      %s1658 = scalar_lea.vmem %s1, 10
      %v1659 = vld [vmem:[%s1658] sm:$0x3]
      %v1660 = vunpack.c.l.b16 %v1605
      %v1661 = vunpack.c.l.b16 %v1608
      %v1662 = vunpack.c.l.b16 %v1612
      %v1663 = vunpack.c.l.b16 %v1615
      %v1664 = vunpack.c.l.b16 %v1619
      %v1665 = vunpack.c.l.b16 %v1622
      %v1666 = vunpack.c.l.b16 %v1626
      %v1667 = vunpack.c.l.b16 %v1629
      %v1668 = vunpack.c.l.b16 %v1633
      %v1669 = vunpack.c.l.b16 %v1636
      %v1670 = vunpack.c.l.b16 %v1640
      %v1671 = vunpack.c.l.b16 %v1643
      %v1672 = vunpack.c.l.b16 %v1647
      %v1673 = vunpack.c.l.b16 %v1650
      %v1674 = vunpack.c.l.b16 %v1654
      %v1675 = vunpack.c.l.b16 %v1657
      %v1676 = vpack.c.b16 %v1661, %v1660
      %v1677 = vpack.c.b16 %v1663, %v1662
      %v1678 = vpack.c.b16 %v1665, %v1664
      %v1679 = vpack.c.b16 %v1667, %v1666
      %v1680 = vpack.c.b16 %v1669, %v1668
      %v1681 = vpack.c.b16 %v1671, %v1670
      %v1682 = vpack.c.b16 %v1673, %v1672
      %v1683 = vpack.c.b16 %v1675, %v1674
      %v1685 = vsel %vm447, %v1676, 0
      %v1688 = vsel %vm447, %v1677, 0
      %v1691 = vsel %vm447, %v1678, 0
      %v1694 = vsel %vm447, %v1679, 0
      %v1697 = vsel %vm447, %v1680, 0
      %v1700 = vsel %vm447, %v1681, 0
      %v1703 = vsel %vm447, %v1682, 0
      %v1706 = vsel %vm447, %v1683, 0
      %v1709 = vsel %vm472, %v1659, 0
      %1711 = vmatprep.subr.bf16.mxu0 0
      %1712 = vmatpush1.bf16.msra.mxu0 0
      %1713 = vmatprep.subr.bf16.mxu0 0
      %1714 = vmatpush1.bf16.msra.mxu0 0
      %1715 = vmatprep.subr.bf16.mxu0 0
      %1716 = vmatpush1.bf16.msra.mxu0 0
      %1717 = vmatprep.subr.bf16.mxu0 0
      %1718 = vmatpush1.bf16.msra.mxu0 0
      %1719 = vmatprep.subr.bf16.mxu0 0
      %1720 = vmatpush1.bf16.msra.mxu0 0
      %1721 = vmatprep.subr.bf16.mxu0 0
      %1722 = vmatpush1.bf16.msra.mxu0 0
      %1723 = vmatprep.subr.bf16.mxu0 0
      %1724 = vmatpush1.bf16.msra.mxu0 0
      %1725 = vmatprep.subr.bf16.mxu0 0
      %1726 = vmatpush1.bf16.msra.mxu0 %v1709
      %1727 = vmatprep.subr.bf16.mxu0 0
      %1728 = vmatpush2.bf16.msra.mxu0 0
      %1729 = vmatprep.subr.bf16.mxu0 0
      %1730 = vmatpush2.bf16.msra.mxu0 0
      %1731 = vmatprep.subr.bf16.mxu0 0
      %1732 = vmatpush2.bf16.msra.mxu0 0
      %1733 = vmatprep.subr.bf16.mxu0 0
      %1734 = vmatpush2.bf16.msra.mxu0 0
      %1735 = vmatprep.subr.bf16.mxu0 0
      %1736 = vmatpush2.bf16.msra.mxu0 0
      %1737 = vmatprep.subr.bf16.mxu0 0
      %1738 = vmatpush2.bf16.msra.mxu0 0
      %1739 = vmatprep.subr.bf16.mxu0 0
      %1740 = vmatpush2.bf16.msra.mxu0 0
      %1741 = vmatprep.subr.bf16.mxu0 0
      %1742 = vmatpush2.bf16.msra.mxu0 0
      %1743 = vmatprep.mubr.bf16.mxu0 0
      %1744 = vmatmul.mubr.bf16.gmra.mxu0 %v1685
      %v1745 = vpop.f32.mrf.mxu0
      %v1746 = vadd.f32 0.0, %v1745
      %v1747 = vpop.f32.mrf.mxu0
      %v1748 = vpop.f32.mrf.mxu0
      %v1749 = vadd.f32 0.0, %v1748
      %v1750 = vpop.f32.mrf.mxu0
      %1751 = vmatprep.mubr.bf16.mxu0 0
      %1752 = vmatmul.mubr.bf16.gmra.mxu0 %v1688
      %v1753 = vpop.f32.mrf.mxu0
      %v1754 = vadd.f32 0.0, %v1753
      %v1755 = vpop.f32.mrf.mxu0
      %v1756 = vpop.f32.mrf.mxu0
      %v1757 = vadd.f32 0.0, %v1756
      %v1758 = vpop.f32.mrf.mxu0
      %1759 = vmatprep.mubr.bf16.mxu0 0
      %1760 = vmatmul.mubr.bf16.gmra.mxu0 %v1691
      %v1761 = vpop.f32.mrf.mxu0
      %v1762 = vadd.f32 0.0, %v1761
      %v1763 = vpop.f32.mrf.mxu0
      %v1764 = vpop.f32.mrf.mxu0
      %v1765 = vadd.f32 0.0, %v1764
      %v1766 = vpop.f32.mrf.mxu0
      %1767 = vmatprep.mubr.bf16.mxu0 0
      %1768 = vmatmul.mubr.bf16.gmra.mxu0 %v1694
      %v1769 = vpop.f32.mrf.mxu0
      %v1770 = vadd.f32 0.0, %v1769
      %v1771 = vpop.f32.mrf.mxu0
      %v1772 = vpop.f32.mrf.mxu0
      %v1773 = vadd.f32 0.0, %v1772
      %v1774 = vpop.f32.mrf.mxu0
      %1775 = vmatprep.mubr.bf16.mxu0 0
      %1776 = vmatmul.mubr.bf16.gmra.mxu0 %v1697
      %v1777 = vpop.f32.mrf.mxu0
      %v1778 = vadd.f32 0.0, %v1777
      %v1779 = vpop.f32.mrf.mxu0
      %v1780 = vpop.f32.mrf.mxu0
      %v1781 = vadd.f32 0.0, %v1780
      %v1782 = vpop.f32.mrf.mxu0
      %1783 = vmatprep.mubr.bf16.mxu0 0
      %1784 = vmatmul.mubr.bf16.gmra.mxu0 %v1700
      %v1785 = vpop.f32.mrf.mxu0
      %v1786 = vadd.f32 0.0, %v1785
      %v1787 = vpop.f32.mrf.mxu0
      %v1788 = vpop.f32.mrf.mxu0
      %v1789 = vadd.f32 0.0, %v1788
      %v1790 = vpop.f32.mrf.mxu0
      %1791 = vmatprep.mubr.bf16.mxu0 0
      %1792 = vmatmul.mubr.bf16.gmra.mxu0 %v1703
      %v1793 = vpop.f32.mrf.mxu0
      %v1794 = vadd.f32 0.0, %v1793
      %v1795 = vpop.f32.mrf.mxu0
      %v1796 = vpop.f32.mrf.mxu0
      %v1797 = vadd.f32 0.0, %v1796
      %v1798 = vpop.f32.mrf.mxu0
      %1799 = vmatprep.mubr.bf16.mxu0 0
      %1800 = vmatmul.mubr.bf16.gmra.mxu0 %v1706
      %v1801 = vpop.f32.mrf.mxu0
      %v1802 = vadd.f32 0.0, %v1801
      %v1803 = vpop.f32.mrf.mxu0
      %v1804 = vpop.f32.mrf.mxu0
      %v1805 = vadd.f32 0.0, %v1804
      %v1806 = vpop.f32.mrf.mxu0
      %1807 = vdwg.mxu0
      %v1808 = vadd.f32 %v1554, %v1746
      %v1809 = vadd.f32 %v1555, %v1749
      %v1810 = vadd.f32 %v1556, %v1754
      %v1811 = vadd.f32 %v1557, %v1757
      %v1812 = vadd.f32 %v1558, %v1762
      %v1813 = vadd.f32 %v1559, %v1765
      %v1814 = vadd.f32 %v1560, %v1770
      %v1815 = vadd.f32 %v1561, %v1773
      %v1816 = vadd.f32 %v1562, %v1778
      %v1817 = vadd.f32 %v1563, %v1781
      %v1818 = vadd.f32 %v1564, %v1786
      %v1819 = vadd.f32 %v1565, %v1789
      %v1820 = vadd.f32 %v1566, %v1794
      %v1821 = vadd.f32 %v1567, %v1797
      %v1822 = vadd.f32 %v1568, %v1802
      %v1823 = vadd.f32 %v1569, %v1805
      %s1824 = sadd.s32 %s197, 2
      %s1825 = smul.u32 %s1824, 3
      %s1826 = smul.addr %s1825, 4
      %s1827 = scalar_lea.vmem %s184, %s1826
      %v1828 = vld [vmem:[%s1827] sm:$0xf]
      %v1829 = vld [vmem:[%s1827 + $0x4] sm:$0xf]
      %v1830 = vld [vmem:[%s1827 + $0xc] sm:$0xf]
      %v1831 = vld [vmem:[%s1827 + $0x10] sm:$0xf]
      %v1832 = vld [vmem:[%s1827 + $0x18] sm:$0xf]
      %v1833 = vld [vmem:[%s1827 + $0x1c] sm:$0xf]
      %v1834 = vld [vmem:[%s1827 + $0x24] sm:$0xf]
      %v1835 = vld [vmem:[%s1827 + $0x28] sm:$0xf]
      %v1836 = vld [vmem:[%s1827 + $0x30] sm:$0xf]
      %v1837 = vld [vmem:[%s1827 + $0x34] sm:$0xf]
      %v1838 = vld [vmem:[%s1827 + $0x3c] sm:$0xf]
      %v1839 = vld [vmem:[%s1827 + $0x40] sm:$0xf]
      %v1840 = vld [vmem:[%s1827 + $0x48] sm:$0xf]
      %v1841 = vld [vmem:[%s1827 + $0x4c] sm:$0xf]
      %v1842 = vld [vmem:[%s1827 + $0x54] sm:$0xf]
      %v1843 = vld [vmem:[%s1827 + $0x58] sm:$0xf]
      %s1844 = scalar_lea.vmem %s1, 12
      %v1845 = vld [vmem:[%s1844] sm:$0x3]
      %v1862 = vunpack.c.l.b16 %v1828
      %v1863 = vunpack.c.l.b16 %v1829
      %v1864 = vunpack.c.l.b16 %v1830
      %v1865 = vunpack.c.l.b16 %v1831
      %v1866 = vunpack.c.l.b16 %v1832
      %v1867 = vunpack.c.l.b16 %v1833
      %v1868 = vunpack.c.l.b16 %v1834
      %v1869 = vunpack.c.l.b16 %v1835
      %v1870 = vunpack.c.l.b16 %v1836
      %v1871 = vunpack.c.l.b16 %v1837
      %v1872 = vunpack.c.l.b16 %v1838
      %v1873 = vunpack.c.l.b16 %v1839
      %v1874 = vunpack.c.l.b16 %v1840
      %v1875 = vunpack.c.l.b16 %v1841
      %v1876 = vunpack.c.l.b16 %v1842
      %v1877 = vunpack.c.l.b16 %v1843
      %v1878 = vpack.c.b16 %v1863, %v1862
      %v1879 = vpack.c.b16 %v1865, %v1864
      %v1880 = vpack.c.b16 %v1867, %v1866
      %v1881 = vpack.c.b16 %v1869, %v1868
      %v1882 = vpack.c.b16 %v1871, %v1870
      %v1883 = vpack.c.b16 %v1873, %v1872
      %v1884 = vpack.c.b16 %v1875, %v1874
      %v1885 = vpack.c.b16 %v1877, %v1876
      %v1887 = vsel %vm447, %v1878, 0
      %v1890 = vsel %vm447, %v1879, 0
      %v1893 = vsel %vm447, %v1880, 0
      %v1896 = vsel %vm447, %v1881, 0
      %v1899 = vsel %vm447, %v1882, 0
      %v1902 = vsel %vm447, %v1883, 0
      %v1905 = vsel %vm447, %v1884, 0
      %v1908 = vsel %vm447, %v1885, 0
      %v1911 = vsel %vm472, %v1845, 0
      %1913 = vmatprep.subr.bf16.mxu0 0
      %1914 = vmatpush1.bf16.msra.mxu0 0
      %1915 = vmatprep.subr.bf16.mxu0 0
      %1916 = vmatpush1.bf16.msra.mxu0 0
      %1917 = vmatprep.subr.bf16.mxu0 0
      %1918 = vmatpush1.bf16.msra.mxu0 0
      %1919 = vmatprep.subr.bf16.mxu0 0
      %1920 = vmatpush1.bf16.msra.mxu0 0
      %1921 = vmatprep.subr.bf16.mxu0 0
      %1922 = vmatpush1.bf16.msra.mxu0 0
      %1923 = vmatprep.subr.bf16.mxu0 0
      %1924 = vmatpush1.bf16.msra.mxu0 0
      %1925 = vmatprep.subr.bf16.mxu0 0
      %1926 = vmatpush1.bf16.msra.mxu0 0
      %1927 = vmatprep.subr.bf16.mxu0 0
      %1928 = vmatpush1.bf16.msra.mxu0 %v1911
      %1929 = vmatprep.subr.bf16.mxu0 0
      %1930 = vmatpush2.bf16.msra.mxu0 0
      %1931 = vmatprep.subr.bf16.mxu0 0
      %1932 = vmatpush2.bf16.msra.mxu0 0
      %1933 = vmatprep.subr.bf16.mxu0 0
      %1934 = vmatpush2.bf16.msra.mxu0 0
      %1935 = vmatprep.subr.bf16.mxu0 0
      %1936 = vmatpush2.bf16.msra.mxu0 0
      %1937 = vmatprep.subr.bf16.mxu0 0
      %1938 = vmatpush2.bf16.msra.mxu0 0
      %1939 = vmatprep.subr.bf16.mxu0 0
      %1940 = vmatpush2.bf16.msra.mxu0 0
      %1941 = vmatprep.subr.bf16.mxu0 0
      %1942 = vmatpush2.bf16.msra.mxu0 0
      %1943 = vmatprep.subr.bf16.mxu0 0
      %1944 = vmatpush2.bf16.msra.mxu0 0
      %1945 = vmatprep.mubr.bf16.mxu0 0
      %1946 = vmatmul.mubr.bf16.gmra.mxu0 %v1887
      %v1947 = vpop.f32.mrf.mxu0
      %v1948 = vadd.f32 0.0, %v1947
      %v1949 = vpop.f32.mrf.mxu0
      %v1950 = vpop.f32.mrf.mxu0
      %v1951 = vadd.f32 0.0, %v1950
      %v1952 = vpop.f32.mrf.mxu0
      %1953 = vmatprep.mubr.bf16.mxu0 0
      %1954 = vmatmul.mubr.bf16.gmra.mxu0 %v1890
      %v1955 = vpop.f32.mrf.mxu0
      %v1956 = vadd.f32 0.0, %v1955
      %v1957 = vpop.f32.mrf.mxu0
      %v1958 = vpop.f32.mrf.mxu0
      %v1959 = vadd.f32 0.0, %v1958
      %v1960 = vpop.f32.mrf.mxu0
      %1961 = vmatprep.mubr.bf16.mxu0 0
      %1962 = vmatmul.mubr.bf16.gmra.mxu0 %v1893
      %v1963 = vpop.f32.mrf.mxu0
      %v1964 = vadd.f32 0.0, %v1963
      %v1965 = vpop.f32.mrf.mxu0
      %v1966 = vpop.f32.mrf.mxu0
      %v1967 = vadd.f32 0.0, %v1966
      %v1968 = vpop.f32.mrf.mxu0
      %1969 = vmatprep.mubr.bf16.mxu0 0
      %1970 = vmatmul.mubr.bf16.gmra.mxu0 %v1896
      %v1971 = vpop.f32.mrf.mxu0
      %v1972 = vadd.f32 0.0, %v1971
      %v1973 = vpop.f32.mrf.mxu0
      %v1974 = vpop.f32.mrf.mxu0
      %v1975 = vadd.f32 0.0, %v1974
      %v1976 = vpop.f32.mrf.mxu0
      %1977 = vmatprep.mubr.bf16.mxu0 0
      %1978 = vmatmul.mubr.bf16.gmra.mxu0 %v1899
      %v1979 = vpop.f32.mrf.mxu0
      %v1980 = vadd.f32 0.0, %v1979
      %v1981 = vpop.f32.mrf.mxu0
      %v1982 = vpop.f32.mrf.mxu0
      %v1983 = vadd.f32 0.0, %v1982
      %v1984 = vpop.f32.mrf.mxu0
      %1985 = vmatprep.mubr.bf16.mxu0 0
      %1986 = vmatmul.mubr.bf16.gmra.mxu0 %v1902
      %v1987 = vpop.f32.mrf.mxu0
      %v1988 = vadd.f32 0.0, %v1987
      %v1989 = vpop.f32.mrf.mxu0
      %v1990 = vpop.f32.mrf.mxu0
      %v1991 = vadd.f32 0.0, %v1990
      %v1992 = vpop.f32.mrf.mxu0
      %1993 = vmatprep.mubr.bf16.mxu0 0
      %1994 = vmatmul.mubr.bf16.gmra.mxu0 %v1905
      %v1995 = vpop.f32.mrf.mxu0
      %v1996 = vadd.f32 0.0, %v1995
      %v1997 = vpop.f32.mrf.mxu0
      %v1998 = vpop.f32.mrf.mxu0
      %v1999 = vadd.f32 0.0, %v1998
      %v2000 = vpop.f32.mrf.mxu0
      %2001 = vmatprep.mubr.bf16.mxu0 0
      %2002 = vmatmul.mubr.bf16.gmra.mxu0 %v1908
      %v2003 = vpop.f32.mrf.mxu0
      %v2004 = vadd.f32 0.0, %v2003
      %v2005 = vpop.f32.mrf.mxu0
      %v2006 = vpop.f32.mrf.mxu0
      %v2007 = vadd.f32 0.0, %v2006
      %v2008 = vpop.f32.mrf.mxu0
      %2009 = vdwg.mxu0
      %v2010 = vadd.f32 %v1808, %v1948
      %v2011 = vadd.f32 %v1809, %v1951
      %v2012 = vadd.f32 %v1810, %v1956
      %v2013 = vadd.f32 %v1811, %v1959
      %v2014 = vadd.f32 %v1812, %v1964
      %v2015 = vadd.f32 %v1813, %v1967
      %v2016 = vadd.f32 %v1814, %v1972
      %v2017 = vadd.f32 %v1815, %v1975
      %v2018 = vadd.f32 %v1816, %v1980
      %v2019 = vadd.f32 %v1817, %v1983
      %v2020 = vadd.f32 %v1818, %v1988
      %v2021 = vadd.f32 %v1819, %v1991
      %v2022 = vadd.f32 %v1820, %v1996
      %v2023 = vadd.f32 %v1821, %v1999
      %v2024 = vadd.f32 %v1822, %v2004
      %v2025 = vadd.f32 %v1823, %v2007
      %v2026 = vld [vmem:[%s1827] sm:$0xf]
      %v2027 = vld [vmem:[%s1827 + $0x4] sm:$0xf]
      %v2028 = vld [vmem:[%s1827 + $0x8] sm:$0x1]
      %v2029 = vld [vmem:[%s1827 + $0xc] sm:$0xf]
      %v2030 = vld [vmem:[%s1827 + $0x10] sm:$0xf]
      %v2031 = vld [vmem:[%s1827 + $0x14] sm:$0x1]
      %v2032 = vld [vmem:[%s1827 + $0x18] sm:$0xf]
      %v2033 = vld [vmem:[%s1827 + $0x1c] sm:$0xf]
      %v2034 = vld [vmem:[%s1827 + $0x20] sm:$0x1]
      %v2035 = vld [vmem:[%s1827 + $0x24] sm:$0xf]
      %v2036 = vld [vmem:[%s1827 + $0x28] sm:$0xf]
      %v2037 = vld [vmem:[%s1827 + $0x2c] sm:$0x1]
      %v2038 = vld [vmem:[%s1827 + $0x30] sm:$0xf]
      %v2039 = vld [vmem:[%s1827 + $0x34] sm:$0xf]
      %v2040 = vld [vmem:[%s1827 + $0x38] sm:$0x1]
      %v2041 = vld [vmem:[%s1827 + $0x3c] sm:$0xf]
      %v2042 = vld [vmem:[%s1827 + $0x40] sm:$0xf]
      %v2043 = vld [vmem:[%s1827 + $0x44] sm:$0x1]
      %v2044 = vld [vmem:[%s1827 + $0x48] sm:$0xf]
      %v2045 = vld [vmem:[%s1827 + $0x4c] sm:$0xf]
      %v2046 = vld [vmem:[%s1827 + $0x50] sm:$0x1]
      %v2047 = vld [vmem:[%s1827 + $0x54] sm:$0xf]
      %v2048 = vld [vmem:[%s1827 + $0x58] sm:$0xf]
      %v2049 = vld [vmem:[%s1827 + $0x5c] sm:$0x1]
      %v2051 = vshrl.u32 %v2026, 16
      %v2053 = vrot.slane %v2051, 4
      %v2054 = vshll.u32 %v2026, 16
      %v2056 = vrot.slane %v2054, 5
      %v2057 = vor.u32 %v2053, %v2056
      %v2058 = vrot.slane %v2057, 4
      %v2060 = vshll.u32 %v2027, 16
      %v2062 = vrot.slane %v2060, 5
      %v2063 = vsel %vm228, %v2058, %v2062
      %v2064 = vshrl.u32 %v2027, 16
      %v2066 = vrot.slane %v2064, 4
      %v2067 = vor.u32 %v2066, %v2062
      %v2068 = vrot.slane %v2067, 4
      %v2070 = vshll.u32 %v2028, 16
      %v2072 = vrot.slane %v2070, 5
      %v2073 = vsel %vm228, %v2068, %v2072
      %v2075 = vshrl.u32 %v2029, 16
      %v2077 = vrot.slane %v2075, 4
      %v2078 = vshll.u32 %v2029, 16
      %v2080 = vrot.slane %v2078, 5
      %v2081 = vor.u32 %v2077, %v2080
      %v2082 = vrot.slane %v2081, 4
      %v2084 = vshll.u32 %v2030, 16
      %v2086 = vrot.slane %v2084, 5
      %v2087 = vsel %vm228, %v2082, %v2086
      %v2088 = vshrl.u32 %v2030, 16
      %v2090 = vrot.slane %v2088, 4
      %v2091 = vor.u32 %v2090, %v2086
      %v2092 = vrot.slane %v2091, 4
      %v2094 = vshll.u32 %v2031, 16
      %v2096 = vrot.slane %v2094, 5
      %v2097 = vsel %vm228, %v2092, %v2096
      %v2099 = vshrl.u32 %v2032, 16
      %v2101 = vrot.slane %v2099, 4
      %v2102 = vshll.u32 %v2032, 16
      %v2104 = vrot.slane %v2102, 5
      %v2105 = vor.u32 %v2101, %v2104
      %v2106 = vrot.slane %v2105, 4
      %v2108 = vshll.u32 %v2033, 16
      %v2110 = vrot.slane %v2108, 5
      %v2111 = vsel %vm228, %v2106, %v2110
      %v2112 = vshrl.u32 %v2033, 16
      %v2114 = vrot.slane %v2112, 4
      %v2115 = vor.u32 %v2114, %v2110
      %v2116 = vrot.slane %v2115, 4
      %v2118 = vshll.u32 %v2034, 16
      %v2120 = vrot.slane %v2118, 5
      %v2121 = vsel %vm228, %v2116, %v2120
      %v2123 = vshrl.u32 %v2035, 16
      %v2125 = vrot.slane %v2123, 4
      %v2126 = vshll.u32 %v2035, 16
      %v2128 = vrot.slane %v2126, 5
      %v2129 = vor.u32 %v2125, %v2128
      %v2130 = vrot.slane %v2129, 4
      %v2132 = vshll.u32 %v2036, 16
      %v2134 = vrot.slane %v2132, 5
      %v2135 = vsel %vm228, %v2130, %v2134
      %v2136 = vshrl.u32 %v2036, 16
      %v2138 = vrot.slane %v2136, 4
      %v2139 = vor.u32 %v2138, %v2134
      %v2140 = vrot.slane %v2139, 4
      %v2142 = vshll.u32 %v2037, 16
      %v2144 = vrot.slane %v2142, 5
      %v2145 = vsel %vm228, %v2140, %v2144
      %v2147 = vshrl.u32 %v2038, 16
      %v2149 = vrot.slane %v2147, 4
      %v2150 = vshll.u32 %v2038, 16
      %v2152 = vrot.slane %v2150, 5
      %v2153 = vor.u32 %v2149, %v2152
      %v2154 = vrot.slane %v2153, 4
      %v2156 = vshll.u32 %v2039, 16
      %v2158 = vrot.slane %v2156, 5
      %v2159 = vsel %vm228, %v2154, %v2158
      %v2160 = vshrl.u32 %v2039, 16
      %v2162 = vrot.slane %v2160, 4
      %v2163 = vor.u32 %v2162, %v2158
      %v2164 = vrot.slane %v2163, 4
      %v2166 = vshll.u32 %v2040, 16
      %v2168 = vrot.slane %v2166, 5
      %v2169 = vsel %vm228, %v2164, %v2168
      %v2171 = vshrl.u32 %v2041, 16
      %v2173 = vrot.slane %v2171, 4
      %v2174 = vshll.u32 %v2041, 16
      %v2176 = vrot.slane %v2174, 5
      %v2177 = vor.u32 %v2173, %v2176
      %v2178 = vrot.slane %v2177, 4
      %v2180 = vshll.u32 %v2042, 16
      %v2182 = vrot.slane %v2180, 5
      %v2183 = vsel %vm228, %v2178, %v2182
      %v2184 = vshrl.u32 %v2042, 16
      %v2186 = vrot.slane %v2184, 4
      %v2187 = vor.u32 %v2186, %v2182
      %v2188 = vrot.slane %v2187, 4
      %v2190 = vshll.u32 %v2043, 16
      %v2192 = vrot.slane %v2190, 5
      %v2193 = vsel %vm228, %v2188, %v2192
      %v2195 = vshrl.u32 %v2044, 16
      %v2197 = vrot.slane %v2195, 4
      %v2198 = vshll.u32 %v2044, 16
      %v2200 = vrot.slane %v2198, 5
      %v2201 = vor.u32 %v2197, %v2200
      %v2202 = vrot.slane %v2201, 4
      %v2204 = vshll.u32 %v2045, 16
      %v2206 = vrot.slane %v2204, 5
      %v2207 = vsel %vm228, %v2202, %v2206
      %v2208 = vshrl.u32 %v2045, 16
      %v2210 = vrot.slane %v2208, 4
      %v2211 = vor.u32 %v2210, %v2206
      %v2212 = vrot.slane %v2211, 4
      %v2214 = vshll.u32 %v2046, 16
      %v2216 = vrot.slane %v2214, 5
      %v2217 = vsel %vm228, %v2212, %v2216
      %v2219 = vshrl.u32 %v2047, 16
      %v2221 = vrot.slane %v2219, 4
      %v2222 = vshll.u32 %v2047, 16
      %v2224 = vrot.slane %v2222, 5
      %v2225 = vor.u32 %v2221, %v2224
      %v2226 = vrot.slane %v2225, 4
      %v2228 = vshll.u32 %v2048, 16
      %v2230 = vrot.slane %v2228, 5
      %v2231 = vsel %vm228, %v2226, %v2230
      %v2232 = vshrl.u32 %v2048, 16
      %v2234 = vrot.slane %v2232, 4
      %v2235 = vor.u32 %v2234, %v2230
      %v2236 = vrot.slane %v2235, 4
      %v2238 = vshll.u32 %v2049, 16
      %v2240 = vrot.slane %v2238, 5
      %v2241 = vsel %vm228, %v2236, %v2240
      %s2242 = scalar_lea.vmem %s1, 14
      %v2243 = vld [vmem:[%s2242] sm:$0x3]
      %v2244 = vunpack.c.l.b16 %v2063
      %v2245 = vunpack.c.l.b16 %v2073
      %v2246 = vunpack.c.l.b16 %v2087
      %v2247 = vunpack.c.l.b16 %v2097
      %v2248 = vunpack.c.l.b16 %v2111
      %v2249 = vunpack.c.l.b16 %v2121
      %v2250 = vunpack.c.l.b16 %v2135
      %v2251 = vunpack.c.l.b16 %v2145
      %v2252 = vunpack.c.l.b16 %v2159
      %v2253 = vunpack.c.l.b16 %v2169
      %v2254 = vunpack.c.l.b16 %v2183
      %v2255 = vunpack.c.l.b16 %v2193
      %v2256 = vunpack.c.l.b16 %v2207
      %v2257 = vunpack.c.l.b16 %v2217
      %v2258 = vunpack.c.l.b16 %v2231
      %v2259 = vunpack.c.l.b16 %v2241
      %v2260 = vpack.c.b16 %v2245, %v2244
      %v2261 = vpack.c.b16 %v2247, %v2246
      %v2262 = vpack.c.b16 %v2249, %v2248
      %v2263 = vpack.c.b16 %v2251, %v2250
      %v2264 = vpack.c.b16 %v2253, %v2252
      %v2265 = vpack.c.b16 %v2255, %v2254
      %v2266 = vpack.c.b16 %v2257, %v2256
      %v2267 = vpack.c.b16 %v2259, %v2258
      %v2269 = vsel %vm447, %v2260, 0
      %v2272 = vsel %vm447, %v2261, 0
      %v2275 = vsel %vm447, %v2262, 0
      %v2278 = vsel %vm447, %v2263, 0
      %v2281 = vsel %vm447, %v2264, 0
      %v2284 = vsel %vm447, %v2265, 0
      %v2287 = vsel %vm447, %v2266, 0
      %v2290 = vsel %vm447, %v2267, 0
      %v2293 = vsel %vm472, %v2243, 0
      %2295 = vmatprep.subr.bf16.mxu0 0
      %2296 = vmatpush1.bf16.msra.mxu0 0
      %2297 = vmatprep.subr.bf16.mxu0 0
      %2298 = vmatpush1.bf16.msra.mxu0 0
      %2299 = vmatprep.subr.bf16.mxu0 0
      %2300 = vmatpush1.bf16.msra.mxu0 0
      %2301 = vmatprep.subr.bf16.mxu0 0
      %2302 = vmatpush1.bf16.msra.mxu0 0
      %2303 = vmatprep.subr.bf16.mxu0 0
      %2304 = vmatpush1.bf16.msra.mxu0 0
      %2305 = vmatprep.subr.bf16.mxu0 0
      %2306 = vmatpush1.bf16.msra.mxu0 0
      %2307 = vmatprep.subr.bf16.mxu0 0
      %2308 = vmatpush1.bf16.msra.mxu0 0
      %2309 = vmatprep.subr.bf16.mxu0 0
      %2310 = vmatpush1.bf16.msra.mxu0 %v2293
      %2311 = vmatprep.subr.bf16.mxu0 0
      %2312 = vmatpush2.bf16.msra.mxu0 0
      %2313 = vmatprep.subr.bf16.mxu0 0
      %2314 = vmatpush2.bf16.msra.mxu0 0
      %2315 = vmatprep.subr.bf16.mxu0 0
      %2316 = vmatpush2.bf16.msra.mxu0 0
      %2317 = vmatprep.subr.bf16.mxu0 0
      %2318 = vmatpush2.bf16.msra.mxu0 0
      %2319 = vmatprep.subr.bf16.mxu0 0
      %2320 = vmatpush2.bf16.msra.mxu0 0
      %2321 = vmatprep.subr.bf16.mxu0 0
      %2322 = vmatpush2.bf16.msra.mxu0 0
      %2323 = vmatprep.subr.bf16.mxu0 0
      %2324 = vmatpush2.bf16.msra.mxu0 0
      %2325 = vmatprep.subr.bf16.mxu0 0
      %2326 = vmatpush2.bf16.msra.mxu0 0
      %2327 = vmatprep.mubr.bf16.mxu0 0
      %2328 = vmatmul.mubr.bf16.gmra.mxu0 %v2269
      %v2329 = vpop.f32.mrf.mxu0
      %v2330 = vadd.f32 0.0, %v2329
      %v2331 = vpop.f32.mrf.mxu0
      %v2332 = vpop.f32.mrf.mxu0
      %v2333 = vadd.f32 0.0, %v2332
      %v2334 = vpop.f32.mrf.mxu0
      %2335 = vmatprep.mubr.bf16.mxu0 0
      %2336 = vmatmul.mubr.bf16.gmra.mxu0 %v2272
      %v2337 = vpop.f32.mrf.mxu0
      %v2338 = vadd.f32 0.0, %v2337
      %v2339 = vpop.f32.mrf.mxu0
      %v2340 = vpop.f32.mrf.mxu0
      %v2341 = vadd.f32 0.0, %v2340
      %v2342 = vpop.f32.mrf.mxu0
      %2343 = vmatprep.mubr.bf16.mxu0 0
      %2344 = vmatmul.mubr.bf16.gmra.mxu0 %v2275
      %v2345 = vpop.f32.mrf.mxu0
      %v2346 = vadd.f32 0.0, %v2345
      %v2347 = vpop.f32.mrf.mxu0
      %v2348 = vpop.f32.mrf.mxu0
      %v2349 = vadd.f32 0.0, %v2348
      %v2350 = vpop.f32.mrf.mxu0
      %2351 = vmatprep.mubr.bf16.mxu0 0
      %2352 = vmatmul.mubr.bf16.gmra.mxu0 %v2278
      %v2353 = vpop.f32.mrf.mxu0
      %v2354 = vadd.f32 0.0, %v2353
      %v2355 = vpop.f32.mrf.mxu0
      %v2356 = vpop.f32.mrf.mxu0
      %v2357 = vadd.f32 0.0, %v2356
      %v2358 = vpop.f32.mrf.mxu0
      %2359 = vmatprep.mubr.bf16.mxu0 0
      %2360 = vmatmul.mubr.bf16.gmra.mxu0 %v2281
      %v2361 = vpop.f32.mrf.mxu0
      %v2362 = vadd.f32 0.0, %v2361
      %v2363 = vpop.f32.mrf.mxu0
      %v2364 = vpop.f32.mrf.mxu0
      %v2365 = vadd.f32 0.0, %v2364
      %v2366 = vpop.f32.mrf.mxu0
      %2367 = vmatprep.mubr.bf16.mxu0 0
      %2368 = vmatmul.mubr.bf16.gmra.mxu0 %v2284
      %v2369 = vpop.f32.mrf.mxu0
      %v2370 = vadd.f32 0.0, %v2369
      %v2371 = vpop.f32.mrf.mxu0
      %v2372 = vpop.f32.mrf.mxu0
      %v2373 = vadd.f32 0.0, %v2372
      %v2374 = vpop.f32.mrf.mxu0
      %2375 = vmatprep.mubr.bf16.mxu0 0
      %2376 = vmatmul.mubr.bf16.gmra.mxu0 %v2287
      %v2377 = vpop.f32.mrf.mxu0
      %v2378 = vadd.f32 0.0, %v2377
      %v2379 = vpop.f32.mrf.mxu0
      %v2380 = vpop.f32.mrf.mxu0
      %v2381 = vadd.f32 0.0, %v2380
      %v2382 = vpop.f32.mrf.mxu0
      %2383 = vmatprep.mubr.bf16.mxu0 0
      %2384 = vmatmul.mubr.bf16.gmra.mxu0 %v2290
      %v2385 = vpop.f32.mrf.mxu0
      %v2386 = vadd.f32 0.0, %v2385
      %v2387 = vpop.f32.mrf.mxu0
      %v2388 = vpop.f32.mrf.mxu0
      %v2389 = vadd.f32 0.0, %v2388
      %v2390 = vpop.f32.mrf.mxu0
      %2391 = vdwg.mxu0
      %v2392 = vadd.f32 %v2010, %v2330
      %v2393 = vadd.f32 %v2011, %v2333
      %v2394 = vadd.f32 %v2012, %v2338
      %v2395 = vadd.f32 %v2013, %v2341
      %v2396 = vadd.f32 %v2014, %v2346
      %v2397 = vadd.f32 %v2015, %v2349
      %v2398 = vadd.f32 %v2016, %v2354
      %v2399 = vadd.f32 %v2017, %v2357
      %v2400 = vadd.f32 %v2018, %v2362
      %v2401 = vadd.f32 %v2019, %v2365
      %v2402 = vadd.f32 %v2020, %v2370
      %v2403 = vadd.f32 %v2021, %v2373
      %v2404 = vadd.f32 %v2022, %v2378
      %v2405 = vadd.f32 %v2023, %v2381
      %v2406 = vadd.f32 %v2024, %v2386
      %v2407 = vadd.f32 %v2025, %v2389
      %v2408 = vld [vmem:[%s1827] sm:$0xe]
      %v2409 = vld [vmem:[%s1827 + $0xc] sm:$0xe]
      %v2410 = vld [vmem:[%s1827 + $0x18] sm:$0xe]
      %v2411 = vld [vmem:[%s1827 + $0x24] sm:$0xe]
      %v2412 = vld [vmem:[%s1827 + $0x30] sm:$0xe]
      %v2413 = vld [vmem:[%s1827 + $0x3c] sm:$0xe]
      %v2414 = vld [vmem:[%s1827 + $0x48] sm:$0xe]
      %v2415 = vld [vmem:[%s1827 + $0x54] sm:$0xe]
      %v2440 = vrot.slane %v2408, 5
      %v2441 = vrot.slane %v2440, 4
      %v2442 = vrot.slane %v2027, 5
      %v2443 = vsel %vm763, %v2441, %v2442
      %v2444 = vrot.slane %v2442, 4
      %v2445 = vrot.slane %v2028, 5
      %v2446 = vsel %vm763, %v2444, %v2445
      %v2447 = vrot.slane %v2409, 5
      %v2448 = vrot.slane %v2447, 4
      %v2449 = vrot.slane %v2030, 5
      %v2450 = vsel %vm763, %v2448, %v2449
      %v2451 = vrot.slane %v2449, 4
      %v2452 = vrot.slane %v2031, 5
      %v2453 = vsel %vm763, %v2451, %v2452
      %v2454 = vrot.slane %v2410, 5
      %v2455 = vrot.slane %v2454, 4
      %v2456 = vrot.slane %v2033, 5
      %v2457 = vsel %vm763, %v2455, %v2456
      %v2458 = vrot.slane %v2456, 4
      %v2459 = vrot.slane %v2034, 5
      %v2460 = vsel %vm763, %v2458, %v2459
      %v2461 = vrot.slane %v2411, 5
      %v2462 = vrot.slane %v2461, 4
      %v2463 = vrot.slane %v2036, 5
      %v2464 = vsel %vm763, %v2462, %v2463
      %v2465 = vrot.slane %v2463, 4
      %v2466 = vrot.slane %v2037, 5
      %v2467 = vsel %vm763, %v2465, %v2466
      %v2468 = vrot.slane %v2412, 5
      %v2469 = vrot.slane %v2468, 4
      %v2470 = vrot.slane %v2039, 5
      %v2471 = vsel %vm763, %v2469, %v2470
      %v2472 = vrot.slane %v2470, 4
      %v2473 = vrot.slane %v2040, 5
      %v2474 = vsel %vm763, %v2472, %v2473
      %v2475 = vrot.slane %v2413, 5
      %v2476 = vrot.slane %v2475, 4
      %v2477 = vrot.slane %v2042, 5
      %v2478 = vsel %vm763, %v2476, %v2477
      %v2479 = vrot.slane %v2477, 4
      %v2480 = vrot.slane %v2043, 5
      %v2481 = vsel %vm763, %v2479, %v2480
      %v2482 = vrot.slane %v2414, 5
      %v2483 = vrot.slane %v2482, 4
      %v2484 = vrot.slane %v2045, 5
      %v2485 = vsel %vm763, %v2483, %v2484
      %v2486 = vrot.slane %v2484, 4
      %v2487 = vrot.slane %v2046, 5
      %v2488 = vsel %vm763, %v2486, %v2487
      %v2489 = vrot.slane %v2415, 5
      %v2490 = vrot.slane %v2489, 4
      %v2491 = vrot.slane %v2048, 5
      %v2492 = vsel %vm763, %v2490, %v2491
      %v2493 = vrot.slane %v2491, 4
      %v2494 = vrot.slane %v2049, 5
      %v2495 = vsel %vm763, %v2493, %v2494
      %s2496 = scalar_lea.vmem %s1, 16
      %v2497 = vld [vmem:[%s2496] sm:$0x3]
      %v2498 = vunpack.c.l.b16 %v2443
      %v2499 = vunpack.c.l.b16 %v2446
      %v2500 = vunpack.c.l.b16 %v2450
      %v2501 = vunpack.c.l.b16 %v2453
      %v2502 = vunpack.c.l.b16 %v2457
      %v2503 = vunpack.c.l.b16 %v2460
      %v2504 = vunpack.c.l.b16 %v2464
      %v2505 = vunpack.c.l.b16 %v2467
      %v2506 = vunpack.c.l.b16 %v2471
      %v2507 = vunpack.c.l.b16 %v2474
      %v2508 = vunpack.c.l.b16 %v2478
      %v2509 = vunpack.c.l.b16 %v2481
      %v2510 = vunpack.c.l.b16 %v2485
      %v2511 = vunpack.c.l.b16 %v2488
      %v2512 = vunpack.c.l.b16 %v2492
      %v2513 = vunpack.c.l.b16 %v2495
      %v2514 = vpack.c.b16 %v2499, %v2498
      %v2515 = vpack.c.b16 %v2501, %v2500
      %v2516 = vpack.c.b16 %v2503, %v2502
      %v2517 = vpack.c.b16 %v2505, %v2504
      %v2518 = vpack.c.b16 %v2507, %v2506
      %v2519 = vpack.c.b16 %v2509, %v2508
      %v2520 = vpack.c.b16 %v2511, %v2510
      %v2521 = vpack.c.b16 %v2513, %v2512
      %v2523 = vsel %vm447, %v2514, 0
      %v2526 = vsel %vm447, %v2515, 0
      %v2529 = vsel %vm447, %v2516, 0
      %v2532 = vsel %vm447, %v2517, 0
      %v2535 = vsel %vm447, %v2518, 0
      %v2538 = vsel %vm447, %v2519, 0
      %v2541 = vsel %vm447, %v2520, 0
      %v2544 = vsel %vm447, %v2521, 0
      %v2547 = vsel %vm472, %v2497, 0
      %2549 = vmatprep.subr.bf16.mxu0 0
      %2550 = vmatpush1.bf16.msra.mxu0 0
      %2551 = vmatprep.subr.bf16.mxu0 0
      %2552 = vmatpush1.bf16.msra.mxu0 0
      %2553 = vmatprep.subr.bf16.mxu0 0
      %2554 = vmatpush1.bf16.msra.mxu0 0
      %2555 = vmatprep.subr.bf16.mxu0 0
      %2556 = vmatpush1.bf16.msra.mxu0 0
      %2557 = vmatprep.subr.bf16.mxu0 0
      %2558 = vmatpush1.bf16.msra.mxu0 0
      %2559 = vmatprep.subr.bf16.mxu0 0
      %2560 = vmatpush1.bf16.msra.mxu0 0
      %2561 = vmatprep.subr.bf16.mxu0 0
      %2562 = vmatpush1.bf16.msra.mxu0 0
      %2563 = vmatprep.subr.bf16.mxu0 0
      %2564 = vmatpush1.bf16.msra.mxu0 %v2547
      %2565 = vmatprep.subr.bf16.mxu0 0
      %2566 = vmatpush2.bf16.msra.mxu0 0
      %2567 = vmatprep.subr.bf16.mxu0 0
      %2568 = vmatpush2.bf16.msra.mxu0 0
      %2569 = vmatprep.subr.bf16.mxu0 0
      %2570 = vmatpush2.bf16.msra.mxu0 0
      %2571 = vmatprep.subr.bf16.mxu0 0
      %2572 = vmatpush2.bf16.msra.mxu0 0
      %2573 = vmatprep.subr.bf16.mxu0 0
      %2574 = vmatpush2.bf16.msra.mxu0 0
      %2575 = vmatprep.subr.bf16.mxu0 0
      %2576 = vmatpush2.bf16.msra.mxu0 0
      %2577 = vmatprep.subr.bf16.mxu0 0
      %2578 = vmatpush2.bf16.msra.mxu0 0
      %2579 = vmatprep.subr.bf16.mxu0 0
      %2580 = vmatpush2.bf16.msra.mxu0 0
      %2581 = vmatprep.mubr.bf16.mxu0 0
      %2582 = vmatmul.mubr.bf16.gmra.mxu0 %v2523
      %v2583 = vpop.f32.mrf.mxu0
      %v2584 = vadd.f32 0.0, %v2583
      %v2585 = vpop.f32.mrf.mxu0
      %v2586 = vpop.f32.mrf.mxu0
      %v2587 = vadd.f32 0.0, %v2586
      %v2588 = vpop.f32.mrf.mxu0
      %2589 = vmatprep.mubr.bf16.mxu0 0
      %2590 = vmatmul.mubr.bf16.gmra.mxu0 %v2526
      %v2591 = vpop.f32.mrf.mxu0
      %v2592 = vadd.f32 0.0, %v2591
      %v2593 = vpop.f32.mrf.mxu0
      %v2594 = vpop.f32.mrf.mxu0
      %v2595 = vadd.f32 0.0, %v2594
      %v2596 = vpop.f32.mrf.mxu0
      %2597 = vmatprep.mubr.bf16.mxu0 0
      %2598 = vmatmul.mubr.bf16.gmra.mxu0 %v2529
      %v2599 = vpop.f32.mrf.mxu0
      %v2600 = vadd.f32 0.0, %v2599
      %v2601 = vpop.f32.mrf.mxu0
      %v2602 = vpop.f32.mrf.mxu0
      %v2603 = vadd.f32 0.0, %v2602
      %v2604 = vpop.f32.mrf.mxu0
      %2605 = vmatprep.mubr.bf16.mxu0 0
      %2606 = vmatmul.mubr.bf16.gmra.mxu0 %v2532
      %v2607 = vpop.f32.mrf.mxu0
      %v2608 = vadd.f32 0.0, %v2607
      %v2609 = vpop.f32.mrf.mxu0
      %v2610 = vpop.f32.mrf.mxu0
      %v2611 = vadd.f32 0.0, %v2610
      %v2612 = vpop.f32.mrf.mxu0
      %2613 = vmatprep.mubr.bf16.mxu0 0
      %2614 = vmatmul.mubr.bf16.gmra.mxu0 %v2535
      %v2615 = vpop.f32.mrf.mxu0
      %v2616 = vadd.f32 0.0, %v2615
      %v2617 = vpop.f32.mrf.mxu0
      %v2618 = vpop.f32.mrf.mxu0
      %v2619 = vadd.f32 0.0, %v2618
      %v2620 = vpop.f32.mrf.mxu0
      %2621 = vmatprep.mubr.bf16.mxu0 0
      %2622 = vmatmul.mubr.bf16.gmra.mxu0 %v2538
      %v2623 = vpop.f32.mrf.mxu0
      %v2624 = vadd.f32 0.0, %v2623
      %v2625 = vpop.f32.mrf.mxu0
      %v2626 = vpop.f32.mrf.mxu0
      %v2627 = vadd.f32 0.0, %v2626
      %v2628 = vpop.f32.mrf.mxu0
      %2629 = vmatprep.mubr.bf16.mxu0 0
      %2630 = vmatmul.mubr.bf16.gmra.mxu0 %v2541
      %v2631 = vpop.f32.mrf.mxu0
      %v2632 = vadd.f32 0.0, %v2631
      %v2633 = vpop.f32.mrf.mxu0
      %v2634 = vpop.f32.mrf.mxu0
      %v2635 = vadd.f32 0.0, %v2634
      %v2636 = vpop.f32.mrf.mxu0
      %2637 = vmatprep.mubr.bf16.mxu0 0
      %2638 = vmatmul.mubr.bf16.gmra.mxu0 %v2544
      %v2639 = vpop.f32.mrf.mxu0
      %v2640 = vadd.f32 0.0, %v2639
      %v2641 = vpop.f32.mrf.mxu0
      %v2642 = vpop.f32.mrf.mxu0
      %v2643 = vadd.f32 0.0, %v2642
      %v2644 = vpop.f32.mrf.mxu0
      %2645 = vdwg.mxu0
      %v2646 = vadd.f32 %v2392, %v2584
      %v2647 = vadd.f32 %v2393, %v2587
      %v2648 = vadd.f32 %v2394, %v2592
      %v2649 = vadd.f32 %v2395, %v2595
      %v2650 = vadd.f32 %v2396, %v2600
      %v2651 = vadd.f32 %v2397, %v2603
      %v2652 = vadd.f32 %v2398, %v2608
      %v2653 = vadd.f32 %v2399, %v2611
      %v2654 = vadd.f32 %v2400, %v2616
      %v2655 = vadd.f32 %v2401, %v2619
      %v2656 = vadd.f32 %v2402, %v2624
      %v2657 = vadd.f32 %v2403, %v2627
      %v2658 = vadd.f32 %v2404, %v2632
      %v2659 = vadd.f32 %v2405, %v2635
      %v2660 = vadd.f32 %v2406, %v2640
      %v2661 = vadd.f32 %v2407, %v2643
      %v2662 = vld [vmem:[%s2] sm:$0x1]
      %v2664 = vlaneseq
      %v2665 = vshrl.u32 %v2664, 7
      %v2666 = vsub.s32 0, %v2665
      %v2667 = vrot.slane %v2662, %v2666
      %v2669 = vadd.f32 %v2646, %v2667
      %v2670 = vadd.f32 %v2647, %v2667
      %v2671 = vadd.f32 %v2648, %v2667
      %v2672 = vadd.f32 %v2649, %v2667
      %v2673 = vadd.f32 %v2650, %v2667
      %v2674 = vadd.f32 %v2651, %v2667
      %v2675 = vadd.f32 %v2652, %v2667
      %v2676 = vadd.f32 %v2653, %v2667
      %v2677 = vadd.f32 %v2654, %v2667
      %v2678 = vadd.f32 %v2655, %v2667
      %v2679 = vadd.f32 %v2656, %v2667
      %v2680 = vadd.f32 %v2657, %v2667
      %v2681 = vadd.f32 %v2658, %v2667
      %v2682 = vadd.f32 %v2659, %v2667
      %v2683 = vadd.f32 %v2660, %v2667
      %v2684 = vadd.f32 %v2661, %v2667
      %v2685 = vmax.f32 %v2669, 0.0
      %v2686 = vmax.f32 %v2670, 0.0
      %v2687 = vmax.f32 %v2671, 0.0
      %v2688 = vmax.f32 %v2672, 0.0
      %v2689 = vmax.f32 %v2673, 0.0
      %v2690 = vmax.f32 %v2674, 0.0
      %v2691 = vmax.f32 %v2675, 0.0
      %v2692 = vmax.f32 %v2676, 0.0
      %v2693 = vmax.f32 %v2677, 0.0
      %v2694 = vmax.f32 %v2678, 0.0
      %v2695 = vmax.f32 %v2679, 0.0
      %v2696 = vmax.f32 %v2680, 0.0
      %v2697 = vmax.f32 %v2681, 0.0
      %v2698 = vmax.f32 %v2682, 0.0
      %v2699 = vmax.f32 %v2683, 0.0
      %v2700 = vmax.f32 %v2684, 0.0
      %v2701 = vpack.c.bf16 %v2686, %v2685
      %v2702 = vpack.c.bf16 %v2688, %v2687
      %v2703 = vpack.c.bf16 %v2690, %v2689
      %v2704 = vpack.c.bf16 %v2692, %v2691
      %v2705 = vpack.c.bf16 %v2694, %v2693
      %v2706 = vpack.c.bf16 %v2696, %v2695
      %v2707 = vpack.c.bf16 %v2698, %v2697
      %v2708 = vpack.c.bf16 %v2700, %v2699
      %v2717 = vunpack.c.l.b16 %v2701
      %v2718 = vunpack.c.h.b16 %v2701
      %v2719 = vunpack.c.l.b16 %v2702
      %v2720 = vunpack.c.h.b16 %v2702
      %v2721 = vunpack.c.l.b16 %v2703
      %v2722 = vunpack.c.h.b16 %v2703
      %v2723 = vunpack.c.l.b16 %v2704
      %v2724 = vunpack.c.h.b16 %v2704
      %v2725 = vunpack.c.l.b16 %v2705
      %v2726 = vunpack.c.h.b16 %v2705
      %v2727 = vunpack.c.l.b16 %v2706
      %v2728 = vunpack.c.h.b16 %v2706
      %v2729 = vunpack.c.l.b16 %v2707
      %v2730 = vunpack.c.h.b16 %v2707
      %v2731 = vunpack.c.l.b16 %v2708
      %v2732 = vunpack.c.h.b16 %v2708
      %v2733 = vpack.c.b16 %v2717, %v2717
      %v2734 = vpack.c.b16 %v2718, %v2718
      %v2735 = vpack.c.b16 %v2719, %v2719
      %v2736 = vpack.c.b16 %v2720, %v2720
      %v2737 = vpack.c.b16 %v2721, %v2721
      %v2738 = vpack.c.b16 %v2722, %v2722
      %v2739 = vpack.c.b16 %v2723, %v2723
      %v2740 = vpack.c.b16 %v2724, %v2724
      %v2741 = vpack.c.b16 %v2725, %v2725
      %v2742 = vpack.c.b16 %v2726, %v2726
      %v2743 = vpack.c.b16 %v2727, %v2727
      %v2744 = vpack.c.b16 %v2728, %v2728
      %v2745 = vpack.c.b16 %v2729, %v2729
      %v2746 = vpack.c.b16 %v2730, %v2730
      %v2747 = vpack.c.b16 %v2731, %v2731
      %v2748 = vpack.c.b16 %v2732, %v2732
      %2765 = vst [vmem:[%s194] sm:$0xf] %v2733
      %2766 = vst [vmem:[%s194 + $0x4] sm:$0xf] %v2734
      %2767 = vst [vmem:[%s194 + $0x8] sm:$0xf] %v2735
      %2768 = vst [vmem:[%s194 + $0xc] sm:$0xf] %v2736
      %2769 = vst [vmem:[%s194 + $0x10] sm:$0xf] %v2737
      %2770 = vst [vmem:[%s194 + $0x14] sm:$0xf] %v2738
      %2771 = vst [vmem:[%s194 + $0x18] sm:$0xf] %v2739
      %2772 = vst [vmem:[%s194 + $0x1c] sm:$0xf] %v2740
      %2773 = vst [vmem:[%s194 + $0x20] sm:$0xf] %v2741
      %2774 = vst [vmem:[%s194 + $0x24] sm:$0xf] %v2742
      %2775 = vst [vmem:[%s194 + $0x28] sm:$0xf] %v2743
      %2776 = vst [vmem:[%s194 + $0x2c] sm:$0xf] %v2744
      %2777 = vst [vmem:[%s194 + $0x30] sm:$0xf] %v2745
      %2778 = vst [vmem:[%s194 + $0x34] sm:$0xf] %v2746
      %2779 = vst [vmem:[%s194 + $0x38] sm:$0xf] %v2747
      %2780 = vst [vmem:[%s194 + $0x3c] sm:$0xf] %v2748
      %s2781 = smul.u32 8, %s19
      %p2782 = scmp.lt.s32.totalorder %s18, 1
      %s2783 = scalar_select %p2782, %s18, 1
      %p2784 = scmp.lt.s32.totalorder %s2781, 15
      %s2785 = scalar_select %p2784, %s2781, 15
      %s2786 = smul.addr %s2785, 2
      %s2787 = smul.addr %s2783, 32
      %s2788 = sadd.s32 %s2786, %s2787
      %s2789 = smul.addr %s2788, 4
      %s2790 = scalar_lea.vmem %s3, %s2789
      // Predicated region
      $region33: #{hyper_analysis_ex.3} parent=31 // pred_check
        %p2791 = pneg %p114
      $region34: #{hyper_analysis_ex.3} parent=31 // pred_check_branch
        %2793 = sbr.rel (%p2791) target = $region36
      $region35: #{hyper_analysis_ex.3} parent=31 // pred_region
        %s2794 = smul.u32 8, %s19
      $region36: #{hyper_analysis_ex.3} parent=31 // pred_fallthru
        _
    $region32: #{hyper_analysis_ex.3} parent=5 // pred_fallthru
      _
    %p2795 = scmp.le.s32.totalorder 2, %s9
    // Predicated region
    $region37: #{hyper_analysis_ex.3} parent=5 // pred_check
      %p2796 = pneg %p2795
    $region38: #{hyper_analysis_ex.3} parent=5 // pred_check_branch
      %2798 = sbr.rel (%p2796) target = $region40
    $region39: #{hyper_analysis_ex.3} parent=5 // pred_region
      %s2799 = ssub.s32 %s9, 2
      // Predicated region
      $region41: #{hyper_analysis_ex.3} parent=39 // pred_check
        %p2800 = pneg %p120
      $region42: #{hyper_analysis_ex.3} parent=39 // pred_check_branch
        %2802 = sbr.rel (%p2800) target = $region44
      $region43: #{hyper_analysis_ex.3} parent=39 // pred_region
        %s2803 = smul.u32 8, %s21
        %p2804 = scmp.lt.s32.totalorder %s20, 1
        %s2805 = scalar_select %p2804, %s20, 1
        %p2806 = scmp.lt.s32.totalorder %s2803, 15
        %s2807 = scalar_select %p2806, %s2803, 15
        %s2808 = smul.addr %s2807, 2
        %s2809 = smul.addr %s2805, 32
        %s2810 = sadd.s32 %s2808, %s2809
        %s2811 = smul.addr %s2810, 4
        %s2812 = scalar_lea.vmem %s3, %s2811
      $region44: #{hyper_analysis_ex.3} parent=39 // pred_fallthru
        _
    $region40: #{hyper_analysis_ex.3} parent=5 // pred_fallthru
      _
  $region6: #{hyper_analysis_ex.3} parent=0 // loop_footer
    %s13 = sadd.s32 1, %s9
  $region7: #{hyper_analysis_ex.3} parent=0 // loop_footer_branch
    %8 = sbr.rel target = $region3
  $region8: #{hyper_analysis_ex.3} parent=0 // loop_exit
    _

// kernel: hyper_analysis_ex.5
$region0: #{hyper_analysis_ex.5}
  #allocation0 [shape = 'u32[]', space=smem, size = 0x4, offset = 0x4, fixed_abs, tag = 'smem constant byte address 0x4 - core index']
  #allocation1 [shape = 'u32[144,128]{1,0:T(1,128)}', space=vmem, size = 0x12000, scoped, tag = 'internal scratch']
  %s0 = inlined_call_operand.vmem [shape: bf16[2,6,18,32], index: 0, kind: input, shape index: {}]
  %s1 = inlined_call_operand.vmem [shape: bf16[9,32,128], index: 1, kind: input, shape index: {}]
  %s2 = inlined_call_operand.vmem [shape: f32[1,128], index: 2, kind: input, shape index: {}]
  %s3 = inlined_call_operand.vmem [shape: bf16[2,4,16,128], index: 3, kind: output, shape index: {}]
  %s4 = sld [smem:[#allocation0]]
  $region45: #{hyper_analysis_ex.5} parent=0
    _
  %s6 = ssub.s32 1, %s4
  %s7 = scalar_select 0, %s6, %s4
  loop: start=0, step=1, limit=6
  $region2: #{hyper_analysis_ex.5} parent=0 // loop_pre_header
    _
  $region3: #{hyper_analysis_ex.5} parent=0 // loop_header
    %s9 = sphi 0, %s13
    %p10 = scmp.ge.s32.totalorder %s9, 6
    %s16 = sphi 0, %s28
    %s17 = sphi 0, %s24
    %s18 = sphi 0, %s16
    %s19 = sphi 0, %s17
    %s20 = sphi 0, %s18
    %s21 = sphi 0, %s19
    %s31 = sphi 0, %s33
    %s34 = sphi 0, %s31
    %s35 = sphi 0, %s34
    %s51 = sphi 0, %s35
    %s55 = sphi 0, %s55
    %s57 = sphi 0, %s55
    %s58 = sphi 0, %s57
    %s72 = sphi 0, %s58
    %s76 = sphi 0, %s76
    %s78 = sphi 0, %s76
    %s79 = sphi 0, %s78
    %s93 = sphi 0, %s79
    %s101 = sphi 0, %s103
    %s104 = sphi 0, %s101
    %s105 = sphi 0, %s104
    %s121 = sphi 0, %s105
  $region4: #{hyper_analysis_ex.5} parent=0 // loop_header_branch
    %12 = sbr.rel (%p10) target = $region8
  $region5: #{hyper_analysis_ex.5} parent=0 // loop_body
    %s14 = ssub.s32 %s9, 1
    %s15 = ssub.s32 %s9, 2
    %s22 = sadd.s32 1, %s17
    %p23 = scmp.ge.s32.totalorder %s22, 2
    %s24 = scalar_select %p23, 0, %s22
    %s25 = sadd.s32 1, %s16
    %s26 = scalar_select %p23, %s25, %s16
    %p27 = scmp.ge.s32.totalorder %s26, 2
    %s28 = scalar_select %p27, 0, %s26
    %s29 = ssub.s32 %s16, %s28
    %p30 = scmp.eq.s32.totalorder %s29, 0
    %s32 = sadd.s32 %s31, 1
    %s33 = scalar_select %p30, %s31, %s32
    %p36 = pneg %p30
    %p37 = scmp.eq.s32.totalorder %s9, 3
    %p38 = por %p36, %p37
    %p39 = scmp.ne.s32.totalorder %s31, %s34
    %p40 = scmp.eq.s32.totalorder %s9, 0
    %p41 = por %p39, %p40
    %p42 = scmp.ne.s32.totalorder %s31, %s34
    %p43 = scmp.eq.s32.totalorder %s14, 3
    %p44 = por %p42, %p43
    %p45 = scmp.ne.s32.totalorder %s34, %s35
    %p46 = scmp.eq.s32.totalorder %s14, 0
    %p47 = por %p45, %p46
    %p48 = scmp.ne.s32.totalorder %s34, %s35
    %p49 = scmp.eq.s32.totalorder %s15, 3
    %p50 = por %p48, %p49
    %p52 = scmp.ne.s32.totalorder %s35, %s51
    %p53 = scmp.eq.s32.totalorder %s15, 0
    %p54 = por %p52, %p53
    %s56 = sadd.s32 %s55, 1
    %p59 = scmp.eq.s32.totalorder %s9, 3
    %p60 = scmp.ne.s32.totalorder %s55, %s57
    %p61 = scmp.eq.s32.totalorder %s9, 0
    %p62 = por %p60, %p61
    %p63 = scmp.ne.s32.totalorder %s55, %s57
    %p64 = scmp.eq.s32.totalorder %s14, 3
    %p65 = por %p63, %p64
    %p66 = scmp.ne.s32.totalorder %s57, %s58
    %p67 = scmp.eq.s32.totalorder %s14, 0
    %p68 = por %p66, %p67
    %p69 = scmp.ne.s32.totalorder %s57, %s58
    %p70 = scmp.eq.s32.totalorder %s15, 3
    %p71 = por %p69, %p70
    %p73 = scmp.ne.s32.totalorder %s58, %s72
    %p74 = scmp.eq.s32.totalorder %s15, 0
    %p75 = por %p73, %p74
    %s77 = sadd.s32 %s76, 1
    %p80 = scmp.eq.s32.totalorder %s9, 3
    %p81 = scmp.ne.s32.totalorder %s76, %s78
    %p82 = scmp.eq.s32.totalorder %s9, 0
    %p83 = por %p81, %p82
    %p84 = scmp.ne.s32.totalorder %s76, %s78
    %p85 = scmp.eq.s32.totalorder %s14, 3
    %p86 = por %p84, %p85
    %p87 = scmp.ne.s32.totalorder %s78, %s79
    %p88 = scmp.eq.s32.totalorder %s14, 0
    %p89 = por %p87, %p88
    %p90 = scmp.ne.s32.totalorder %s78, %s79
    %p91 = scmp.eq.s32.totalorder %s15, 3
    %p92 = por %p90, %p91
    %p94 = scmp.ne.s32.totalorder %s79, %s93
    %p95 = scmp.eq.s32.totalorder %s15, 0
    %p96 = por %p94, %p95
    %s97 = ssub.s32 %s16, %s28
    %s98 = ssub.s32 %s17, %s24
    %s99 = sor.u32 %s97, %s98
    %p100 = scmp.eq.s32.totalorder %s99, 0
    %s102 = sadd.s32 %s101, 1
    %s103 = scalar_select %p100, %s101, %s102
    %p106 = pneg %p100
    %p107 = scmp.eq.s32.totalorder %s9, 3
    %p108 = por %p106, %p107
    %p109 = scmp.ne.s32.totalorder %s101, %s104
    %p110 = scmp.eq.s32.totalorder %s9, 0
    %p111 = por %p109, %p110
    %p112 = scmp.ne.s32.totalorder %s101, %s104
    %p113 = scmp.eq.s32.totalorder %s14, 3
    %p114 = por %p112, %p113
    %p115 = scmp.ne.s32.totalorder %s104, %s105
    %p116 = scmp.eq.s32.totalorder %s14, 0
    %p117 = por %p115, %p116
    %p118 = scmp.ne.s32.totalorder %s104, %s105
    %p119 = scmp.eq.s32.totalorder %s15, 3
    %p120 = por %p118, %p119
    %p122 = scmp.ne.s32.totalorder %s105, %s121
    %p123 = scmp.eq.s32.totalorder %s15, 0
    %p124 = por %p122, %p123
    %p125 = scmp.le.s32.totalorder 1, %s9
    %p126 = scmp.lt.s32.totalorder %s9, 5
    %p127 = pnand %p125, %p126
    %p128 = pneg %p127
    // Predicated region
    $region9: #{hyper_analysis_ex.5} parent=5 // pred_check
      _
    $region10: #{hyper_analysis_ex.5} parent=5 // pred_check_branch
      %130 = sbr.rel (%p127) target = $region12
    $region11: #{hyper_analysis_ex.5} parent=5 // pred_region
      %s131 = ssub.s32 %s9, 1
      // Predicated region
      $region13: #{hyper_analysis_ex.5} parent=11 // pred_check
        %p132 = pneg %p68
      $region14: #{hyper_analysis_ex.5} parent=11 // pred_check_branch
        %134 = sbr.rel (%p132) target = $region16
      $region15: #{hyper_analysis_ex.5} parent=11 // pred_region
        _
      $region16: #{hyper_analysis_ex.5} parent=11 // pred_fallthru
        _
      // Predicated region
      $region17: #{hyper_analysis_ex.5} parent=11 // pred_check
        %p135 = pneg %p89
      $region18: #{hyper_analysis_ex.5} parent=11 // pred_check_branch
        %137 = sbr.rel (%p135) target = $region20
      $region19: #{hyper_analysis_ex.5} parent=11 // pred_region
        _
      $region20: #{hyper_analysis_ex.5} parent=11 // pred_fallthru
        _
    $region12: #{hyper_analysis_ex.5} parent=5 // pred_fallthru
      _
    %p138 = scmp.lt.s32.totalorder %s9, 4
    // Predicated region
    $region21: #{hyper_analysis_ex.5} parent=5 // pred_check
      %p139 = pneg %p138
    $region22: #{hyper_analysis_ex.5} parent=5 // pred_check_branch
      %141 = sbr.rel (%p139) target = $region24
    $region23: #{hyper_analysis_ex.5} parent=5 // pred_region
      // Predicated region
      $region25: #{hyper_analysis_ex.5} parent=23 // pred_check
        %p142 = pneg %p41
      $region26: #{hyper_analysis_ex.5} parent=23 // pred_check_branch
        %144 = sbr.rel (%p142) target = $region28
      $region27: #{hyper_analysis_ex.5} parent=23 // pred_region
        %p145 = scmp.lt.s32.totalorder %s16, 1
        %s146 = scalar_select %p145, %s16, 1
        %s147 = smul.addr %s146, 18
        %s148 = smul.addr %s147, 4
        %s149 = scalar_lea.vmem %s0, %s148
      $region28: #{hyper_analysis_ex.5} parent=23 // pred_fallthru
        _
    $region24: #{hyper_analysis_ex.5} parent=5 // pred_fallthru
      _
    %p150 = scmp.le.s32.totalorder 1, %s9
    %p151 = scmp.lt.s32.totalorder %s9, 5
    %p152 = pnand %p150, %p151
    %p153 = pneg %p152
    // Predicated region
    $region29: #{hyper_analysis_ex.5} parent=5 // pred_check
      _
    $region30: #{hyper_analysis_ex.5} parent=5 // pred_check_branch
      %155 = sbr.rel (%p152) target = $region32
    $region31: #{hyper_analysis_ex.5} parent=5 // pred_region
      %s156 = ssub.s32 %s9, 1
      %p157 = scmp.lt.s32.totalorder %s18, 1
      %s158 = scalar_select %p157, %s18, 1
      %s159 = smul.addr %s158, 18
      %s160 = smul.addr %s159, 4
      %s161 = scalar_lea.vmem %s0, %s160
      %p162 = pneg %p47
      %p163 = pneg %p44
      %p164 = pneg %p68
      %p165 = pneg %p65
      %p166 = pneg %p89
      %p167 = pneg %p86
      %p168 = pneg %p117
      %p169 = pneg %p114
      %s170 = smul.u32 2, %s19
      %p171 = scmp.lt.s32.totalorder %s18, 1
      %s172 = scalar_select %p171, %s18, 1
      %p173 = scmp.lt.s32.totalorder %s170, 3
      %s174 = scalar_select %p173, %s170, 3
      %s175 = smul.addr %s174, 2
      %s176 = smul.addr %s172, 8
      %s177 = sadd.s32 %s175, %s176
      %s178 = smul.addr %s177, 4
      %s179 = scalar_lea.vmem %s3, %s178
      %p180 = scmp.lt.s32.totalorder %s18, 1
      %s181 = scalar_select %p180, %s18, 1
      %s182 = smul.addr %s181, 18
      %s183 = smul.addr %s182, 4
      %s184 = scalar_lea.vmem %s0, %s183
      %s185 = smul.u32 2, %s19
      %p186 = scmp.lt.s32.totalorder %s18, 1
      %s187 = scalar_select %p186, %s18, 1
      %p188 = scmp.lt.s32.totalorder %s185, 3
      %s189 = scalar_select %p188, %s185, 3
      %s190 = smul.addr %s189, 2
      %s191 = smul.addr %s187, 8
      %s192 = sadd.s32 %s190, %s191
      %s193 = smul.addr %s192, 4
      %s194 = scalar_lea.vmem %s3, %s193
      %s195 = smul.u32 2, %s19
      %s197 = smul.u32 %s19, 2
      %s198 = smul.u32 %s197, 3
      %s199 = smul.addr %s198, 4
      %s200 = scalar_lea.vmem %s184, %s199
      %v201 = vld [vmem:[%s200] sm:$0xf]
      %v202 = vld [vmem:[%s200 + $0x4] sm:$0xf]
      %v203 = vld [vmem:[%s200 + $0xc] sm:$0xf]
      %v204 = vld [vmem:[%s200 + $0x10] sm:$0xf]
      %v205 = vld [vmem:[%s1] sm:$0xf]
      %v206 = vld [vmem:[%s1 + $0x4] sm:$0xf]
      %v207 = vld [vmem:[%s1 + $0x8] sm:$0xf]
      %v208 = vld [vmem:[%s1 + $0xc] sm:$0xf]
      %v209 = vld [vmem:[%s200 + $0x8] sm:$0x1]
      %v210 = vld [vmem:[%s200 + $0x14] sm:$0x1]
      %vm211 = vsmask.f32 3328
      %vm212 = vsmask.f32 7440
      %vm213 = vmor %vm211, %vm212
      %v215 = vshrl.u32 %v201, 16
      %v217 = vrot.slane %v215, 4
      %v218 = vshll.u32 %v201, 16
      %v220 = vrot.slane %v218, 5
      %v221 = vor.u32 %v217, %v220
      %v222 = vrot.slane %v221, 4
      %v224 = vshll.u32 %v202, 16
      %v226 = vrot.slane %v224, 5
      %v227 = vsel %vm213, %v222, %v226
      %v228 = vshrl.u32 %v202, 16
      %v230 = vrot.slane %v228, 4
      %v231 = vor.u32 %v230, %v226
      %v232 = vrot.slane %v231, 4
      %v234 = vshll.u32 %v209, 16
      %v236 = vrot.slane %v234, 5
      %v237 = vsel %vm213, %v232, %v236
      %v239 = vshrl.u32 %v203, 16
      %v241 = vrot.slane %v239, 4
      %v242 = vshll.u32 %v203, 16
      %v244 = vrot.slane %v242, 5
      %v245 = vor.u32 %v241, %v244
      %v246 = vrot.slane %v245, 4
      %v248 = vshll.u32 %v204, 16
      %v250 = vrot.slane %v248, 5
      %v251 = vsel %vm213, %v246, %v250
      %v252 = vshrl.u32 %v204, 16
      %v254 = vrot.slane %v252, 4
      %v255 = vor.u32 %v254, %v250
      %v256 = vrot.slane %v255, 4
      %v258 = vshll.u32 %v210, 16
      %v260 = vrot.slane %v258, 5
      %v261 = vsel %vm213, %v256, %v260
      %s262 = scalar_lea.vmem %s1, 16
      %v263 = vld [vmem:[%s262] sm:$0xf]
      %v264 = vld [vmem:[%s262 + $0x4] sm:$0xf]
      %v265 = vld [vmem:[%s262 + $0x8] sm:$0xf]
      %v266 = vld [vmem:[%s262 + $0xc] sm:$0xf]
      %v267 = vunpack.c.l.b16 %v227
      %v268 = vunpack.c.l.b16 %v237
      %v269 = vunpack.c.l.b16 %v251
      %v270 = vunpack.c.l.b16 %v261
      %v271 = vpack.c.b16 %v268, %v267
      %v272 = vpack.c.b16 %v270, %v269
      %v277 = vunpack.c.l.b16 %v263
      %v278 = vunpack.c.l.b16 %v264
      %v279 = vunpack.c.l.b16 %v265
      %v280 = vunpack.c.l.b16 %v266
      %v281 = vpack.c.b16 %v278, %v277
      %v282 = vpack.c.b16 %v280, %v279
      %vm285 = vcmask 261120
      %v287 = vsel %vm285, %v271, 0
      %v290 = vsel %vm285, %v272, 0
      %292 = vmatprep.subr.bf16.mxu0 0
      %293 = vmatpush1.bf16.msra.mxu0 0
      %294 = vmatprep.subr.bf16.mxu0 0
      %295 = vmatpush1.bf16.msra.mxu0 0
      %296 = vmatprep.subr.bf16.mxu0 0
      %297 = vmatpush1.bf16.msra.mxu0 0
      %298 = vmatprep.subr.bf16.mxu0 0
      %299 = vmatpush1.bf16.msra.mxu0 0
      %300 = vmatprep.subr.bf16.mxu0 0
      %301 = vmatpush1.bf16.msra.mxu0 0
      %302 = vmatprep.subr.bf16.mxu0 0
      %303 = vmatpush1.bf16.msra.mxu0 0
      %304 = vmatprep.subr.bf16.mxu0 0
      %305 = vmatpush1.bf16.msra.mxu0 %v282
      %306 = vmatprep.subr.bf16.mxu0 0
      %307 = vmatpush1.bf16.msra.mxu0 %v281
      %308 = vmatprep.subr.bf16.mxu0 0
      %309 = vmatpush2.bf16.msra.mxu0 0
      %310 = vmatprep.subr.bf16.mxu0 0
      %311 = vmatpush2.bf16.msra.mxu0 0
      %312 = vmatprep.subr.bf16.mxu0 0
      %313 = vmatpush2.bf16.msra.mxu0 0
      %314 = vmatprep.subr.bf16.mxu0 0
      %315 = vmatpush2.bf16.msra.mxu0 0
      %316 = vmatprep.subr.bf16.mxu0 0
      %317 = vmatpush2.bf16.msra.mxu0 0
      %318 = vmatprep.subr.bf16.mxu0 0
      %319 = vmatpush2.bf16.msra.mxu0 0
      %320 = vmatprep.subr.bf16.mxu0 0
      %321 = vmatpush2.bf16.msra.mxu0 0
      %322 = vmatprep.subr.bf16.mxu0 0
      %323 = vmatpush2.bf16.msra.mxu0 0
      %324 = vmatprep.mubr.bf16.mxu0 0
      %325 = vmatmul.mubr.bf16.gmra.mxu0 %v287
      %v326 = vpop.f32.mrf.mxu0
      %v327 = vadd.f32 0.0, %v326
      %v328 = vpop.f32.mrf.mxu0
      %v329 = vpop.f32.mrf.mxu0
      %v330 = vadd.f32 0.0, %v329
      %v331 = vpop.f32.mrf.mxu0
      %332 = vmatprep.mubr.bf16.mxu0 0
      %333 = vmatmul.mubr.bf16.gmra.mxu0 %v290
      %v334 = vpop.f32.mrf.mxu0
      %v335 = vadd.f32 0.0, %v334
      %v336 = vpop.f32.mrf.mxu0
      %v337 = vpop.f32.mrf.mxu0
      %v338 = vadd.f32 0.0, %v337
      %v339 = vpop.f32.mrf.mxu0
      %340 = vdwg.mxu0
      %v345 = vunpack.c.l.b16 %v201
      %v346 = vunpack.c.l.b16 %v202
      %v347 = vunpack.c.l.b16 %v203
      %v348 = vunpack.c.l.b16 %v204
      %v349 = vpack.c.b16 %v346, %v345
      %v350 = vpack.c.b16 %v348, %v347
      %v355 = vunpack.c.l.b16 %v205
      %v356 = vunpack.c.l.b16 %v206
      %v357 = vunpack.c.l.b16 %v207
      %v358 = vunpack.c.l.b16 %v208
      %v359 = vpack.c.b16 %v356, %v355
      %v360 = vpack.c.b16 %v358, %v357
      %v364 = vsel %vm285, %v349, 0
      %v367 = vsel %vm285, %v350, 0
      %369 = vmatprep.subr.bf16.mxu0 0
      %370 = vmatpush1.bf16.msra.mxu0 0
      %371 = vmatprep.subr.bf16.mxu0 0
      %372 = vmatpush1.bf16.msra.mxu0 0
      %373 = vmatprep.subr.bf16.mxu0 0
      %374 = vmatpush1.bf16.msra.mxu0 0
      %375 = vmatprep.subr.bf16.mxu0 0
      %376 = vmatpush1.bf16.msra.mxu0 0
      %377 = vmatprep.subr.bf16.mxu0 0
      %378 = vmatpush1.bf16.msra.mxu0 0
      %379 = vmatprep.subr.bf16.mxu0 0
      %380 = vmatpush1.bf16.msra.mxu0 0
      %381 = vmatprep.subr.bf16.mxu0 0
      %382 = vmatpush1.bf16.msra.mxu0 %v360
      %383 = vmatprep.subr.bf16.mxu0 0
      %384 = vmatpush1.bf16.msra.mxu0 %v359
      %385 = vmatprep.subr.bf16.mxu0 0
      %386 = vmatpush2.bf16.msra.mxu0 0
      %387 = vmatprep.subr.bf16.mxu0 0
      %388 = vmatpush2.bf16.msra.mxu0 0
      %389 = vmatprep.subr.bf16.mxu0 0
      %390 = vmatpush2.bf16.msra.mxu0 0
      %391 = vmatprep.subr.bf16.mxu0 0
      %392 = vmatpush2.bf16.msra.mxu0 0
      %393 = vmatprep.subr.bf16.mxu0 0
      %394 = vmatpush2.bf16.msra.mxu0 0
      %395 = vmatprep.subr.bf16.mxu0 0
      %396 = vmatpush2.bf16.msra.mxu0 0
      %397 = vmatprep.subr.bf16.mxu0 0
      %398 = vmatpush2.bf16.msra.mxu0 0
      %399 = vmatprep.subr.bf16.mxu0 0
      %400 = vmatpush2.bf16.msra.mxu0 0
      %401 = vmatprep.mubr.bf16.mxu0 0
      %402 = vmatmul.mubr.bf16.gmra.mxu0 %v364
      %v403 = vpop.f32.mrf.mxu0
      %v404 = vadd.f32 %v327, %v403
      %v405 = vpop.f32.mrf.mxu0
      %v406 = vpop.f32.mrf.mxu0
      %v407 = vadd.f32 %v330, %v406
      %v408 = vpop.f32.mrf.mxu0
      %409 = vmatprep.mubr.bf16.mxu0 0
      %410 = vmatmul.mubr.bf16.gmra.mxu0 %v367
      %v411 = vpop.f32.mrf.mxu0
      %v412 = vadd.f32 %v335, %v411
      %v413 = vpop.f32.mrf.mxu0
      %v414 = vpop.f32.mrf.mxu0
      %v415 = vadd.f32 %v338, %v414
      %v416 = vpop.f32.mrf.mxu0
      %417 = vdwg.mxu0
      %v418 = vld [vmem:[%s200] sm:$0xe]
      %v419 = vld [vmem:[%s200 + $0xc] sm:$0xe]
      %vm424 = vcmask 1042432
      %vm425 = vcmask 1046532
      %vm426 = vmor %vm424, %vm425
      %v427 = vrot.slane %v418, 5
      %v428 = vrot.slane %v427, 4
      %v429 = vrot.slane %v202, 5
      %v430 = vsel %vm426, %v428, %v429
      %v431 = vrot.slane %v429, 4
      %v432 = vrot.slane %v209, 5
      %v433 = vsel %vm426, %v431, %v432
      %v434 = vrot.slane %v419, 5
      %v435 = vrot.slane %v434, 4
      %v436 = vrot.slane %v204, 5
      %v437 = vsel %vm426, %v435, %v436
      %v438 = vrot.slane %v436, 4
      %v439 = vrot.slane %v210, 5
      %v440 = vsel %vm426, %v438, %v439
      %s441 = scalar_lea.vmem %s1, 32
      %v442 = vld [vmem:[%s441] sm:$0xf]
      %v443 = vld [vmem:[%s441 + $0x4] sm:$0xf]
      %v444 = vld [vmem:[%s441 + $0x8] sm:$0xf]
      %v445 = vld [vmem:[%s441 + $0xc] sm:$0xf]
      %v446 = vunpack.c.l.b16 %v430
      %v447 = vunpack.c.l.b16 %v433
      %v448 = vunpack.c.l.b16 %v437
      %v449 = vunpack.c.l.b16 %v440
      %v450 = vpack.c.b16 %v447, %v446
      %v451 = vpack.c.b16 %v449, %v448
      %v456 = vunpack.c.l.b16 %v442
      %v457 = vunpack.c.l.b16 %v443
      %v458 = vunpack.c.l.b16 %v444
      %v459 = vunpack.c.l.b16 %v445
      %v460 = vpack.c.b16 %v457, %v456
      %v461 = vpack.c.b16 %v459, %v458
      %v465 = vsel %vm285, %v450, 0
      %v468 = vsel %vm285, %v451, 0
      %470 = vmatprep.subr.bf16.mxu0 0
      %471 = vmatpush1.bf16.msra.mxu0 0
      %472 = vmatprep.subr.bf16.mxu0 0
      %473 = vmatpush1.bf16.msra.mxu0 0
      %474 = vmatprep.subr.bf16.mxu0 0
      %475 = vmatpush1.bf16.msra.mxu0 0
      %476 = vmatprep.subr.bf16.mxu0 0
      %477 = vmatpush1.bf16.msra.mxu0 0
      %478 = vmatprep.subr.bf16.mxu0 0
      %479 = vmatpush1.bf16.msra.mxu0 0
      %480 = vmatprep.subr.bf16.mxu0 0
      %481 = vmatpush1.bf16.msra.mxu0 0
      %482 = vmatprep.subr.bf16.mxu0 0
      %483 = vmatpush1.bf16.msra.mxu0 %v461
      %484 = vmatprep.subr.bf16.mxu0 0
      %485 = vmatpush1.bf16.msra.mxu0 %v460
      %486 = vmatprep.subr.bf16.mxu0 0
      %487 = vmatpush2.bf16.msra.mxu0 0
      %488 = vmatprep.subr.bf16.mxu0 0
      %489 = vmatpush2.bf16.msra.mxu0 0
      %490 = vmatprep.subr.bf16.mxu0 0
      %491 = vmatpush2.bf16.msra.mxu0 0
      %492 = vmatprep.subr.bf16.mxu0 0
      %493 = vmatpush2.bf16.msra.mxu0 0
      %494 = vmatprep.subr.bf16.mxu0 0
      %495 = vmatpush2.bf16.msra.mxu0 0
      %496 = vmatprep.subr.bf16.mxu0 0
      %497 = vmatpush2.bf16.msra.mxu0 0
      %498 = vmatprep.subr.bf16.mxu0 0
      %499 = vmatpush2.bf16.msra.mxu0 0
      %500 = vmatprep.subr.bf16.mxu0 0
      %501 = vmatpush2.bf16.msra.mxu0 0
      %502 = vmatprep.mubr.bf16.mxu0 0
      %503 = vmatmul.mubr.bf16.gmra.mxu0 %v465
      %v504 = vpop.f32.mrf.mxu0
      %v505 = vadd.f32 0.0, %v504
      %v506 = vpop.f32.mrf.mxu0
      %v507 = vpop.f32.mrf.mxu0
      %v508 = vadd.f32 0.0, %v507
      %v509 = vpop.f32.mrf.mxu0
      %510 = vmatprep.mubr.bf16.mxu0 0
      %511 = vmatmul.mubr.bf16.gmra.mxu0 %v468
      %v512 = vpop.f32.mrf.mxu0
      %v513 = vadd.f32 0.0, %v512
      %v514 = vpop.f32.mrf.mxu0
      %v515 = vpop.f32.mrf.mxu0
      %v516 = vadd.f32 0.0, %v515
      %v517 = vpop.f32.mrf.mxu0
      %518 = vdwg.mxu0
      %v519 = vadd.f32 %v404, %v505
      %v520 = vadd.f32 %v407, %v508
      %v521 = vadd.f32 %v412, %v513
      %v522 = vadd.f32 %v415, %v516
      %s523 = sadd.s32 %s197, 1
      %s524 = smul.u32 %s523, 3
      %s525 = smul.addr %s524, 4
      %s526 = scalar_lea.vmem %s184, %s525
      %v527 = vld [vmem:[%s526] sm:$0xf]
      %v528 = vld [vmem:[%s526 + $0x4] sm:$0xf]
      %v529 = vld [vmem:[%s526 + $0xc] sm:$0xf]
      %v530 = vld [vmem:[%s526 + $0x10] sm:$0xf]
      %s531 = scalar_lea.vmem %s1, 48
      %v532 = vld [vmem:[%s531] sm:$0xf]
      %v533 = vld [vmem:[%s531 + $0x4] sm:$0xf]
      %v534 = vld [vmem:[%s531 + $0x8] sm:$0xf]
      %v535 = vld [vmem:[%s531 + $0xc] sm:$0xf]
      %v540 = vunpack.c.l.b16 %v527
      %v541 = vunpack.c.l.b16 %v528
      %v542 = vunpack.c.l.b16 %v529
      %v543 = vunpack.c.l.b16 %v530
      %v544 = vpack.c.b16 %v541, %v540
      %v545 = vpack.c.b16 %v543, %v542
      %v550 = vunpack.c.l.b16 %v532
      %v551 = vunpack.c.l.b16 %v533
      %v552 = vunpack.c.l.b16 %v534
      %v553 = vunpack.c.l.b16 %v535
      %v554 = vpack.c.b16 %v551, %v550
      %v555 = vpack.c.b16 %v553, %v552
      %v559 = vsel %vm285, %v544, 0
      %v562 = vsel %vm285, %v545, 0
      %564 = vmatprep.subr.bf16.mxu0 0
      %565 = vmatpush1.bf16.msra.mxu0 0
      %566 = vmatprep.subr.bf16.mxu0 0
      %567 = vmatpush1.bf16.msra.mxu0 0
      %568 = vmatprep.subr.bf16.mxu0 0
      %569 = vmatpush1.bf16.msra.mxu0 0
      %570 = vmatprep.subr.bf16.mxu0 0
      %571 = vmatpush1.bf16.msra.mxu0 0
      %572 = vmatprep.subr.bf16.mxu0 0
      %573 = vmatpush1.bf16.msra.mxu0 0
      %574 = vmatprep.subr.bf16.mxu0 0
      %575 = vmatpush1.bf16.msra.mxu0 0
      %576 = vmatprep.subr.bf16.mxu0 0
      %577 = vmatpush1.bf16.msra.mxu0 %v555
      %578 = vmatprep.subr.bf16.mxu0 0
      %579 = vmatpush1.bf16.msra.mxu0 %v554
      %580 = vmatprep.subr.bf16.mxu0 0
      %581 = vmatpush2.bf16.msra.mxu0 0
      %582 = vmatprep.subr.bf16.mxu0 0
      %583 = vmatpush2.bf16.msra.mxu0 0
      %584 = vmatprep.subr.bf16.mxu0 0
      %585 = vmatpush2.bf16.msra.mxu0 0
      %586 = vmatprep.subr.bf16.mxu0 0
      %587 = vmatpush2.bf16.msra.mxu0 0
      %588 = vmatprep.subr.bf16.mxu0 0
      %589 = vmatpush2.bf16.msra.mxu0 0
      %590 = vmatprep.subr.bf16.mxu0 0
      %591 = vmatpush2.bf16.msra.mxu0 0
      %592 = vmatprep.subr.bf16.mxu0 0
      %593 = vmatpush2.bf16.msra.mxu0 0
      %594 = vmatprep.subr.bf16.mxu0 0
      %595 = vmatpush2.bf16.msra.mxu0 0
      %596 = vmatprep.mubr.bf16.mxu0 0
      %597 = vmatmul.mubr.bf16.gmra.mxu0 %v559
      %v598 = vpop.f32.mrf.mxu0
      %v599 = vadd.f32 0.0, %v598
      %v600 = vpop.f32.mrf.mxu0
      %v601 = vpop.f32.mrf.mxu0
      %v602 = vadd.f32 0.0, %v601
      %v603 = vpop.f32.mrf.mxu0
      %604 = vmatprep.mubr.bf16.mxu0 0
      %605 = vmatmul.mubr.bf16.gmra.mxu0 %v562
      %v606 = vpop.f32.mrf.mxu0
      %v607 = vadd.f32 0.0, %v606
      %v608 = vpop.f32.mrf.mxu0
      %v609 = vpop.f32.mrf.mxu0
      %v610 = vadd.f32 0.0, %v609
      %v611 = vpop.f32.mrf.mxu0
      %612 = vdwg.mxu0
      %v613 = vadd.f32 %v519, %v599
      %v614 = vadd.f32 %v520, %v602
      %v615 = vadd.f32 %v521, %v607
      %v616 = vadd.f32 %v522, %v610
      %v617 = vld [vmem:[%s526] sm:$0xf]
      %v618 = vld [vmem:[%s526 + $0x4] sm:$0xf]
      %v619 = vld [vmem:[%s526 + $0x8] sm:$0x1]
      %v620 = vld [vmem:[%s526 + $0xc] sm:$0xf]
      %v621 = vld [vmem:[%s526 + $0x10] sm:$0xf]
      %v622 = vld [vmem:[%s526 + $0x14] sm:$0x1]
      %v624 = vshrl.u32 %v617, 16
      %v626 = vrot.slane %v624, 4
      %v627 = vshll.u32 %v617, 16
      %v629 = vrot.slane %v627, 5
      %v630 = vor.u32 %v626, %v629
      %v631 = vrot.slane %v630, 4
      %v633 = vshll.u32 %v618, 16
      %v635 = vrot.slane %v633, 5
      %v636 = vsel %vm213, %v631, %v635
      %v637 = vshrl.u32 %v618, 16
      %v639 = vrot.slane %v637, 4
      %v640 = vor.u32 %v639, %v635
      %v641 = vrot.slane %v640, 4
      %v643 = vshll.u32 %v619, 16
      %v645 = vrot.slane %v643, 5
      %v646 = vsel %vm213, %v641, %v645
      %v648 = vshrl.u32 %v620, 16
      %v650 = vrot.slane %v648, 4
      %v651 = vshll.u32 %v620, 16
      %v653 = vrot.slane %v651, 5
      %v654 = vor.u32 %v650, %v653
      %v655 = vrot.slane %v654, 4
      %v657 = vshll.u32 %v621, 16
      %v659 = vrot.slane %v657, 5
      %v660 = vsel %vm213, %v655, %v659
      %v661 = vshrl.u32 %v621, 16
      %v663 = vrot.slane %v661, 4
      %v664 = vor.u32 %v663, %v659
      %v665 = vrot.slane %v664, 4
      %v667 = vshll.u32 %v622, 16
      %v669 = vrot.slane %v667, 5
      %v670 = vsel %vm213, %v665, %v669
      %s671 = scalar_lea.vmem %s1, 64
      %v672 = vld [vmem:[%s671] sm:$0xf]
      %v673 = vld [vmem:[%s671 + $0x4] sm:$0xf]
      %v674 = vld [vmem:[%s671 + $0x8] sm:$0xf]
      %v675 = vld [vmem:[%s671 + $0xc] sm:$0xf]
      %v676 = vunpack.c.l.b16 %v636
      %v677 = vunpack.c.l.b16 %v646
      %v678 = vunpack.c.l.b16 %v660
      %v679 = vunpack.c.l.b16 %v670
      %v680 = vpack.c.b16 %v677, %v676
      %v681 = vpack.c.b16 %v679, %v678
      %v686 = vunpack.c.l.b16 %v672
      %v687 = vunpack.c.l.b16 %v673
      %v688 = vunpack.c.l.b16 %v674
      %v689 = vunpack.c.l.b16 %v675
      %v690 = vpack.c.b16 %v687, %v686
      %v691 = vpack.c.b16 %v689, %v688
      %v695 = vsel %vm285, %v680, 0
      %v698 = vsel %vm285, %v681, 0
      %700 = vmatprep.subr.bf16.mxu0 0
      %701 = vmatpush1.bf16.msra.mxu0 0
      %702 = vmatprep.subr.bf16.mxu0 0
      %703 = vmatpush1.bf16.msra.mxu0 0
      %704 = vmatprep.subr.bf16.mxu0 0
      %705 = vmatpush1.bf16.msra.mxu0 0
      %706 = vmatprep.subr.bf16.mxu0 0
      %707 = vmatpush1.bf16.msra.mxu0 0
      %708 = vmatprep.subr.bf16.mxu0 0
      %709 = vmatpush1.bf16.msra.mxu0 0
      %710 = vmatprep.subr.bf16.mxu0 0
      %711 = vmatpush1.bf16.msra.mxu0 0
      %712 = vmatprep.subr.bf16.mxu0 0
      %713 = vmatpush1.bf16.msra.mxu0 %v691
      %714 = vmatprep.subr.bf16.mxu0 0
      %715 = vmatpush1.bf16.msra.mxu0 %v690
      %716 = vmatprep.subr.bf16.mxu0 0
      %717 = vmatpush2.bf16.msra.mxu0 0
      %718 = vmatprep.subr.bf16.mxu0 0
      %719 = vmatpush2.bf16.msra.mxu0 0
      %720 = vmatprep.subr.bf16.mxu0 0
      %721 = vmatpush2.bf16.msra.mxu0 0
      %722 = vmatprep.subr.bf16.mxu0 0
      %723 = vmatpush2.bf16.msra.mxu0 0
      %724 = vmatprep.subr.bf16.mxu0 0
      %725 = vmatpush2.bf16.msra.mxu0 0
      %726 = vmatprep.subr.bf16.mxu0 0
      %727 = vmatpush2.bf16.msra.mxu0 0
      %728 = vmatprep.subr.bf16.mxu0 0
      %729 = vmatpush2.bf16.msra.mxu0 0
      %730 = vmatprep.subr.bf16.mxu0 0
      %731 = vmatpush2.bf16.msra.mxu0 0
      %732 = vmatprep.mubr.bf16.mxu0 0
      %733 = vmatmul.mubr.bf16.gmra.mxu0 %v695
      %v734 = vpop.f32.mrf.mxu0
      %v735 = vadd.f32 0.0, %v734
      %v736 = vpop.f32.mrf.mxu0
      %v737 = vpop.f32.mrf.mxu0
      %v738 = vadd.f32 0.0, %v737
      %v739 = vpop.f32.mrf.mxu0
      %740 = vmatprep.mubr.bf16.mxu0 0
      %741 = vmatmul.mubr.bf16.gmra.mxu0 %v698
      %v742 = vpop.f32.mrf.mxu0
      %v743 = vadd.f32 0.0, %v742
      %v744 = vpop.f32.mrf.mxu0
      %v745 = vpop.f32.mrf.mxu0
      %v746 = vadd.f32 0.0, %v745
      %v747 = vpop.f32.mrf.mxu0
      %748 = vdwg.mxu0
      %v749 = vadd.f32 %v613, %v735
      %v750 = vadd.f32 %v614, %v738
      %v751 = vadd.f32 %v615, %v743
      %v752 = vadd.f32 %v616, %v746
      %v753 = vld [vmem:[%s526] sm:$0xe]
      %v754 = vld [vmem:[%s526 + $0xc] sm:$0xe]
      %v761 = vrot.slane %v753, 5
      %v762 = vrot.slane %v761, 4
      %v763 = vrot.slane %v618, 5
      %v764 = vsel %vm426, %v762, %v763
      %v765 = vrot.slane %v763, 4
      %v766 = vrot.slane %v619, 5
      %v767 = vsel %vm426, %v765, %v766
      %v768 = vrot.slane %v754, 5
      %v769 = vrot.slane %v768, 4
      %v770 = vrot.slane %v621, 5
      %v771 = vsel %vm426, %v769, %v770
      %v772 = vrot.slane %v770, 4
      %v773 = vrot.slane %v622, 5
      %v774 = vsel %vm426, %v772, %v773
      %s775 = scalar_lea.vmem %s1, 80
      %v776 = vld [vmem:[%s775] sm:$0xf]
      %v777 = vld [vmem:[%s775 + $0x4] sm:$0xf]
      %v778 = vld [vmem:[%s775 + $0x8] sm:$0xf]
      %v779 = vld [vmem:[%s775 + $0xc] sm:$0xf]
      %v780 = vunpack.c.l.b16 %v764
      %v781 = vunpack.c.l.b16 %v767
      %v782 = vunpack.c.l.b16 %v771
      %v783 = vunpack.c.l.b16 %v774
      %v784 = vpack.c.b16 %v781, %v780
      %v785 = vpack.c.b16 %v783, %v782
      %v790 = vunpack.c.l.b16 %v776
      %v791 = vunpack.c.l.b16 %v777
      %v792 = vunpack.c.l.b16 %v778
      %v793 = vunpack.c.l.b16 %v779
      %v794 = vpack.c.b16 %v791, %v790
      %v795 = vpack.c.b16 %v793, %v792
      %v799 = vsel %vm285, %v784, 0
      %v802 = vsel %vm285, %v785, 0
      %804 = vmatprep.subr.bf16.mxu0 0
      %805 = vmatpush1.bf16.msra.mxu0 0
      %806 = vmatprep.subr.bf16.mxu0 0
      %807 = vmatpush1.bf16.msra.mxu0 0
      %808 = vmatprep.subr.bf16.mxu0 0
      %809 = vmatpush1.bf16.msra.mxu0 0
      %810 = vmatprep.subr.bf16.mxu0 0
      %811 = vmatpush1.bf16.msra.mxu0 0
      %812 = vmatprep.subr.bf16.mxu0 0
      %813 = vmatpush1.bf16.msra.mxu0 0
      %814 = vmatprep.subr.bf16.mxu0 0
      %815 = vmatpush1.bf16.msra.mxu0 0
      %816 = vmatprep.subr.bf16.mxu0 0
      %817 = vmatpush1.bf16.msra.mxu0 %v795
      %818 = vmatprep.subr.bf16.mxu0 0
      %819 = vmatpush1.bf16.msra.mxu0 %v794
      %820 = vmatprep.subr.bf16.mxu0 0
      %821 = vmatpush2.bf16.msra.mxu0 0
      %822 = vmatprep.subr.bf16.mxu0 0
      %823 = vmatpush2.bf16.msra.mxu0 0
      %824 = vmatprep.subr.bf16.mxu0 0
      %825 = vmatpush2.bf16.msra.mxu0 0
      %826 = vmatprep.subr.bf16.mxu0 0
      %827 = vmatpush2.bf16.msra.mxu0 0
      %828 = vmatprep.subr.bf16.mxu0 0
      %829 = vmatpush2.bf16.msra.mxu0 0
      %830 = vmatprep.subr.bf16.mxu0 0
      %831 = vmatpush2.bf16.msra.mxu0 0
      %832 = vmatprep.subr.bf16.mxu0 0
      %833 = vmatpush2.bf16.msra.mxu0 0
      %834 = vmatprep.subr.bf16.mxu0 0
      %835 = vmatpush2.bf16.msra.mxu0 0
      %836 = vmatprep.mubr.bf16.mxu0 0
      %837 = vmatmul.mubr.bf16.gmra.mxu0 %v799
      %v838 = vpop.f32.mrf.mxu0
      %v839 = vadd.f32 0.0, %v838
      %v840 = vpop.f32.mrf.mxu0
      %v841 = vpop.f32.mrf.mxu0
      %v842 = vadd.f32 0.0, %v841
      %v843 = vpop.f32.mrf.mxu0
      %844 = vmatprep.mubr.bf16.mxu0 0
      %845 = vmatmul.mubr.bf16.gmra.mxu0 %v802
      %v846 = vpop.f32.mrf.mxu0
      %v847 = vadd.f32 0.0, %v846
      %v848 = vpop.f32.mrf.mxu0
      %v849 = vpop.f32.mrf.mxu0
      %v850 = vadd.f32 0.0, %v849
      %v851 = vpop.f32.mrf.mxu0
      %852 = vdwg.mxu0
      %v853 = vadd.f32 %v749, %v839
      %v854 = vadd.f32 %v750, %v842
      %v855 = vadd.f32 %v751, %v847
      %v856 = vadd.f32 %v752, %v850
      %s857 = sadd.s32 %s197, 2
      %s858 = smul.u32 %s857, 3
      %s859 = smul.addr %s858, 4
      %s860 = scalar_lea.vmem %s184, %s859
      %v861 = vld [vmem:[%s860] sm:$0xf]
      %v862 = vld [vmem:[%s860 + $0x4] sm:$0xf]
      %v863 = vld [vmem:[%s860 + $0xc] sm:$0xf]
      %v864 = vld [vmem:[%s860 + $0x10] sm:$0xf]
      %s865 = scalar_lea.vmem %s1, 96
      %v866 = vld [vmem:[%s865] sm:$0xf]
      %v867 = vld [vmem:[%s865 + $0x4] sm:$0xf]
      %v868 = vld [vmem:[%s865 + $0x8] sm:$0xf]
      %v869 = vld [vmem:[%s865 + $0xc] sm:$0xf]
      %v874 = vunpack.c.l.b16 %v861
      %v875 = vunpack.c.l.b16 %v862
      %v876 = vunpack.c.l.b16 %v863
      %v877 = vunpack.c.l.b16 %v864
      %v878 = vpack.c.b16 %v875, %v874
      %v879 = vpack.c.b16 %v877, %v876
      %v884 = vunpack.c.l.b16 %v866
      %v885 = vunpack.c.l.b16 %v867
      %v886 = vunpack.c.l.b16 %v868
      %v887 = vunpack.c.l.b16 %v869
      %v888 = vpack.c.b16 %v885, %v884
      %v889 = vpack.c.b16 %v887, %v886
      %v893 = vsel %vm285, %v878, 0
      %v896 = vsel %vm285, %v879, 0
      %898 = vmatprep.subr.bf16.mxu0 0
      %899 = vmatpush1.bf16.msra.mxu0 0
      %900 = vmatprep.subr.bf16.mxu0 0
      %901 = vmatpush1.bf16.msra.mxu0 0
      %902 = vmatprep.subr.bf16.mxu0 0
      %903 = vmatpush1.bf16.msra.mxu0 0
      %904 = vmatprep.subr.bf16.mxu0 0
      %905 = vmatpush1.bf16.msra.mxu0 0
      %906 = vmatprep.subr.bf16.mxu0 0
      %907 = vmatpush1.bf16.msra.mxu0 0
      %908 = vmatprep.subr.bf16.mxu0 0
      %909 = vmatpush1.bf16.msra.mxu0 0
      %910 = vmatprep.subr.bf16.mxu0 0
      %911 = vmatpush1.bf16.msra.mxu0 %v889
      %912 = vmatprep.subr.bf16.mxu0 0
      %913 = vmatpush1.bf16.msra.mxu0 %v888
      %914 = vmatprep.subr.bf16.mxu0 0
      %915 = vmatpush2.bf16.msra.mxu0 0
      %916 = vmatprep.subr.bf16.mxu0 0
      %917 = vmatpush2.bf16.msra.mxu0 0
      %918 = vmatprep.subr.bf16.mxu0 0
      %919 = vmatpush2.bf16.msra.mxu0 0
      %920 = vmatprep.subr.bf16.mxu0 0
      %921 = vmatpush2.bf16.msra.mxu0 0
      %922 = vmatprep.subr.bf16.mxu0 0
      %923 = vmatpush2.bf16.msra.mxu0 0
      %924 = vmatprep.subr.bf16.mxu0 0
      %925 = vmatpush2.bf16.msra.mxu0 0
      %926 = vmatprep.subr.bf16.mxu0 0
      %927 = vmatpush2.bf16.msra.mxu0 0
      %928 = vmatprep.subr.bf16.mxu0 0
      %929 = vmatpush2.bf16.msra.mxu0 0
      %930 = vmatprep.mubr.bf16.mxu0 0
      %931 = vmatmul.mubr.bf16.gmra.mxu0 %v893
      %v932 = vpop.f32.mrf.mxu0
      %v933 = vadd.f32 0.0, %v932
      %v934 = vpop.f32.mrf.mxu0
      %v935 = vpop.f32.mrf.mxu0
      %v936 = vadd.f32 0.0, %v935
      %v937 = vpop.f32.mrf.mxu0
      %938 = vmatprep.mubr.bf16.mxu0 0
      %939 = vmatmul.mubr.bf16.gmra.mxu0 %v896
      %v940 = vpop.f32.mrf.mxu0
      %v941 = vadd.f32 0.0, %v940
      %v942 = vpop.f32.mrf.mxu0
      %v943 = vpop.f32.mrf.mxu0
      %v944 = vadd.f32 0.0, %v943
      %v945 = vpop.f32.mrf.mxu0
      %946 = vdwg.mxu0
      %v947 = vadd.f32 %v853, %v933
      %v948 = vadd.f32 %v854, %v936
      %v949 = vadd.f32 %v855, %v941
      %v950 = vadd.f32 %v856, %v944
      %v951 = vld [vmem:[%s860] sm:$0xf]
      %v952 = vld [vmem:[%s860 + $0x4] sm:$0xf]
      %v953 = vld [vmem:[%s860 + $0x8] sm:$0x1]
      %v954 = vld [vmem:[%s860 + $0xc] sm:$0xf]
      %v955 = vld [vmem:[%s860 + $0x10] sm:$0xf]
      %v956 = vld [vmem:[%s860 + $0x14] sm:$0x1]
      %v958 = vshrl.u32 %v951, 16
      %v960 = vrot.slane %v958, 4
      %v961 = vshll.u32 %v951, 16
      %v963 = vrot.slane %v961, 5
      %v964 = vor.u32 %v960, %v963
      %v965 = vrot.slane %v964, 4
      %v967 = vshll.u32 %v952, 16
      %v969 = vrot.slane %v967, 5
      %v970 = vsel %vm213, %v965, %v969
      %v971 = vshrl.u32 %v952, 16
      %v973 = vrot.slane %v971, 4
      %v974 = vor.u32 %v973, %v969
      %v975 = vrot.slane %v974, 4
      %v977 = vshll.u32 %v953, 16
      %v979 = vrot.slane %v977, 5
      %v980 = vsel %vm213, %v975, %v979
      %v982 = vshrl.u32 %v954, 16
      %v984 = vrot.slane %v982, 4
      %v985 = vshll.u32 %v954, 16
      %v987 = vrot.slane %v985, 5
      %v988 = vor.u32 %v984, %v987
      %v989 = vrot.slane %v988, 4
      %v991 = vshll.u32 %v955, 16
      %v993 = vrot.slane %v991, 5
      %v994 = vsel %vm213, %v989, %v993
      %v995 = vshrl.u32 %v955, 16
      %v997 = vrot.slane %v995, 4
      %v998 = vor.u32 %v997, %v993
      %v999 = vrot.slane %v998, 4
      %v1001 = vshll.u32 %v956, 16
      %v1003 = vrot.slane %v1001, 5
      %v1004 = vsel %vm213, %v999, %v1003
      %s1005 = scalar_lea.vmem %s1, 112
      %v1006 = vld [vmem:[%s1005] sm:$0xf]
      %v1007 = vld [vmem:[%s1005 + $0x4] sm:$0xf]
      %v1008 = vld [vmem:[%s1005 + $0x8] sm:$0xf]
      %v1009 = vld [vmem:[%s1005 + $0xc] sm:$0xf]
      %v1010 = vunpack.c.l.b16 %v970
      %v1011 = vunpack.c.l.b16 %v980
      %v1012 = vunpack.c.l.b16 %v994
      %v1013 = vunpack.c.l.b16 %v1004
      %v1014 = vpack.c.b16 %v1011, %v1010
      %v1015 = vpack.c.b16 %v1013, %v1012
      %v1020 = vunpack.c.l.b16 %v1006
      %v1021 = vunpack.c.l.b16 %v1007
      %v1022 = vunpack.c.l.b16 %v1008
      %v1023 = vunpack.c.l.b16 %v1009
      %v1024 = vpack.c.b16 %v1021, %v1020
      %v1025 = vpack.c.b16 %v1023, %v1022
      %v1029 = vsel %vm285, %v1014, 0
      %v1032 = vsel %vm285, %v1015, 0
      %1034 = vmatprep.subr.bf16.mxu0 0
      %1035 = vmatpush1.bf16.msra.mxu0 0
      %1036 = vmatprep.subr.bf16.mxu0 0
      %1037 = vmatpush1.bf16.msra.mxu0 0
      %1038 = vmatprep.subr.bf16.mxu0 0
      %1039 = vmatpush1.bf16.msra.mxu0 0
      %1040 = vmatprep.subr.bf16.mxu0 0
      %1041 = vmatpush1.bf16.msra.mxu0 0
      %1042 = vmatprep.subr.bf16.mxu0 0
      %1043 = vmatpush1.bf16.msra.mxu0 0
      %1044 = vmatprep.subr.bf16.mxu0 0
      %1045 = vmatpush1.bf16.msra.mxu0 0
      %1046 = vmatprep.subr.bf16.mxu0 0
      %1047 = vmatpush1.bf16.msra.mxu0 %v1025
      %1048 = vmatprep.subr.bf16.mxu0 0
      %1049 = vmatpush1.bf16.msra.mxu0 %v1024
      %1050 = vmatprep.subr.bf16.mxu0 0
      %1051 = vmatpush2.bf16.msra.mxu0 0
      %1052 = vmatprep.subr.bf16.mxu0 0
      %1053 = vmatpush2.bf16.msra.mxu0 0
      %1054 = vmatprep.subr.bf16.mxu0 0
      %1055 = vmatpush2.bf16.msra.mxu0 0
      %1056 = vmatprep.subr.bf16.mxu0 0
      %1057 = vmatpush2.bf16.msra.mxu0 0
      %1058 = vmatprep.subr.bf16.mxu0 0
      %1059 = vmatpush2.bf16.msra.mxu0 0
      %1060 = vmatprep.subr.bf16.mxu0 0
      %1061 = vmatpush2.bf16.msra.mxu0 0
      %1062 = vmatprep.subr.bf16.mxu0 0
      %1063 = vmatpush2.bf16.msra.mxu0 0
      %1064 = vmatprep.subr.bf16.mxu0 0
      %1065 = vmatpush2.bf16.msra.mxu0 0
      %1066 = vmatprep.mubr.bf16.mxu0 0
      %1067 = vmatmul.mubr.bf16.gmra.mxu0 %v1029
      %v1068 = vpop.f32.mrf.mxu0
      %v1069 = vadd.f32 0.0, %v1068
      %v1070 = vpop.f32.mrf.mxu0
      %v1071 = vpop.f32.mrf.mxu0
      %v1072 = vadd.f32 0.0, %v1071
      %v1073 = vpop.f32.mrf.mxu0
      %1074 = vmatprep.mubr.bf16.mxu0 0
      %1075 = vmatmul.mubr.bf16.gmra.mxu0 %v1032
      %v1076 = vpop.f32.mrf.mxu0
      %v1077 = vadd.f32 0.0, %v1076
      %v1078 = vpop.f32.mrf.mxu0
      %v1079 = vpop.f32.mrf.mxu0
      %v1080 = vadd.f32 0.0, %v1079
      %v1081 = vpop.f32.mrf.mxu0
      %1082 = vdwg.mxu0
      %v1083 = vadd.f32 %v947, %v1069
      %v1084 = vadd.f32 %v948, %v1072
      %v1085 = vadd.f32 %v949, %v1077
      %v1086 = vadd.f32 %v950, %v1080
      %v1087 = vld [vmem:[%s860] sm:$0xe]
      %v1088 = vld [vmem:[%s860 + $0xc] sm:$0xe]
      %v1095 = vrot.slane %v1087, 5
      %v1096 = vrot.slane %v1095, 4
      %v1097 = vrot.slane %v952, 5
      %v1098 = vsel %vm426, %v1096, %v1097
      %v1099 = vrot.slane %v1097, 4
      %v1100 = vrot.slane %v953, 5
      %v1101 = vsel %vm426, %v1099, %v1100
      %v1102 = vrot.slane %v1088, 5
      %v1103 = vrot.slane %v1102, 4
      %v1104 = vrot.slane %v955, 5
      %v1105 = vsel %vm426, %v1103, %v1104
      %v1106 = vrot.slane %v1104, 4
      %v1107 = vrot.slane %v956, 5
      %v1108 = vsel %vm426, %v1106, %v1107
      %s1109 = scalar_lea.vmem %s1, 128
      %v1110 = vld [vmem:[%s1109] sm:$0xf]
      %v1111 = vld [vmem:[%s1109 + $0x4] sm:$0xf]
      %v1112 = vld [vmem:[%s1109 + $0x8] sm:$0xf]
      %v1113 = vld [vmem:[%s1109 + $0xc] sm:$0xf]
      %v1114 = vunpack.c.l.b16 %v1098
      %v1115 = vunpack.c.l.b16 %v1101
      %v1116 = vunpack.c.l.b16 %v1105
      %v1117 = vunpack.c.l.b16 %v1108
      %v1118 = vpack.c.b16 %v1115, %v1114
      %v1119 = vpack.c.b16 %v1117, %v1116
      %v1124 = vunpack.c.l.b16 %v1110
      %v1125 = vunpack.c.l.b16 %v1111
      %v1126 = vunpack.c.l.b16 %v1112
      %v1127 = vunpack.c.l.b16 %v1113
      %v1128 = vpack.c.b16 %v1125, %v1124
      %v1129 = vpack.c.b16 %v1127, %v1126
      %v1133 = vsel %vm285, %v1118, 0
      %v1136 = vsel %vm285, %v1119, 0
      %1138 = vmatprep.subr.bf16.mxu0 0
      %1139 = vmatpush1.bf16.msra.mxu0 0
      %1140 = vmatprep.subr.bf16.mxu0 0
      %1141 = vmatpush1.bf16.msra.mxu0 0
      %1142 = vmatprep.subr.bf16.mxu0 0
      %1143 = vmatpush1.bf16.msra.mxu0 0
      %1144 = vmatprep.subr.bf16.mxu0 0
      %1145 = vmatpush1.bf16.msra.mxu0 0
      %1146 = vmatprep.subr.bf16.mxu0 0
      %1147 = vmatpush1.bf16.msra.mxu0 0
      %1148 = vmatprep.subr.bf16.mxu0 0
      %1149 = vmatpush1.bf16.msra.mxu0 0
      %1150 = vmatprep.subr.bf16.mxu0 0
      %1151 = vmatpush1.bf16.msra.mxu0 %v1129
      %1152 = vmatprep.subr.bf16.mxu0 0
      %1153 = vmatpush1.bf16.msra.mxu0 %v1128
      %1154 = vmatprep.subr.bf16.mxu0 0
      %1155 = vmatpush2.bf16.msra.mxu0 0
      %1156 = vmatprep.subr.bf16.mxu0 0
      %1157 = vmatpush2.bf16.msra.mxu0 0
      %1158 = vmatprep.subr.bf16.mxu0 0
      %1159 = vmatpush2.bf16.msra.mxu0 0
      %1160 = vmatprep.subr.bf16.mxu0 0
      %1161 = vmatpush2.bf16.msra.mxu0 0
      %1162 = vmatprep.subr.bf16.mxu0 0
      %1163 = vmatpush2.bf16.msra.mxu0 0
      %1164 = vmatprep.subr.bf16.mxu0 0
      %1165 = vmatpush2.bf16.msra.mxu0 0
      %1166 = vmatprep.subr.bf16.mxu0 0
      %1167 = vmatpush2.bf16.msra.mxu0 0
      %1168 = vmatprep.subr.bf16.mxu0 0
      %1169 = vmatpush2.bf16.msra.mxu0 0
      %1170 = vmatprep.mubr.bf16.mxu0 0
      %1171 = vmatmul.mubr.bf16.gmra.mxu0 %v1133
      %v1172 = vpop.f32.mrf.mxu0
      %v1173 = vadd.f32 0.0, %v1172
      %v1174 = vpop.f32.mrf.mxu0
      %v1175 = vpop.f32.mrf.mxu0
      %v1176 = vadd.f32 0.0, %v1175
      %v1177 = vpop.f32.mrf.mxu0
      %1178 = vmatprep.mubr.bf16.mxu0 0
      %1179 = vmatmul.mubr.bf16.gmra.mxu0 %v1136
      %v1180 = vpop.f32.mrf.mxu0
      %v1181 = vadd.f32 0.0, %v1180
      %v1182 = vpop.f32.mrf.mxu0
      %v1183 = vpop.f32.mrf.mxu0
      %v1184 = vadd.f32 0.0, %v1183
      %v1185 = vpop.f32.mrf.mxu0
      %1186 = vdwg.mxu0
      %v1187 = vadd.f32 %v1083, %v1173
      %v1188 = vadd.f32 %v1084, %v1176
      %v1189 = vadd.f32 %v1085, %v1181
      %v1190 = vadd.f32 %v1086, %v1184
      %v1191 = vld [vmem:[%s2] sm:$0x1]
      %v1193 = vlaneseq
      %v1194 = vshrl.u32 %v1193, 7
      %v1195 = vsub.s32 0, %v1194
      %v1196 = vrot.slane %v1191, %v1195
      %v1198 = vadd.f32 %v1187, %v1196
      %v1199 = vadd.f32 %v1188, %v1196
      %v1200 = vadd.f32 %v1189, %v1196
      %v1201 = vadd.f32 %v1190, %v1196
      %v1202 = vpack.c.bf16 %v1199, %v1198
      %v1203 = vpack.c.bf16 %v1201, %v1200
      %v1206 = vunpack.c.l.b16 %v1202
      %v1207 = vunpack.c.h.b16 %v1202
      %v1208 = vunpack.c.l.b16 %v1203
      %v1209 = vunpack.c.h.b16 %v1203
      %v1210 = vpack.c.b16 %v1206, %v1206
      %v1211 = vpack.c.b16 %v1207, %v1207
      %v1212 = vpack.c.b16 %v1208, %v1208
      %v1213 = vpack.c.b16 %v1209, %v1209
      %1218 = vst [vmem:[%s194] sm:$0xf] %v1210
      %1219 = vst [vmem:[%s194 + $0x4] sm:$0xf] %v1211
      %1220 = vst [vmem:[%s194 + $0x8] sm:$0xf] %v1212
      %1221 = vst [vmem:[%s194 + $0xc] sm:$0xf] %v1213
      %s1222 = smul.u32 2, %s19
      %p1223 = scmp.lt.s32.totalorder %s18, 1
      %s1224 = scalar_select %p1223, %s18, 1
      %p1225 = scmp.lt.s32.totalorder %s1222, 3
      %s1226 = scalar_select %p1225, %s1222, 3
      %s1227 = smul.addr %s1226, 2
      %s1228 = smul.addr %s1224, 8
      %s1229 = sadd.s32 %s1227, %s1228
      %s1230 = smul.addr %s1229, 4
      %s1231 = scalar_lea.vmem %s3, %s1230
      // Predicated region
      $region33: #{hyper_analysis_ex.5} parent=31 // pred_check
        %p1232 = pneg %p114
      $region34: #{hyper_analysis_ex.5} parent=31 // pred_check_branch
        %1234 = sbr.rel (%p1232) target = $region36
      $region35: #{hyper_analysis_ex.5} parent=31 // pred_region
        %s1235 = smul.u32 2, %s19
      $region36: #{hyper_analysis_ex.5} parent=31 // pred_fallthru
        _
    $region32: #{hyper_analysis_ex.5} parent=5 // pred_fallthru
      _
    %p1236 = scmp.le.s32.totalorder 2, %s9
    // Predicated region
    $region37: #{hyper_analysis_ex.5} parent=5 // pred_check
      %p1237 = pneg %p1236
    $region38: #{hyper_analysis_ex.5} parent=5 // pred_check_branch
      %1239 = sbr.rel (%p1237) target = $region40
    $region39: #{hyper_analysis_ex.5} parent=5 // pred_region
      %s1240 = ssub.s32 %s9, 2
      // Predicated region
      $region41: #{hyper_analysis_ex.5} parent=39 // pred_check
        %p1241 = pneg %p120
      $region42: #{hyper_analysis_ex.5} parent=39 // pred_check_branch
        %1243 = sbr.rel (%p1241) target = $region44
      $region43: #{hyper_analysis_ex.5} parent=39 // pred_region
        %s1244 = smul.u32 2, %s21
        %p1245 = scmp.lt.s32.totalorder %s20, 1
        %s1246 = scalar_select %p1245, %s20, 1
        %p1247 = scmp.lt.s32.totalorder %s1244, 3
        %s1248 = scalar_select %p1247, %s1244, 3
        %s1249 = smul.addr %s1248, 2
        %s1250 = smul.addr %s1246, 8
        %s1251 = sadd.s32 %s1249, %s1250
        %s1252 = smul.addr %s1251, 4
        %s1253 = scalar_lea.vmem %s3, %s1252
      $region44: #{hyper_analysis_ex.5} parent=39 // pred_fallthru
        _
    $region40: #{hyper_analysis_ex.5} parent=5 // pred_fallthru
      _
  $region6: #{hyper_analysis_ex.5} parent=0 // loop_footer
    %s13 = sadd.s32 1, %s9
  $region7: #{hyper_analysis_ex.5} parent=0 // loop_footer_branch
    %8 = sbr.rel target = $region3
  $region8: #{hyper_analysis_ex.5} parent=0 // loop_exit
    _

</llo_original>
